<compile_context>
chip_gen: v7x
topology: tpu7x:2x2x1
jax: 0.10.0
libtpu: 0.0.40
codegen_flags: <defaults>
</compile_context>

<pallas_src>
import math

import jax
import jax.numpy as jnp
from jax.experimental import pallas as pl
from jax.experimental.pallas import tpu as pltpu

# Per-graph sizes (residual connections force in == out for node and edge dims).
N_NODES = 8
N_EDGES = 16
D = 32
NUM_HEADS = 4
GROUP = 8            # graphs fused per grid step (disjoint-union batching)

# Column layout of the fused projection slab (width 4*D + 4*H = 144):
#   [ W_rs | W_ro | W_sr | W_or | Wg | W_sr@We | W_or@We | W_rs@vn | W_ro@vn | ve | pad ]
C_G = 4 * D                  # node2edge att, gathered-node part (H cols)
C_S = C_G + NUM_HEADS        # node2edge att, W_sr-transformed edge part (H cols)
C_O = C_S + NUM_HEADS        # node2edge att, W_or-transformed edge part (H cols)
C_H = C_O + NUM_HEADS        # edge2node att, head column (1)
C_T = C_H + 1                # edge2node att, tail column (1)
C_E = C_T + 1                # edge2node att, raw edge-feature column (1)
W_COLS = 4 * D + 4 * NUM_HEADS   # 144 (last column is padding)


def _lrelu(x):
    return jnp.where(x >= 0, x, 0.2 * x)


def _norm_rows(x, eps=1e-5):
    mu = jnp.mean(x, axis=-1, keepdims=True)
    var = jnp.mean(jnp.square(x - mu), axis=-1, keepdims=True)
    return (x - mu) * jax.lax.rsqrt(var + eps)


def _make_kernel(n_nodes, n_edges):
    """Kernel body for one grid step processing a disjoint union of GROUP graphs."""
    NP, EP, H = n_nodes, n_edges, NUM_HEADS
    R = NP + EP
    f32 = jnp.float32

    def kernel(feat_ref, idxc_ref, idxr_ref, w_proj_ref, vecs_ref,
               w_ffn1_ref, w_ffn2_ref, out_ref):
        feat = feat_ref[0]                        # (R, D)  rows 0:NP nodes, NP:R edges
        feat_n = feat[0:NP, :]
        feat_e = feat[NP:R, :]
        idx_col = idxc_ref[0]                     # (2EP, 1) int32: head idx then tail idx
        idx_row = idxr_ref[0]                     # (1, 2EP) int32 (same values, lane layout)
        vecs = vecs_ref[...]

        # incidence matrices (both orientations) via iota-compare, no transpose
        oh = (jax.lax.broadcasted_iota(jnp.int32, (2 * EP, NP), 1)
              == idx_col).astype(f32)                                     # (2EP, NP)
        oh_t = (jax.lax.broadcasted_iota(jnp.int32, (NP, 2 * EP), 0)
                == idx_row).astype(f32)                                   # (NP, 2EP)

        # fused gather of head & tail node features (one MXU push)
        gathered = jnp.dot(oh, feat_n, preferred_element_type=f32)        # (2EP, D)

        # ONE fused projection push; attention logit columns ride along for free.
        x_big = jnp.concatenate([gathered, feat_e], axis=0)               # (3EP, D)
        y = (jnp.dot(x_big, w_proj_ref[...], preferred_element_type=f32)
             + vecs[0:1, :])                                              # (3EP, 144)

        trans_head = y[0:EP, 0:D]                  # W_rs(head_node)
        trans_tail = y[EP:2 * EP, D:2 * D]         # W_ro(tail_node)
        eft_sr = y[2 * EP:3 * EP, 2 * D:3 * D]     # W_sr(feat_e)
        eft_or = y[2 * EP:3 * EP, 3 * D:4 * D]     # W_or(feat_e)

        # ---------------- node -> edge: 2-way (head/tail) softmax ----------------
        e_part = y[2 * EP:3 * EP, C_E:C_E + 1]                            # feat_e . v_e
        h_att = _lrelu(y[0:EP, C_H:C_H + 1] + e_part)                     # (EP, 1)
        t_att = _lrelu(y[EP:2 * EP, C_T:C_T + 1] + e_part)
        mx = jnp.maximum(h_att, t_att)
        eh = jnp.exp(h_att - mx)
        et = jnp.exp(t_att - mx)
        inv = 1.0 / (eh + et)
        new_feat_e = (eh * inv) * trans_head + (et * inv) * trans_tail    # (EP, D)

        # ------------- edge -> node: per-(node, head) grouped softmax ------------
        edge_att = jnp.concatenate([y[2 * EP:3 * EP, C_S:C_S + H],
                                    y[2 * EP:3 * EP, C_O:C_O + H]], axis=0)  # (2EP, H)
        att = _lrelu(y[0:2 * EP, C_G:C_G + H] + edge_att)                 # (2EP, H)
        # shift by the global per-head max (group-invariant; cancels in the ratio)
        ex = jnp.exp(att - jnp.max(att, axis=0, keepdims=True))
        is_head = jax.lax.broadcasted_iota(jnp.int32, (2 * EP, 1), 0) < EP
        zh = jnp.zeros_like(ex)
        ex_blk = jnp.concatenate([jnp.where(is_head, ex, zh),
                                  jnp.where(is_head, zh, ex)], axis=-1)   # (2EP, 2H)
        grp = jnp.dot(oh_t, ex_blk, preferred_element_type=f32)           # (NP, 2H)
        den = jnp.dot(oh, grp, preferred_element_type=f32)                # (2EP, 2H)
        den_sel = jnp.where(is_head, den[:, 0:H], den[:, H:2 * H])
        coef = jnp.sum(ex / den_sel, axis=-1, keepdims=True) * (1.0 / H)  # (2EP, 1)
        eft_both = jnp.concatenate([eft_sr, eft_or], axis=0)              # (2EP, D)
        node_msg = jnp.dot(oh_t, coef * eft_both,
                           preferred_element_type=f32)                    # (NP, D)

        # ------------- fused residual + LayerNorm1 (node rows, then edge rows) ---
        pre = jnp.concatenate([node_msg + feat_n, new_feat_e + feat_e], axis=0)
        is_node = jax.lax.broadcasted_iota(jnp.int32, (R, 1), 0) < NP
        ln1_w = jnp.where(is_node, vecs[5:6, 0:D], vecs[7:8, 0:D])
        ln1_b = jnp.where(is_node, vecs[6:7, 0:D], vecs[8:9, 0:D])
        z = _norm_rows(pre) * ln1_w + ln1_b                               # (R, D)

        # ------------- FFN1 + FFN2: edge/node fused as block-diagonal pushes -----
        zd = jnp.zeros_like(z)
        zb = jnp.concatenate([jnp.where(is_node, z, zd),
                              jnp.where(is_node, zd, z)], axis=-1)        # (R, 2D)
        b1 = jnp.where(is_node, vecs[1:2, 0:4 * D], vecs[2:3, 0:4 * D])
        ff1 = _lrelu(jnp.dot(zb, w_ffn1_ref[...],
                             preferred_element_type=f32) + b1)            # (R, 4D)

        fd = jnp.zeros_like(ff1)
        fb = jnp.concatenate([jnp.where(is_node, ff1, fd),
                              jnp.where(is_node, fd, ff1)], axis=-1)      # (R, 8D)
        b2 = jnp.where(is_node, vecs[3:4, 0:D], vecs[4:5, 0:D])
        ff2 = _lrelu(jnp.dot(fb, w_ffn2_ref[...],
                             preferred_element_type=f32) + b2)            # (R, D)

        ln2_w = jnp.where(is_node, vecs[9:10, 0:D], vecs[11:12, 0:D])
        ln2_b = jnp.where(is_node, vecs[10:11, 0:D], vecs[12:13, 0:D])
        out_ref[0] = _norm_rows(ff2 + z) * ln2_w + ln2_b                  # (R, D)

    return kernel


def init_params(key):
    """Deterministic parameter init matching the module shapes.

    Linear weights: Xavier-normal with leaky_relu(0.2) gain (as in
    reset_parameters), stored transposed to (in, out). Biases: PyTorch default
    uniform, stored 1-D (out,). LayerNorms: ones/zeros.
    """
    gain = math.sqrt(2.0 / (1.0 + 0.2 ** 2))
    keys = jax.random.split(key, 10)

    def lin(k, fan_in, fan_out):
        kw, kb = jax.random.split(k)
        std = gain * math.sqrt(2.0 / (fan_in + fan_out))
        w = jax.random.normal(kw, (fan_out, fan_in), jnp.float32) * std
        bound = 1.0 / math.sqrt(fan_in)
        b = jax.random.uniform(kb, (fan_out,), jnp.float32, minval=-bound, maxval=bound)
        return jnp.transpose(w), b

    p = {}
    p['w_sr'], p['b_sr'] = lin(keys[0], D, D)
    p['w_or'], p['b_or'] = lin(keys[1], D, D)
    p['w_rs'], p['b_rs'] = lin(keys[2], D, D)
    p['w_ro'], p['b_ro'] = lin(keys[3], D, D)
    p['w_n2e'], p['b_n2e'] = lin(keys[4], 2 * D, NUM_HEADS)   # node2edge_att_param
    p['w_e2n'], p['b_e2n'] = lin(keys[5], 2 * D, 1)           # edge2node_att_param
    p['e_l1_w'], p['e_l1_b'] = lin(keys[6], D, 4 * D)
    p['e_l2_w'], p['e_l2_b'] = lin(keys[7], 4 * D, D)
    p['n_l1_w'], p['n_l1_b'] = lin(keys[8], D, 4 * D)
    p['n_l2_w'], p['n_l2_b'] = lin(keys[9], 4 * D, D)
    for name in ('e_ln1', 'e_ln2', 'n_ln1', 'n_ln2'):
        p[name + '_w'] = jnp.ones((D,), jnp.float32)
        p[name + '_b'] = jnp.zeros((D,), jnp.float32)
    return p


def pack_params(p):
    """Pack the ~30 tiny parameters into 4 lane-friendly, VMEM-resident slabs."""
    H = NUM_HEADS
    Wg = p['w_n2e'][0:D, :]            # (D, H)  node part of node2edge att
    We = p['w_n2e'][D:2 * D, :]        # (D, H)  edge-transform part
    v_e = p['w_e2n'][0:D, 0:1]         # (D, 1)  edge part of edge2node att
    v_n = p['w_e2n'][D:2 * D, 0:1]     # (D, 1)  transformed-node part

    w_proj = jnp.zeros((D, W_COLS), jnp.float32)
    w_proj = w_proj.at[:, 0 * D:1 * D].set(p['w_rs'])
    w_proj = w_proj.at[:, 1 * D:2 * D].set(p['w_ro'])
    w_proj = w_proj.at[:, 2 * D:3 * D].set(p['w_sr'])
    w_proj = w_proj.at[:, 3 * D:4 * D].set(p['w_or'])
    w_proj = w_proj.at[:, C_G:C_G + H].set(Wg)
    w_proj = w_proj.at[:, C_S:C_S + H].set(p['w_sr'] @ We)
    w_proj = w_proj.at[:, C_O:C_O + H].set(p['w_or'] @ We)
    w_proj = w_proj.at[:, C_H:C_H + 1].set(p['w_rs'] @ v_n)
    w_proj = w_proj.at[:, C_T:C_T + 1].set(p['w_ro'] @ v_n)
    w_proj = w_proj.at[:, C_E:C_E + 1].set(v_e)

    # extended bias row: attention biases (folded through the projections) live in
    # the columns that are consumed from the feat_e / gathered rows only.
    b_ext = jnp.zeros((W_COLS,), jnp.float32)
    b_ext = b_ext.at[0 * D:1 * D].set(p['b_rs'])
    b_ext = b_ext.at[1 * D:2 * D].set(p['b_ro'])
    b_ext = b_ext.at[2 * D:3 * D].set(p['b_sr'])
    b_ext = b_ext.at[3 * D:4 * D].set(p['b_or'])
    b_ext = b_ext.at[C_S:C_S + H].set(p['b_sr'] @ We + p['b_n2e'])
    b_ext = b_ext.at[C_O:C_O + H].set(p['b_or'] @ We + p['b_n2e'])
    b_ext = b_ext.at[C_H].set(jnp.dot(p['b_rs'], v_n[:, 0]) + p['b_e2n'][0])
    b_ext = b_ext.at[C_T].set(jnp.dot(p['b_ro'], v_n[:, 0]) + p['b_e2n'][0])

    # block-diagonal FFN weights: node weights on top, edge weights below.
    w_ffn1 = jnp.concatenate([p['n_l1_w'], p['e_l1_w']], axis=0)   # (2D, 4D)
    w_ffn2 = jnp.concatenate([p['n_l2_w'], p['e_l2_w']], axis=0)   # (8D, D)

    # vecs: one vector per row, every vector starting at lane 0.
    vecs = jnp.zeros((16, W_COLS), jnp.float32)
    vecs = vecs.at[0, :].set(b_ext)
    vecs = vecs.at[1, 0:4 * D].set(p['n_l1_b'])
    vecs = vecs.at[2, 0:4 * D].set(p['e_l1_b'])
    vecs = vecs.at[3, 0:D].set(p['n_l2_b'])
    vecs = vecs.at[4, 0:D].set(p['e_l2_b'])
    vecs = vecs.at[5, 0:D].set(p['n_ln1_w'])
    vecs = vecs.at[6, 0:D].set(p['n_ln1_b'])
    vecs = vecs.at[7, 0:D].set(p['e_ln1_w'])
    vecs = vecs.at[8, 0:D].set(p['e_ln1_b'])
    vecs = vecs.at[9, 0:D].set(p['n_ln2_w'])
    vecs = vecs.at[10, 0:D].set(p['n_ln2_b'])
    vecs = vecs.at[11, 0:D].set(p['e_ln2_w'])
    vecs = vecs.at[12, 0:D].set(p['e_ln2_b'])

    return {'w_proj': w_proj, 'vecs': vecs, 'w_ffn1': w_ffn1, 'w_ffn2': w_ffn2}


def graph_transformer(node_emb, edge_emb, head_ind, tail_ind, packed, group=GROUP):
    """Batched forward.  node_emb (B,N,D), edge_emb (B,E,D), head/tail_ind (B,E)."""
    B = node_emb.shape[0]
    assert B % group == 0, "pad the batch to a multiple of `group`"
    nb = B // group
    NP = group * N_NODES
    EP = group * N_EDGES
    R = NP + EP

    # disjoint-union packing: GROUP graphs per grid step, indices offset by g*N.
    feat = jnp.concatenate([node_emb.reshape(nb, NP, D),
                            edge_emb.reshape(nb, EP, D)], axis=1)          # (nb, R, D)
    offs = (jnp.arange(group, dtype=jnp.int32) * N_NODES)[None, :, None]
    head_off = head_ind.astype(jnp.int32).reshape(nb, group, N_EDGES) + offs
    tail_off = tail_ind.astype(jnp.int32).reshape(nb, group, N_EDGES) + offs
    idx_all = jnp.concatenate([head_off.reshape(nb, EP),
                               tail_off.reshape(nb, EP)], axis=1)          # (nb, 2EP)
    idx_col = idx_all.reshape(nb, 2 * EP, 1)
    idx_row = idx_all.reshape(nb, 1, 2 * EP)

    def resident(arr):
        # full-array block + constant index map => DMA'd once, VMEM-resident.
        return pl.BlockSpec(arr.shape, lambda b: (0,) * arr.ndim)

    out = pl.pallas_call(
        _make_kernel(NP, EP),
        out_shape=jax.ShapeDtypeStruct((nb, R, D), jnp.float32),
        grid=(nb,),
        in_specs=[
            pl.BlockSpec((1, R, D), lambda b: (b, 0, 0)),
            pl.BlockSpec((1, 2 * EP, 1), lambda b: (b, 0, 0)),
            pl.BlockSpec((1, 1, 2 * EP), lambda b: (b, 0, 0)),
            resident(packed['w_proj']),
            resident(packed['vecs']),
            resident(packed['w_ffn1']),
            resident(packed['w_ffn2']),
        ],
        out_specs=pl.BlockSpec((1, R, D), lambda b: (b, 0, 0)),
        compiler_params=pltpu.CompilerParams(
            dimension_semantics=("parallel",)),
    )(feat, idx_col, idx_row, packed['w_proj'], packed['vecs'],
      packed['w_ffn1'], packed['w_ffn2'])

    new_node = out[:, 0:NP, :].reshape(B, N_NODES, D)
    new_edge = out[:, NP:R, :].reshape(B, N_EDGES, D)
    return new_node, new_edge


def _reference_forward(node_emb, edge_emb, head_ind, tail_ind, p):
    """Pure-JAX single-graph reference mirroring the PyTorch module."""
    def lin(x, w, b):
        return x @ w + b

    def ln(x, w, b, eps=1e-5):
        mu = jnp.mean(x, axis=-1, keepdims=True)
        var = jnp.mean(jnp.square(x - mu), axis=-1, keepdims=True)
        return (x - mu) / jnp.sqrt(var + eps) * w + b

    feat_n, feat_e = node_emb, edge_emb

    # node -> edge
    trans_head = lin(feat_n[head_ind], p['w_rs'], p['b_rs'])
    trans_tail = lin(feat_n[tail_ind], p['w_ro'], p['b_ro'])
    h_att = _lrelu(lin(jnp.concatenate([feat_e, trans_head], -1), p['w_e2n'], p['b_e2n']))
    t_att = _lrelu(lin(jnp.concatenate([feat_e, trans_tail], -1), p['w_e2n'], p['b_e2n']))
    a = jax.nn.softmax(jnp.stack([h_att, t_att]), axis=0)
    new_feat_e = a[0] * trans_head + a[1] * trans_tail
    edge_z = ln(new_feat_e + feat_e, p['e_ln1_w'], p['e_ln1_b'])
    fe = _lrelu(lin(edge_z, p['e_l1_w'], p['e_l1_b']))
    fe = _lrelu(lin(fe, p['e_l2_w'], p['e_l2_b']))
    new_edge = ln(fe + edge_z, p['e_ln2_w'], p['e_ln2_b'])

    # edge -> node (per-node-group softmax == sparse_softmax)
    def e2n(idx, w_t, b_t):
        eft = lin(feat_e, w_t, b_t)
        att = _lrelu(lin(jnp.concatenate([feat_n[idx], eft], -1),
                         p['w_n2e'], p['b_n2e']))
        mx = jax.ops.segment_max(att, idx, num_segments=N_NODES)
        ex = jnp.exp(att - mx[idx])
        den = jax.ops.segment_sum(ex, idx, num_segments=N_NODES)
        sm = ex / den[idx]
        msg = (sm[:, :, None] * eft[:, None, :]).sum(axis=1) / NUM_HEADS
        return jax.ops.segment_sum(msg, idx, num_segments=N_NODES)

    node_msg = e2n(head_ind, p['w_sr'], p['b_sr']) + e2n(tail_ind, p['w_or'], p['b_or'])
    node_z = ln(node_msg + feat_n, p['n_ln1_w'], p['n_ln1_b'])
    fn = _lrelu(lin(node_z, p['n_l1_w'], p['n_l1_b']))
    fn = _lrelu(lin(fn, p['n_l2_w'], p['n_l2_b']))
    new_node = ln(fn + node_z, p['n_ln2_w'], p['n_ln2_b'])
    return new_node, new_edge


if __name__ == "__main__":
    key = jax.random.PRNGKey(0)
    k_node, k_edge, k_head, k_tail, k_params = jax.random.split(key, 5)

    B = 32
    node_emb = jax.random.normal(k_node, (B, N_NODES, D), jnp.float32)
    edge_emb = jax.random.normal(k_edge, (B, N_EDGES, D), jnp.float32)
    head_ind = jax.random.randint(k_head, (B, N_EDGES), 0, N_NODES)
    tail_ind = jax.random.randint(k_tail, (B, N_EDGES), 0, N_NODES)

    params = init_params(k_params)
    packed = pack_params(params)

    new_node, new_edge = graph_transformer(node_emb, edge_emb, head_ind,
                                           tail_ind, packed)
    jax.block_until_ready((new_node, new_edge))

    assert new_node.shape == (B, N_NODES, D)
    assert new_edge.shape == (B, N_EDGES, D)
    assert bool(jnp.all(jnp.isfinite(new_node)))
    assert bool(jnp.all(jnp.isfinite(new_edge)))

    # pure-JAX reference check (vmapped over the batch)
    ref_node, ref_edge = jax.vmap(
        lambda n, e, h, t: _reference_forward(n, e, h, t, params))(
            node_emb, edge_emb, head_ind, tail_ind)
    err = max(float(jnp.max(jnp.abs(new_node - ref_node))),
              float(jnp.max(jnp.abs(new_edge - ref_edge))))
    assert err < 1e-3, f"kernel vs reference max abs error = {err}"

    print("KERNEL_OK")
</pallas_src>

<mosaic_0001>
module attributes {stable_mosaic.version = 11 : i64} {
  func.func @kernel(%arg0: i32, %arg1: memref<1x192x32xf32, #tpu.memory_space<vmem>>, %arg2: memref<1x256x1xi32, #tpu.memory_space<vmem>>, %arg3: memref<1x1x256xi32, #tpu.memory_space<vmem>>, %arg4: memref<32x144xf32, #tpu.memory_space<vmem>>, %arg5: memref<16x144xf32, #tpu.memory_space<vmem>>, %arg6: memref<64x128xf32, #tpu.memory_space<vmem>>, %arg7: memref<256x32xf32, #tpu.memory_space<vmem>>, %arg8: memref<1x192x32xf32, #tpu.memory_space<vmem>>) attributes {dimension_semantics = [#tpu.dimension_semantics<parallel>], iteration_bounds = array<i64: 4>, scalar_prefetch = 0 : i64, scratch_operands = 0 : i64, tpu.core_type = #tpu.core_type<tc>, window_params = [{transform_indices = @transform_0, window_bounds = array<i64: 1, 192, 32>}, {transform_indices = @transform_1, window_bounds = array<i64: 1, 256, 1>}, {transform_indices = @transform_2, window_bounds = array<i64: 1, 1, 256>}, {pipeline_mode = #tpu.pipeline_mode<synchronous>, transform_indices = @transform_3, window_bounds = array<i64: 32, 144>}, {pipeline_mode = #tpu.pipeline_mode<synchronous>, transform_indices = @transform_4, window_bounds = array<i64: 16, 144>}, {pipeline_mode = #tpu.pipeline_mode<synchronous>, transform_indices = @transform_5, window_bounds = array<i64: 64, 128>}, {pipeline_mode = #tpu.pipeline_mode<synchronous>, transform_indices = @transform_6, window_bounds = array<i64: 256, 32>}, {transform_indices = @transform_7, window_bounds = array<i64: 1, 192, 32>}]} {
    %c0 = arith.constant 0 : index
    %c0_0 = arith.constant 0 : index
    %c0_1 = arith.constant 0 : index
    %0 = vector.load %arg1[%c0, %c0_0, %c0_1] : memref<1x192x32xf32, #tpu.memory_space<vmem>>, vector<1x192x32xf32>
    %1 = vector.shape_cast %0 : vector<1x192x32xf32> to vector<192x32xf32>
    %2 = vector.extract_strided_slice %1 {offsets = [0, 0], sizes = [64, 32], strides = [1, 1]} : vector<192x32xf32> to vector<64x32xf32>
    %3 = vector.extract_strided_slice %1 {offsets = [64, 0], sizes = [128, 32], strides = [1, 1]} : vector<192x32xf32> to vector<128x32xf32>
    %c0_2 = arith.constant 0 : index
    %c0_3 = arith.constant 0 : index
    %c0_4 = arith.constant 0 : index
    %4 = vector.load %arg2[%c0_2, %c0_3, %c0_4] : memref<1x256x1xi32, #tpu.memory_space<vmem>>, vector<1x256x1xi32>
    %5 = vector.shape_cast %4 : vector<1x256x1xi32> to vector<256x1xi32>
    %c0_5 = arith.constant 0 : index
    %c0_6 = arith.constant 0 : index
    %c0_7 = arith.constant 0 : index
    %6 = vector.load %arg3[%c0_5, %c0_6, %c0_7] : memref<1x1x256xi32, #tpu.memory_space<vmem>>, vector<1x1x256xi32>
    %7 = vector.shape_cast %6 : vector<1x1x256xi32> to vector<1x256xi32>
    %c0_8 = arith.constant 0 : index
    %c0_9 = arith.constant 0 : index
    %8 = vector.load %arg5[%c0_8, %c0_9] : memref<16x144xf32, #tpu.memory_space<vmem>>, vector<16x144xf32>
    %9 = tpu.iota {dimensions = array<i32: 1>} : vector<256x64xi32>
    %10 = vector.broadcast %5 : vector<256x1xi32> to vector<256x64xi32>
    %11 = arith.cmpi eq, %9, %10 : vector<256x64xi32>
    %12 = arith.extui %11 : vector<256x64xi1> to vector<256x64xi32>
    %13 = arith.sitofp %12 : vector<256x64xi32> to vector<256x64xf32>
    %14 = tpu.iota {dimensions = array<i32: 0>} : vector<64x256xi32>
    %15 = vector.broadcast %7 : vector<1x256xi32> to vector<64x256xi32>
    %16 = arith.cmpi eq, %14, %15 : vector<64x256xi32>
    %17 = arith.extui %16 : vector<64x256xi1> to vector<64x256xi32>
    %18 = arith.sitofp %17 : vector<64x256xi32> to vector<64x256xf32>
    %cst = arith.constant dense<0.000000e+00> : vector<256x32xf32>
    %19 = tpu.matmul %13, %2, %cst {dimension_numbers = #tpu.dot_dimension_numbers<[1], [0], [0], [1], [0, 0, 1, 1], [], []>} : vector<256x64xf32>, vector<64x32xf32>, vector<256x32xf32> -> vector<256x32xf32>
    %20 = tpu.concatenate %19, %3 in 0 : vector<256x32xf32>, vector<128x32xf32> -> vector<384x32xf32>
    %c0_10 = arith.constant 0 : index
    %c0_11 = arith.constant 0 : index
    %21 = vector.load %arg4[%c0_10, %c0_11] : memref<32x144xf32, #tpu.memory_space<vmem>>, vector<32x144xf32>
    %cst_12 = arith.constant dense<0.000000e+00> : vector<384x144xf32>
    %22 = tpu.matmul %20, %21, %cst_12 {dimension_numbers = #tpu.dot_dimension_numbers<[1], [0], [0], [1], [0, 0, 1, 1], [], []>} : vector<384x32xf32>, vector<32x144xf32>, vector<384x144xf32> -> vector<384x144xf32>
    %23 = vector.extract_strided_slice %8 {offsets = [0, 0], sizes = [1, 144], strides = [1, 1]} : vector<16x144xf32> to vector<1x144xf32>
    %24 = vector.broadcast %23 : vector<1x144xf32> to vector<384x144xf32>
    %25 = arith.addf %22, %24 : vector<384x144xf32>
    %26 = vector.extract_strided_slice %25 {offsets = [0, 0], sizes = [128, 32], strides = [1, 1]} : vector<384x144xf32> to vector<128x32xf32>
    %27 = vector.extract_strided_slice %25 {offsets = [128, 32], sizes = [128, 32], strides = [1, 1]} : vector<384x144xf32> to vector<128x32xf32>
    %28 = vector.extract_strided_slice %25 {offsets = [256, 64], sizes = [128, 32], strides = [1, 1]} : vector<384x144xf32> to vector<128x32xf32>
    %29 = vector.extract_strided_slice %25 {offsets = [256, 96], sizes = [128, 32], strides = [1, 1]} : vector<384x144xf32> to vector<128x32xf32>
    %30 = vector.extract_strided_slice %25 {offsets = [256, 142], sizes = [128, 1], strides = [1, 1]} : vector<384x144xf32> to vector<128x1xf32>
    %31 = vector.extract_strided_slice %25 {offsets = [0, 140], sizes = [128, 1], strides = [1, 1]} : vector<384x144xf32> to vector<128x1xf32>
    %32 = arith.addf %31, %30 : vector<128x1xf32>
    %cst_13 = arith.constant 0.000000e+00 : f32
    %33 = vector.broadcast %cst_13 : f32 to vector<128x1xf32>
    %34 = arith.cmpf oge, %32, %33 : vector<128x1xf32>
    %cst_14 = arith.constant 2.000000e-01 : f32
    %35 = vector.broadcast %cst_14 : f32 to vector<128x1xf32>
    %36 = arith.mulf %35, %32 : vector<128x1xf32>
    %37 = arith.select %34, %32, %36 : vector<128x1xi1>, vector<128x1xf32>
    %38 = vector.extract_strided_slice %25 {offsets = [128, 141], sizes = [128, 1], strides = [1, 1]} : vector<384x144xf32> to vector<128x1xf32>
    %39 = arith.addf %38, %30 : vector<128x1xf32>
    %cst_15 = arith.constant 0.000000e+00 : f32
    %40 = vector.broadcast %cst_15 : f32 to vector<128x1xf32>
    %41 = arith.cmpf oge, %39, %40 : vector<128x1xf32>
    %cst_16 = arith.constant 2.000000e-01 : f32
    %42 = vector.broadcast %cst_16 : f32 to vector<128x1xf32>
    %43 = arith.mulf %42, %39 : vector<128x1xf32>
    %44 = arith.select %41, %39, %43 : vector<128x1xi1>, vector<128x1xf32>
    %45 = arith.maximumf %37, %44 : vector<128x1xf32>
    %46 = arith.subf %37, %45 : vector<128x1xf32>
    %47 = math.exp %46 : vector<128x1xf32>
    %48 = arith.subf %44, %45 : vector<128x1xf32>
    %49 = math.exp %48 : vector<128x1xf32>
    %50 = arith.addf %47, %49 : vector<128x1xf32>
    %cst_17 = arith.constant 1.000000e+00 : f32
    %51 = vector.broadcast %cst_17 : f32 to vector<128x1xf32>
    %52 = arith.divf %51, %50 : vector<128x1xf32>
    %53 = arith.mulf %47, %52 : vector<128x1xf32>
    %54 = vector.broadcast %53 : vector<128x1xf32> to vector<128x32xf32>
    %55 = arith.mulf %54, %26 : vector<128x32xf32>
    %56 = arith.mulf %49, %52 : vector<128x1xf32>
    %57 = vector.broadcast %56 : vector<128x1xf32> to vector<128x32xf32>
    %58 = arith.mulf %57, %27 : vector<128x32xf32>
    %59 = arith.addf %55, %58 : vector<128x32xf32>
    %60 = vector.extract_strided_slice %25 {offsets = [256, 132], sizes = [128, 4], strides = [1, 1]} : vector<384x144xf32> to vector<128x4xf32>
    %61 = vector.extract_strided_slice %25 {offsets = [256, 136], sizes = [128, 4], strides = [1, 1]} : vector<384x144xf32> to vector<128x4xf32>
    %62 = tpu.concatenate %60, %61 in 0 : vector<128x4xf32>, vector<128x4xf32> -> vector<256x4xf32>
    %63 = vector.extract_strided_slice %25 {offsets = [0, 128], sizes = [256, 4], strides = [1, 1]} : vector<384x144xf32> to vector<256x4xf32>
    %64 = arith.addf %63, %62 : vector<256x4xf32>
    %cst_18 = arith.constant 0.000000e+00 : f32
    %65 = vector.broadcast %cst_18 : f32 to vector<256x4xf32>
    %66 = arith.cmpf oge, %64, %65 : vector<256x4xf32>
    %cst_19 = arith.constant 2.000000e-01 : f32
    %67 = vector.broadcast %cst_19 : f32 to vector<256x4xf32>
    %68 = arith.mulf %67, %64 : vector<256x4xf32>
    %69 = arith.select %66, %64, %68 : vector<256x4xi1>, vector<256x4xf32>
    %cst_20 = arith.constant dense<0xFF800000> : vector<4xf32>
    %70 = vector.multi_reduction <maximumf>, %69, %cst_20 [0] : vector<256x4xf32> to vector<4xf32>
    %71 = vector.shape_cast %70 : vector<4xf32> to vector<1x4xf32>
    %72 = vector.broadcast %71 : vector<1x4xf32> to vector<256x4xf32>
    %73 = arith.subf %69, %72 : vector<256x4xf32>
    %74 = math.exp %73 : vector<256x4xf32>
    %75 = tpu.iota {dimensions = array<i32: 0>} : vector<256x1xi32>
    %c128_i32 = arith.constant 128 : i32
    %76 = vector.broadcast %c128_i32 : i32 to vector<256x1xi32>
    %77 = arith.cmpi slt, %75, %76 : vector<256x1xi32>
    %cst_21 = arith.constant 0.000000e+00 : f32
    %78 = vector.broadcast %cst_21 : f32 to vector<256x4xf32>
    %79 = vector.shape_cast %77 : vector<256x1xi1> to vector<256x1xi1>
    %80 = vector.broadcast %79 : vector<256x1xi1> to vector<256x4xi1>
    %81 = arith.select %80, %74, %78 : vector<256x4xi1>, vector<256x4xf32>
    %82 = vector.shape_cast %77 : vector<256x1xi1> to vector<256x1xi1>
    %83 = vector.broadcast %82 : vector<256x1xi1> to vector<256x4xi1>
    %84 = arith.select %83, %78, %74 : vector<256x4xi1>, vector<256x4xf32>
    %85 = tpu.concatenate %81, %84 in 1 : vector<256x4xf32>, vector<256x4xf32> -> vector<256x8xf32>
    %cst_22 = arith.constant dense<0.000000e+00> : vector<64x8xf32>
    %86 = tpu.matmul %18, %85, %cst_22 {dimension_numbers = #tpu.dot_dimension_numbers<[1], [0], [0], [1], [0, 0, 1, 1], [], []>} : vector<64x256xf32>, vector<256x8xf32>, vector<64x8xf32> -> vector<64x8xf32>
    %cst_23 = arith.constant dense<0.000000e+00> : vector<256x8xf32>
    %87 = tpu.matmul %13, %86, %cst_23 {dimension_numbers = #tpu.dot_dimension_numbers<[1], [0], [0], [1], [0, 0, 1, 1], [], []>} : vector<256x64xf32>, vector<64x8xf32>, vector<256x8xf32> -> vector<256x8xf32>
    %88 = vector.extract_strided_slice %87 {offsets = [0, 0], sizes = [256, 4], strides = [1, 1]} : vector<256x8xf32> to vector<256x4xf32>
    %89 = vector.extract_strided_slice %87 {offsets = [0, 4], sizes = [256, 4], strides = [1, 1]} : vector<256x8xf32> to vector<256x4xf32>
    %90 = vector.shape_cast %77 : vector<256x1xi1> to vector<256x1xi1>
    %91 = vector.broadcast %90 : vector<256x1xi1> to vector<256x4xi1>
    %92 = arith.select %91, %88, %89 : vector<256x4xi1>, vector<256x4xf32>
    %93 = arith.divf %74, %92 : vector<256x4xf32>
    %cst_24 = arith.constant dense<0.000000e+00> : vector<256xf32>
    %94 = vector.multi_reduction <add>, %93, %cst_24 [1] : vector<256x4xf32> to vector<256xf32>
    %95 = vector.shape_cast %94 : vector<256xf32> to vector<256x1xf32>
    %cst_25 = arith.constant 2.500000e-01 : f32
    %96 = vector.broadcast %cst_25 : f32 to vector<256x1xf32>
    %97 = arith.mulf %95, %96 : vector<256x1xf32>
    %98 = tpu.concatenate %28, %29 in 0 : vector<128x32xf32>, vector<128x32xf32> -> vector<256x32xf32>
    %99 = vector.broadcast %97 : vector<256x1xf32> to vector<256x32xf32>
    %100 = arith.mulf %99, %98 : vector<256x32xf32>
    %cst_26 = arith.constant dense<0.000000e+00> : vector<64x32xf32>
    %101 = tpu.matmul %18, %100, %cst_26 {dimension_numbers = #tpu.dot_dimension_numbers<[1], [0], [0], [1], [0, 0, 1, 1], [], []>} : vector<64x256xf32>, vector<256x32xf32>, vector<64x32xf32> -> vector<64x32xf32>
    %102 = arith.addf %101, %2 : vector<64x32xf32>
    %103 = arith.addf %59, %3 : vector<128x32xf32>
    %104 = tpu.concatenate %102, %103 in 0 : vector<64x32xf32>, vector<128x32xf32> -> vector<192x32xf32>
    %105 = tpu.iota {dimensions = array<i32: 0>} : vector<192x1xi32>
    %c64_i32 = arith.constant 64 : i32
    %106 = vector.broadcast %c64_i32 : i32 to vector<192x1xi32>
    %107 = arith.cmpi slt, %105, %106 : vector<192x1xi32>
    %108 = vector.extract_strided_slice %8 {offsets = [5, 0], sizes = [1, 32], strides = [1, 1]} : vector<16x144xf32> to vector<1x32xf32>
    %109 = vector.extract_strided_slice %8 {offsets = [7, 0], sizes = [1, 32], strides = [1, 1]} : vector<16x144xf32> to vector<1x32xf32>
    %110 = vector.shape_cast %107 : vector<192x1xi1> to vector<192x1xi1>
    %111 = vector.broadcast %110 : vector<192x1xi1> to vector<192x32xi1>
    %112 = vector.shape_cast %108 : vector<1x32xf32> to vector<1x32xf32>
    %113 = vector.broadcast %112 : vector<1x32xf32> to vector<192x32xf32>
    %114 = vector.shape_cast %109 : vector<1x32xf32> to vector<1x32xf32>
    %115 = vector.broadcast %114 : vector<1x32xf32> to vector<192x32xf32>
    %116 = arith.select %111, %113, %115 : vector<192x32xi1>, vector<192x32xf32>
    %117 = vector.extract_strided_slice %8 {offsets = [6, 0], sizes = [1, 32], strides = [1, 1]} : vector<16x144xf32> to vector<1x32xf32>
    %118 = vector.extract_strided_slice %8 {offsets = [8, 0], sizes = [1, 32], strides = [1, 1]} : vector<16x144xf32> to vector<1x32xf32>
    %119 = vector.shape_cast %107 : vector<192x1xi1> to vector<192x1xi1>
    %120 = vector.broadcast %119 : vector<192x1xi1> to vector<192x32xi1>
    %121 = vector.shape_cast %117 : vector<1x32xf32> to vector<1x32xf32>
    %122 = vector.broadcast %121 : vector<1x32xf32> to vector<192x32xf32>
    %123 = vector.shape_cast %118 : vector<1x32xf32> to vector<1x32xf32>
    %124 = vector.broadcast %123 : vector<1x32xf32> to vector<192x32xf32>
    %125 = arith.select %120, %122, %124 : vector<192x32xi1>, vector<192x32xf32>
    %cst_27 = arith.constant dense<0.000000e+00> : vector<192xf32>
    %126 = vector.multi_reduction <add>, %104, %cst_27 [1] : vector<192x32xf32> to vector<192xf32>
    %127 = vector.shape_cast %126 : vector<192xf32> to vector<192x1xf32>
    %cst_28 = arith.constant 3.200000e+01 : f32
    %128 = vector.broadcast %cst_28 : f32 to vector<192x1xf32>
    %129 = arith.divf %127, %128 : vector<192x1xf32>
    %130 = vector.broadcast %129 : vector<192x1xf32> to vector<192x32xf32>
    %131 = arith.subf %104, %130 : vector<192x32xf32>
    %132 = arith.mulf %131, %131 : vector<192x32xf32>
    %cst_29 = arith.constant dense<0.000000e+00> : vector<192xf32>
    %133 = vector.multi_reduction <add>, %132, %cst_29 [1] : vector<192x32xf32> to vector<192xf32>
    %134 = vector.shape_cast %133 : vector<192xf32> to vector<192x1xf32>
    %cst_30 = arith.constant 3.200000e+01 : f32
    %135 = vector.broadcast %cst_30 : f32 to vector<192x1xf32>
    %136 = arith.divf %134, %135 : vector<192x1xf32>
    %137 = vector.broadcast %129 : vector<192x1xf32> to vector<192x32xf32>
    %138 = arith.subf %104, %137 : vector<192x32xf32>
    %cst_31 = arith.constant 9.99999974E-6 : f32
    %139 = vector.broadcast %cst_31 : f32 to vector<192x1xf32>
    %140 = arith.addf %136, %139 : vector<192x1xf32>
    %141 = math.rsqrt %140 : vector<192x1xf32>
    %142 = vector.broadcast %141 : vector<192x1xf32> to vector<192x32xf32>
    %143 = arith.mulf %138, %142 : vector<192x32xf32>
    %144 = arith.mulf %143, %116 : vector<192x32xf32>
    %145 = arith.addf %144, %125 : vector<192x32xf32>
    %cst_32 = arith.constant 0.000000e+00 : f32
    %146 = vector.broadcast %cst_32 : f32 to vector<192x32xf32>
    %147 = vector.shape_cast %107 : vector<192x1xi1> to vector<192x1xi1>
    %148 = vector.broadcast %147 : vector<192x1xi1> to vector<192x32xi1>
    %149 = arith.select %148, %145, %146 : vector<192x32xi1>, vector<192x32xf32>
    %150 = vector.shape_cast %107 : vector<192x1xi1> to vector<192x1xi1>
    %151 = vector.broadcast %150 : vector<192x1xi1> to vector<192x32xi1>
    %152 = arith.select %151, %146, %145 : vector<192x32xi1>, vector<192x32xf32>
    %153 = tpu.concatenate %149, %152 in 1 : vector<192x32xf32>, vector<192x32xf32> -> vector<192x64xf32>
    %154 = vector.extract_strided_slice %8 {offsets = [1, 0], sizes = [1, 128], strides = [1, 1]} : vector<16x144xf32> to vector<1x128xf32>
    %155 = vector.extract_strided_slice %8 {offsets = [2, 0], sizes = [1, 128], strides = [1, 1]} : vector<16x144xf32> to vector<1x128xf32>
    %156 = vector.shape_cast %107 : vector<192x1xi1> to vector<192x1xi1>
    %157 = vector.broadcast %156 : vector<192x1xi1> to vector<192x128xi1>
    %158 = vector.shape_cast %154 : vector<1x128xf32> to vector<1x128xf32>
    %159 = vector.broadcast %158 : vector<1x128xf32> to vector<192x128xf32>
    %160 = vector.shape_cast %155 : vector<1x128xf32> to vector<1x128xf32>
    %161 = vector.broadcast %160 : vector<1x128xf32> to vector<192x128xf32>
    %162 = arith.select %157, %159, %161 : vector<192x128xi1>, vector<192x128xf32>
    %c0_33 = arith.constant 0 : index
    %c0_34 = arith.constant 0 : index
    %163 = vector.load %arg6[%c0_33, %c0_34] : memref<64x128xf32, #tpu.memory_space<vmem>>, vector<64x128xf32>
    %cst_35 = arith.constant dense<0.000000e+00> : vector<192x128xf32>
    %164 = tpu.matmul %153, %163, %cst_35 {dimension_numbers = #tpu.dot_dimension_numbers<[1], [0], [0], [1], [0, 0, 1, 1], [], []>} : vector<192x64xf32>, vector<64x128xf32>, vector<192x128xf32> -> vector<192x128xf32>
    %165 = arith.addf %164, %162 : vector<192x128xf32>
    %cst_36 = arith.constant 0.000000e+00 : f32
    %166 = vector.broadcast %cst_36 : f32 to vector<192x128xf32>
    %167 = arith.cmpf oge, %165, %166 : vector<192x128xf32>
    %cst_37 = arith.constant 2.000000e-01 : f32
    %168 = vector.broadcast %cst_37 : f32 to vector<192x128xf32>
    %169 = arith.mulf %168, %165 : vector<192x128xf32>
    %170 = arith.select %167, %165, %169 : vector<192x128xi1>, vector<192x128xf32>
    %cst_38 = arith.constant 0.000000e+00 : f32
    %171 = vector.broadcast %cst_38 : f32 to vector<192x128xf32>
    %172 = vector.shape_cast %107 : vector<192x1xi1> to vector<192x1xi1>
    %173 = vector.broadcast %172 : vector<192x1xi1> to vector<192x128xi1>
    %174 = arith.select %173, %170, %171 : vector<192x128xi1>, vector<192x128xf32>
    %175 = vector.shape_cast %107 : vector<192x1xi1> to vector<192x1xi1>
    %176 = vector.broadcast %175 : vector<192x1xi1> to vector<192x128xi1>
    %177 = arith.select %176, %171, %170 : vector<192x128xi1>, vector<192x128xf32>
    %178 = tpu.concatenate %174, %177 in 1 : vector<192x128xf32>, vector<192x128xf32> -> vector<192x256xf32>
    %179 = vector.extract_strided_slice %8 {offsets = [3, 0], sizes = [1, 32], strides = [1, 1]} : vector<16x144xf32> to vector<1x32xf32>
    %180 = vector.extract_strided_slice %8 {offsets = [4, 0], sizes = [1, 32], strides = [1, 1]} : vector<16x144xf32> to vector<1x32xf32>
    %181 = vector.shape_cast %107 : vector<192x1xi1> to vector<192x1xi1>
    %182 = vector.broadcast %181 : vector<192x1xi1> to vector<192x32xi1>
    %183 = vector.shape_cast %179 : vector<1x32xf32> to vector<1x32xf32>
    %184 = vector.broadcast %183 : vector<1x32xf32> to vector<192x32xf32>
    %185 = vector.shape_cast %180 : vector<1x32xf32> to vector<1x32xf32>
    %186 = vector.broadcast %185 : vector<1x32xf32> to vector<192x32xf32>
    %187 = arith.select %182, %184, %186 : vector<192x32xi1>, vector<192x32xf32>
    %c0_39 = arith.constant 0 : index
    %c0_40 = arith.constant 0 : index
    %188 = vector.load %arg7[%c0_39, %c0_40] : memref<256x32xf32, #tpu.memory_space<vmem>>, vector<256x32xf32>
    %cst_41 = arith.constant dense<0.000000e+00> : vector<192x32xf32>
    %189 = tpu.matmul %178, %188, %cst_41 {dimension_numbers = #tpu.dot_dimension_numbers<[1], [0], [0], [1], [0, 0, 1, 1], [], []>} : vector<192x256xf32>, vector<256x32xf32>, vector<192x32xf32> -> vector<192x32xf32>
    %190 = arith.addf %189, %187 : vector<192x32xf32>
    %cst_42 = arith.constant 0.000000e+00 : f32
    %191 = vector.broadcast %cst_42 : f32 to vector<192x32xf32>
    %192 = arith.cmpf oge, %190, %191 : vector<192x32xf32>
    %cst_43 = arith.constant 2.000000e-01 : f32
    %193 = vector.broadcast %cst_43 : f32 to vector<192x32xf32>
    %194 = arith.mulf %193, %190 : vector<192x32xf32>
    %195 = arith.select %192, %190, %194 : vector<192x32xi1>, vector<192x32xf32>
    %196 = vector.extract_strided_slice %8 {offsets = [9, 0], sizes = [1, 32], strides = [1, 1]} : vector<16x144xf32> to vector<1x32xf32>
    %197 = vector.extract_strided_slice %8 {offsets = [11, 0], sizes = [1, 32], strides = [1, 1]} : vector<16x144xf32> to vector<1x32xf32>
    %198 = vector.shape_cast %107 : vector<192x1xi1> to vector<192x1xi1>
    %199 = vector.broadcast %198 : vector<192x1xi1> to vector<192x32xi1>
    %200 = vector.shape_cast %196 : vector<1x32xf32> to vector<1x32xf32>
    %201 = vector.broadcast %200 : vector<1x32xf32> to vector<192x32xf32>
    %202 = vector.shape_cast %197 : vector<1x32xf32> to vector<1x32xf32>
    %203 = vector.broadcast %202 : vector<1x32xf32> to vector<192x32xf32>
    %204 = arith.select %199, %201, %203 : vector<192x32xi1>, vector<192x32xf32>
    %205 = vector.extract_strided_slice %8 {offsets = [10, 0], sizes = [1, 32], strides = [1, 1]} : vector<16x144xf32> to vector<1x32xf32>
    %206 = vector.extract_strided_slice %8 {offsets = [12, 0], sizes = [1, 32], strides = [1, 1]} : vector<16x144xf32> to vector<1x32xf32>
    %207 = vector.shape_cast %107 : vector<192x1xi1> to vector<192x1xi1>
    %208 = vector.broadcast %207 : vector<192x1xi1> to vector<192x32xi1>
    %209 = vector.shape_cast %205 : vector<1x32xf32> to vector<1x32xf32>
    %210 = vector.broadcast %209 : vector<1x32xf32> to vector<192x32xf32>
    %211 = vector.shape_cast %206 : vector<1x32xf32> to vector<1x32xf32>
    %212 = vector.broadcast %211 : vector<1x32xf32> to vector<192x32xf32>
    %213 = arith.select %208, %210, %212 : vector<192x32xi1>, vector<192x32xf32>
    %214 = arith.addf %195, %145 : vector<192x32xf32>
    %cst_44 = arith.constant dense<0.000000e+00> : vector<192xf32>
    %215 = vector.multi_reduction <add>, %214, %cst_44 [1] : vector<192x32xf32> to vector<192xf32>
    %216 = vector.shape_cast %215 : vector<192xf32> to vector<192x1xf32>
    %cst_45 = arith.constant 3.200000e+01 : f32
    %217 = vector.broadcast %cst_45 : f32 to vector<192x1xf32>
    %218 = arith.divf %216, %217 : vector<192x1xf32>
    %219 = vector.broadcast %218 : vector<192x1xf32> to vector<192x32xf32>
    %220 = arith.subf %214, %219 : vector<192x32xf32>
    %221 = arith.mulf %220, %220 : vector<192x32xf32>
    %cst_46 = arith.constant dense<0.000000e+00> : vector<192xf32>
    %222 = vector.multi_reduction <add>, %221, %cst_46 [1] : vector<192x32xf32> to vector<192xf32>
    %223 = vector.shape_cast %222 : vector<192xf32> to vector<192x1xf32>
    %cst_47 = arith.constant 3.200000e+01 : f32
    %224 = vector.broadcast %cst_47 : f32 to vector<192x1xf32>
    %225 = arith.divf %223, %224 : vector<192x1xf32>
    %226 = vector.broadcast %218 : vector<192x1xf32> to vector<192x32xf32>
    %227 = arith.subf %214, %226 : vector<192x32xf32>
    %cst_48 = arith.constant 9.99999974E-6 : f32
    %228 = vector.broadcast %cst_48 : f32 to vector<192x1xf32>
    %229 = arith.addf %225, %228 : vector<192x1xf32>
    %230 = math.rsqrt %229 : vector<192x1xf32>
    %231 = vector.broadcast %230 : vector<192x1xf32> to vector<192x32xf32>
    %232 = arith.mulf %227, %231 : vector<192x32xf32>
    %233 = arith.mulf %232, %204 : vector<192x32xf32>
    %234 = arith.addf %233, %213 : vector<192x32xf32>
    %c0_49 = arith.constant 0 : index
    %c0_50 = arith.constant 0 : index
    %c0_51 = arith.constant 0 : index
    %235 = vector.load %arg8[%c0_49, %c0_50, %c0_51] : memref<1x192x32xf32, #tpu.memory_space<vmem>>, vector<1x192x32xf32>
    %236 = vector.shape_cast %235 : vector<1x192x32xf32> to vector<192x32xf32>
    %237 = vector.shape_cast %234 : vector<192x32xf32> to vector<1x192x32xf32>
    tpu.vector_store %arg8[%c0_49, %c0_50, %c0_51], %237 {strides = array<i32>} : memref<1x192x32xf32, #tpu.memory_space<vmem>>, vector<1x192x32xf32>,
    return
  }
  func.func @transform_0(%arg0: i32) -> (i32, i32, i32) {
    %c0_i32 = arith.constant 0 : i32
    %c0_i32_0 = arith.constant 0 : i32
    %c0_i32_1 = arith.constant 0 : i32
    return %arg0, %c0_i32, %c0_i32_0 : i32, i32, i32
  }
  func.func @transform_1(%arg0: i32) -> (i32, i32, i32) {
    %c0_i32 = arith.constant 0 : i32
    %c0_i32_0 = arith.constant 0 : i32
    %c0_i32_1 = arith.constant 0 : i32
    return %arg0, %c0_i32, %c0_i32_0 : i32, i32, i32
  }
  func.func @transform_2(%arg0: i32) -> (i32, i32, i32) {
    %c0_i32 = arith.constant 0 : i32
    %c0_i32_0 = arith.constant 0 : i32
    %c0_i32_1 = arith.constant 0 : i32
    return %arg0, %c0_i32, %c0_i32_0 : i32, i32, i32
  }
  func.func @transform_3(%arg0: i32) -> (i32, i32) {
    %c0_i32 = arith.constant 0 : i32
    %c0_i32_0 = arith.constant 0 : i32
    %c0_i32_1 = arith.constant 0 : i32
    return %c0_i32, %c0_i32_0 : i32, i32
  }
  func.func @transform_4(%arg0: i32) -> (i32, i32) {
    %c0_i32 = arith.constant 0 : i32
    %c0_i32_0 = arith.constant 0 : i32
    %c0_i32_1 = arith.constant 0 : i32
    return %c0_i32, %c0_i32_0 : i32, i32
  }
  func.func @transform_5(%arg0: i32) -> (i32, i32) {
    %c0_i32 = arith.constant 0 : i32
    %c0_i32_0 = arith.constant 0 : i32
    %c0_i32_1 = arith.constant 0 : i32
    return %c0_i32, %c0_i32_0 : i32, i32
  }
  func.func @transform_6(%arg0: i32) -> (i32, i32) {
    %c0_i32 = arith.constant 0 : i32
    %c0_i32_0 = arith.constant 0 : i32
    %c0_i32_1 = arith.constant 0 : i32
    return %c0_i32, %c0_i32_0 : i32, i32
  }
  func.func @transform_7(%arg0: i32) -> (i32, i32, i32) {
    %c0_i32 = arith.constant 0 : i32
    %c0_i32_0 = arith.constant 0 : i32
    %c0_i32_1 = arith.constant 0 : i32
    return %arg0, %c0_i32, %c0_i32_0 : i32, i32, i32
  }
}

</mosaic_0001>

<llo_original>
// kernel: tpu_custom_call.1
$region0: #{tpu_custom_call.1}
  #allocation0 [shape = 'u32[]', space=smem, size = 0x4, offset = 0x4, fixed_abs, tag = 'smem constant byte address 0x4 - core index']
  #allocation1 [shape = 'u32[144,128]{1,0:T(1,128)}', space=vmem, size = 0x12000, scoped, tag = 'internal scratch']
  %s0 = inlined_call_operand.vmem [shape: f32[4,192,32], index: 0, kind: input, shape index: {}]
  %s1 = inlined_call_operand.vmem [shape: s32[4,256,1], index: 1, kind: input, shape index: {}]
  %s2 = inlined_call_operand.vmem [shape: s32[4,1,256], index: 2, kind: input, shape index: {}]
  %s3 = inlined_call_operand.vmem [shape: f32[32,144], index: 3, kind: input, shape index: {}]
  %s4 = inlined_call_operand.vmem [shape: f32[16,144], index: 4, kind: input, shape index: {}]
  %s5 = inlined_call_operand.vmem [shape: f32[64,128], index: 5, kind: input, shape index: {}]
  %s6 = inlined_call_operand.vmem [shape: f32[256,32], index: 6, kind: input, shape index: {}]
  %s7 = inlined_call_operand.vmem [shape: f32[4,192,32], index: 7, kind: output, shape index: {}]
  %s8 = sld [smem:[#allocation0]]
  $region61: #{tpu_custom_call.1} parent=0
    _
  %s10 = ssub.s32 1, %s8
  %s11 = scalar_select 0, %s10, %s8
  loop: start=0, step=1, limit=6
  $region2: #{tpu_custom_call.1} parent=0 // loop_pre_header
    _
  $region3: #{tpu_custom_call.1} parent=0 // loop_header
    %s13 = sphi 0, %s17
    %p14 = scmp.ge.s32.totalorder %s13, 6
    %s23 = sphi 0, %s25
    %s26 = sphi 0, %s23
    %s27 = sphi 0, %s26
    %s43 = sphi 0, %s27
    %s49 = sphi 0, %s51
    %s52 = sphi 0, %s49
    %s53 = sphi 0, %s52
    %s69 = sphi 0, %s53
    %s75 = sphi 0, %s77
    %s78 = sphi 0, %s75
    %s79 = sphi 0, %s78
    %s95 = sphi 0, %s79
    %s99 = sphi 0, %s99
    %s101 = sphi 0, %s99
    %s102 = sphi 0, %s101
    %s116 = sphi 0, %s102
    %s120 = sphi 0, %s120
    %s122 = sphi 0, %s120
    %s123 = sphi 0, %s122
    %s137 = sphi 0, %s123
    %s141 = sphi 0, %s141
    %s143 = sphi 0, %s141
    %s144 = sphi 0, %s143
    %s158 = sphi 0, %s144
    %s162 = sphi 0, %s162
    %s164 = sphi 0, %s162
    %s165 = sphi 0, %s164
    %s179 = sphi 0, %s165
    %s185 = sphi 0, %s187
    %s188 = sphi 0, %s185
    %s189 = sphi 0, %s188
    %s205 = sphi 0, %s189
  $region4: #{tpu_custom_call.1} parent=0 // loop_header_branch
    %16 = sbr.rel (%p14) target = $region8
  $region5: #{tpu_custom_call.1} parent=0 // loop_body
    %s18 = ssub.s32 %s13, 1
    %s19 = ssub.s32 %s13, 2
    %s20 = sadd.s32 %s13, 1
    %s21 = ssub.s32 %s13, %s20
    %p22 = scmp.eq.s32.totalorder %s21, 0
    %s24 = sadd.s32 %s23, 1
    %s25 = scalar_select %p22, %s23, %s24
    %p28 = pneg %p22
    %p29 = scmp.eq.s32.totalorder %s13, 3
    %p30 = por %p28, %p29
    %p31 = scmp.ne.s32.totalorder %s23, %s26
    %p32 = scmp.eq.s32.totalorder %s13, 0
    %p33 = por %p31, %p32
    %p34 = scmp.ne.s32.totalorder %s23, %s26
    %p35 = scmp.eq.s32.totalorder %s18, 3
    %p36 = por %p34, %p35
    %p37 = scmp.ne.s32.totalorder %s26, %s27
    %p38 = scmp.eq.s32.totalorder %s18, 0
    %p39 = por %p37, %p38
    %p40 = scmp.ne.s32.totalorder %s26, %s27
    %p41 = scmp.eq.s32.totalorder %s19, 3
    %p42 = por %p40, %p41
    %p44 = scmp.ne.s32.totalorder %s27, %s43
    %p45 = scmp.eq.s32.totalorder %s19, 0
    %p46 = por %p44, %p45
    %s47 = ssub.s32 %s13, %s20
    %p48 = scmp.eq.s32.totalorder %s47, 0
    %s50 = sadd.s32 %s49, 1
    %s51 = scalar_select %p48, %s49, %s50
    %p54 = pneg %p48
    %p55 = scmp.eq.s32.totalorder %s13, 3
    %p56 = por %p54, %p55
    %p57 = scmp.ne.s32.totalorder %s49, %s52
    %p58 = scmp.eq.s32.totalorder %s13, 0
    %p59 = por %p57, %p58
    %p60 = scmp.ne.s32.totalorder %s49, %s52
    %p61 = scmp.eq.s32.totalorder %s18, 3
    %p62 = por %p60, %p61
    %p63 = scmp.ne.s32.totalorder %s52, %s53
    %p64 = scmp.eq.s32.totalorder %s18, 0
    %p65 = por %p63, %p64
    %p66 = scmp.ne.s32.totalorder %s52, %s53
    %p67 = scmp.eq.s32.totalorder %s19, 3
    %p68 = por %p66, %p67
    %p70 = scmp.ne.s32.totalorder %s53, %s69
    %p71 = scmp.eq.s32.totalorder %s19, 0
    %p72 = por %p70, %p71
    %s73 = ssub.s32 %s13, %s20
    %p74 = scmp.eq.s32.totalorder %s73, 0
    %s76 = sadd.s32 %s75, 1
    %s77 = scalar_select %p74, %s75, %s76
    %p80 = pneg %p74
    %p81 = scmp.eq.s32.totalorder %s13, 3
    %p82 = por %p80, %p81
    %p83 = scmp.ne.s32.totalorder %s75, %s78
    %p84 = scmp.eq.s32.totalorder %s13, 0
    %p85 = por %p83, %p84
    %p86 = scmp.ne.s32.totalorder %s75, %s78
    %p87 = scmp.eq.s32.totalorder %s18, 3
    %p88 = por %p86, %p87
    %p89 = scmp.ne.s32.totalorder %s78, %s79
    %p90 = scmp.eq.s32.totalorder %s18, 0
    %p91 = por %p89, %p90
    %p92 = scmp.ne.s32.totalorder %s78, %s79
    %p93 = scmp.eq.s32.totalorder %s19, 3
    %p94 = por %p92, %p93
    %p96 = scmp.ne.s32.totalorder %s79, %s95
    %p97 = scmp.eq.s32.totalorder %s19, 0
    %p98 = por %p96, %p97
    %s100 = sadd.s32 %s99, 1
    %p103 = scmp.eq.s32.totalorder %s13, 3
    %p104 = scmp.ne.s32.totalorder %s99, %s101
    %p105 = scmp.eq.s32.totalorder %s13, 0
    %p106 = por %p104, %p105
    %p107 = scmp.ne.s32.totalorder %s99, %s101
    %p108 = scmp.eq.s32.totalorder %s18, 3
    %p109 = por %p107, %p108
    %p110 = scmp.ne.s32.totalorder %s101, %s102
    %p111 = scmp.eq.s32.totalorder %s18, 0
    %p112 = por %p110, %p111
    %p113 = scmp.ne.s32.totalorder %s101, %s102
    %p114 = scmp.eq.s32.totalorder %s19, 3
    %p115 = por %p113, %p114
    %p117 = scmp.ne.s32.totalorder %s102, %s116
    %p118 = scmp.eq.s32.totalorder %s19, 0
    %p119 = por %p117, %p118
    %s121 = sadd.s32 %s120, 1
    %p124 = scmp.eq.s32.totalorder %s13, 3
    %p125 = scmp.ne.s32.totalorder %s120, %s122
    %p126 = scmp.eq.s32.totalorder %s13, 0
    %p127 = por %p125, %p126
    %p128 = scmp.ne.s32.totalorder %s120, %s122
    %p129 = scmp.eq.s32.totalorder %s18, 3
    %p130 = por %p128, %p129
    %p131 = scmp.ne.s32.totalorder %s122, %s123
    %p132 = scmp.eq.s32.totalorder %s18, 0
    %p133 = por %p131, %p132
    %p134 = scmp.ne.s32.totalorder %s122, %s123
    %p135 = scmp.eq.s32.totalorder %s19, 3
    %p136 = por %p134, %p135
    %p138 = scmp.ne.s32.totalorder %s123, %s137
    %p139 = scmp.eq.s32.totalorder %s19, 0
    %p140 = por %p138, %p139
    %s142 = sadd.s32 %s141, 1
    %p145 = scmp.eq.s32.totalorder %s13, 3
    %p146 = scmp.ne.s32.totalorder %s141, %s143
    %p147 = scmp.eq.s32.totalorder %s13, 0
    %p148 = por %p146, %p147
    %p149 = scmp.ne.s32.totalorder %s141, %s143
    %p150 = scmp.eq.s32.totalorder %s18, 3
    %p151 = por %p149, %p150
    %p152 = scmp.ne.s32.totalorder %s143, %s144
    %p153 = scmp.eq.s32.totalorder %s18, 0
    %p154 = por %p152, %p153
    %p155 = scmp.ne.s32.totalorder %s143, %s144
    %p156 = scmp.eq.s32.totalorder %s19, 3
    %p157 = por %p155, %p156
    %p159 = scmp.ne.s32.totalorder %s144, %s158
    %p160 = scmp.eq.s32.totalorder %s19, 0
    %p161 = por %p159, %p160
    %s163 = sadd.s32 %s162, 1
    %p166 = scmp.eq.s32.totalorder %s13, 3
    %p167 = scmp.ne.s32.totalorder %s162, %s164
    %p168 = scmp.eq.s32.totalorder %s13, 0
    %p169 = por %p167, %p168
    %p170 = scmp.ne.s32.totalorder %s162, %s164
    %p171 = scmp.eq.s32.totalorder %s18, 3
    %p172 = por %p170, %p171
    %p173 = scmp.ne.s32.totalorder %s164, %s165
    %p174 = scmp.eq.s32.totalorder %s18, 0
    %p175 = por %p173, %p174
    %p176 = scmp.ne.s32.totalorder %s164, %s165
    %p177 = scmp.eq.s32.totalorder %s19, 3
    %p178 = por %p176, %p177
    %p180 = scmp.ne.s32.totalorder %s165, %s179
    %p181 = scmp.eq.s32.totalorder %s19, 0
    %p182 = por %p180, %p181
    %s183 = ssub.s32 %s13, %s20
    %p184 = scmp.eq.s32.totalorder %s183, 0
    %s186 = sadd.s32 %s185, 1
    %s187 = scalar_select %p184, %s185, %s186
    %p190 = pneg %p184
    %p191 = scmp.eq.s32.totalorder %s13, 3
    %p192 = por %p190, %p191
    %p193 = scmp.ne.s32.totalorder %s185, %s188
    %p194 = scmp.eq.s32.totalorder %s13, 0
    %p195 = por %p193, %p194
    %p196 = scmp.ne.s32.totalorder %s185, %s188
    %p197 = scmp.eq.s32.totalorder %s18, 3
    %p198 = por %p196, %p197
    %p199 = scmp.ne.s32.totalorder %s188, %s189
    %p200 = scmp.eq.s32.totalorder %s18, 0
    %p201 = por %p199, %p200
    %p202 = scmp.ne.s32.totalorder %s188, %s189
    %p203 = scmp.eq.s32.totalorder %s19, 3
    %p204 = por %p202, %p203
    %p206 = scmp.ne.s32.totalorder %s189, %s205
    %p207 = scmp.eq.s32.totalorder %s19, 0
    %p208 = por %p206, %p207
    %p209 = scmp.le.s32.totalorder 1, %s13
    %p210 = scmp.lt.s32.totalorder %s13, 5
    %p211 = pnand %p209, %p210
    %p212 = pneg %p211
    // Predicated region
    $region9: #{tpu_custom_call.1} parent=5 // pred_check
      _
    $region10: #{tpu_custom_call.1} parent=5 // pred_check_branch
      %214 = sbr.rel (%p211) target = $region12
    $region11: #{tpu_custom_call.1} parent=5 // pred_region
      %s215 = ssub.s32 %s13, 1
      // Predicated region
      $region13: #{tpu_custom_call.1} parent=11 // pred_check
        %p216 = pneg %p112
      $region14: #{tpu_custom_call.1} parent=11 // pred_check_branch
        %218 = sbr.rel (%p216) target = $region16
      $region15: #{tpu_custom_call.1} parent=11 // pred_region
        _
      $region16: #{tpu_custom_call.1} parent=11 // pred_fallthru
        _
      // Predicated region
      $region17: #{tpu_custom_call.1} parent=11 // pred_check
        %p219 = pneg %p133
      $region18: #{tpu_custom_call.1} parent=11 // pred_check_branch
        %221 = sbr.rel (%p219) target = $region20
      $region19: #{tpu_custom_call.1} parent=11 // pred_region
        _
      $region20: #{tpu_custom_call.1} parent=11 // pred_fallthru
        _
      // Predicated region
      $region21: #{tpu_custom_call.1} parent=11 // pred_check
        %p222 = pneg %p154
      $region22: #{tpu_custom_call.1} parent=11 // pred_check_branch
        %224 = sbr.rel (%p222) target = $region24
      $region23: #{tpu_custom_call.1} parent=11 // pred_region
        _
      $region24: #{tpu_custom_call.1} parent=11 // pred_fallthru
        _
      // Predicated region
      $region25: #{tpu_custom_call.1} parent=11 // pred_check
        %p225 = pneg %p175
      $region26: #{tpu_custom_call.1} parent=11 // pred_check_branch
        %227 = sbr.rel (%p225) target = $region28
      $region27: #{tpu_custom_call.1} parent=11 // pred_region
        _
      $region28: #{tpu_custom_call.1} parent=11 // pred_fallthru
        _
    $region12: #{tpu_custom_call.1} parent=5 // pred_fallthru
      _
    %p228 = scmp.lt.s32.totalorder %s13, 4
    // Predicated region
    $region29: #{tpu_custom_call.1} parent=5 // pred_check
      %p229 = pneg %p228
    $region30: #{tpu_custom_call.1} parent=5 // pred_check_branch
      %231 = sbr.rel (%p229) target = $region32
    $region31: #{tpu_custom_call.1} parent=5 // pred_region
      // Predicated region
      $region33: #{tpu_custom_call.1} parent=31 // pred_check
        %p232 = pneg %p33
      $region34: #{tpu_custom_call.1} parent=31 // pred_check_branch
        %234 = sbr.rel (%p232) target = $region36
      $region35: #{tpu_custom_call.1} parent=31 // pred_region
        %p235 = scmp.lt.s32.totalorder %s13, 3
        %s236 = scalar_select %p235, %s13, 3
        %s237 = smul.addr %s236, 24
        %s238 = smul.addr %s237, 8
        %s239 = scalar_lea.vmem %s0, %s238
      $region36: #{tpu_custom_call.1} parent=31 // pred_fallthru
        _
      // Predicated region
      $region37: #{tpu_custom_call.1} parent=31 // pred_check
        %p240 = pneg %p59
      $region38: #{tpu_custom_call.1} parent=31 // pred_check_branch
        %242 = sbr.rel (%p240) target = $region40
      $region39: #{tpu_custom_call.1} parent=31 // pred_region
        %p243 = scmp.lt.s32.totalorder %s13, 3
        %s244 = scalar_select %p243, %s13, 3
        %s245 = smul.addr %s244, 32
        %s246 = smul.addr %s245, 8
        %s247 = scalar_lea.vmem %s1, %s246
      $region40: #{tpu_custom_call.1} parent=31 // pred_fallthru
        _
      // Predicated region
      $region41: #{tpu_custom_call.1} parent=31 // pred_check
        %p248 = pneg %p85
      $region42: #{tpu_custom_call.1} parent=31 // pred_check_branch
        %250 = sbr.rel (%p248) target = $region44
      $region43: #{tpu_custom_call.1} parent=31 // pred_region
        %p251 = scmp.lt.s32.totalorder %s13, 3
        %s252 = scalar_select %p251, %s13, 3
        %s253 = smul.addr %s252, 2
        %s254 = scalar_lea.vmem %s2, %s253
      $region44: #{tpu_custom_call.1} parent=31 // pred_fallthru
        _
    $region32: #{tpu_custom_call.1} parent=5 // pred_fallthru
      _
    %p255 = scmp.le.s32.totalorder 1, %s13
    %p256 = scmp.lt.s32.totalorder %s13, 5
    %p257 = pnand %p255, %p256
    %p258 = pneg %p257
    // Predicated region
    $region45: #{tpu_custom_call.1} parent=5 // pred_check
      _
    $region46: #{tpu_custom_call.1} parent=5 // pred_check_branch
      %260 = sbr.rel (%p257) target = $region48
    $region47: #{tpu_custom_call.1} parent=5 // pred_region
      %s261 = ssub.s32 %s13, 1
      %p262 = scmp.lt.s32.totalorder %s18, 3
      %s263 = scalar_select %p262, %s18, 3
      %s264 = smul.addr %s263, 24
      %s265 = smul.addr %s264, 8
      %s266 = scalar_lea.vmem %s0, %s265
      %p267 = pneg %p39
      %p268 = pneg %p36
      %p269 = scmp.lt.s32.totalorder %s18, 3
      %s270 = scalar_select %p269, %s18, 3
      %s271 = smul.addr %s270, 32
      %s272 = smul.addr %s271, 8
      %s273 = scalar_lea.vmem %s1, %s272
      %p274 = pneg %p65
      %p275 = pneg %p62
      %p276 = scmp.lt.s32.totalorder %s18, 3
      %s277 = scalar_select %p276, %s18, 3
      %s278 = smul.addr %s277, 2
      %s279 = scalar_lea.vmem %s2, %s278
      %p280 = pneg %p91
      %p281 = pneg %p88
      %p282 = pneg %p112
      %p283 = pneg %p109
      %p284 = pneg %p133
      %p285 = pneg %p130
      %p286 = pneg %p154
      %p287 = pneg %p151
      %p288 = pneg %p175
      %p289 = pneg %p172
      %p290 = pneg %p201
      %p291 = pneg %p198
      %p292 = scmp.lt.s32.totalorder %s18, 3
      %s293 = scalar_select %p292, %s18, 3
      %s294 = smul.addr %s293, 24
      %s295 = smul.addr %s294, 8
      %s296 = scalar_lea.vmem %s7, %s295
      %p297 = scmp.lt.s32.totalorder %s18, 3
      %s298 = scalar_select %p297, %s18, 3
      %s299 = smul.addr %s298, 24
      %s300 = smul.addr %s299, 8
      %s301 = scalar_lea.vmem %s0, %s300
      %p302 = scmp.lt.s32.totalorder %s18, 3
      %s303 = scalar_select %p302, %s18, 3
      %s304 = smul.addr %s303, 32
      %s305 = smul.addr %s304, 8
      %s306 = scalar_lea.vmem %s1, %s305
      %p307 = scmp.lt.s32.totalorder %s18, 3
      %s308 = scalar_select %p307, %s18, 3
      %s309 = smul.addr %s308, 2
      %s310 = scalar_lea.vmem %s2, %s309
      %p311 = scmp.lt.s32.totalorder %s18, 3
      %s312 = scalar_select %p311, %s18, 3
      %s313 = smul.addr %s312, 24
      %s314 = smul.addr %s313, 8
      %s315 = scalar_lea.vmem %s7, %s314
      %v316 = vld [vmem:[%s301] sm:$0xff]
      %v317 = vld [vmem:[%s301 + $0x8] sm:$0xff]
      %v318 = vld [vmem:[%s301 + $0x10] sm:$0xff]
      %v319 = vld [vmem:[%s301 + $0x18] sm:$0xff]
      %v320 = vld [vmem:[%s301 + $0x20] sm:$0xff]
      %v321 = vld [vmem:[%s301 + $0x28] sm:$0xff]
      %v322 = vld [vmem:[%s301 + $0x30] sm:$0xff]
      %v323 = vld [vmem:[%s301 + $0x38] sm:$0xff]
      %v324 = vld [vmem:[%s301 + $0x40] sm:$0xff]
      %v325 = vld [vmem:[%s301 + $0x48] sm:$0xff]
      %v326 = vld [vmem:[%s301 + $0x50] sm:$0xff]
      %v327 = vld [vmem:[%s301 + $0x58] sm:$0xff]
      %v328 = vld [vmem:[%s301 + $0x60] sm:$0xff]
      %v329 = vld [vmem:[%s301 + $0x68] sm:$0xff]
      %v330 = vld [vmem:[%s301 + $0x70] sm:$0xff]
      %v331 = vld [vmem:[%s301 + $0x78] sm:$0xff]
      %v332 = vld [vmem:[%s301 + $0x80] sm:$0xff]
      %v333 = vld [vmem:[%s301 + $0x88] sm:$0xff]
      %v334 = vld [vmem:[%s301 + $0x90] sm:$0xff]
      %v335 = vld [vmem:[%s301 + $0x98] sm:$0xff]
      %v336 = vld [vmem:[%s301 + $0xa0] sm:$0xff]
      %v337 = vld [vmem:[%s301 + $0xa8] sm:$0xff]
      %v338 = vld [vmem:[%s301 + $0xb0] sm:$0xff]
      %v339 = vld [vmem:[%s301 + $0xb8] sm:$0xff]
      %v340 = vld [vmem:[%s306] sm:$0xff]
      %v341 = vld [vmem:[%s306 + $0x8] sm:$0xff]
      %v342 = vld [vmem:[%s306 + $0x10] sm:$0xff]
      %v343 = vld [vmem:[%s306 + $0x18] sm:$0xff]
      %v344 = vld [vmem:[%s306 + $0x20] sm:$0xff]
      %v345 = vld [vmem:[%s306 + $0x28] sm:$0xff]
      %v346 = vld [vmem:[%s306 + $0x30] sm:$0xff]
      %v347 = vld [vmem:[%s306 + $0x38] sm:$0xff]
      %v348 = vld [vmem:[%s306 + $0x40] sm:$0xff]
      %v349 = vld [vmem:[%s306 + $0x48] sm:$0xff]
      %v350 = vld [vmem:[%s306 + $0x50] sm:$0xff]
      %v351 = vld [vmem:[%s306 + $0x58] sm:$0xff]
      %v352 = vld [vmem:[%s306 + $0x60] sm:$0xff]
      %v353 = vld [vmem:[%s306 + $0x68] sm:$0xff]
      %v354 = vld [vmem:[%s306 + $0x70] sm:$0xff]
      %v355 = vld [vmem:[%s306 + $0x78] sm:$0xff]
      %v356 = vld [vmem:[%s306 + $0x80] sm:$0xff]
      %v357 = vld [vmem:[%s306 + $0x88] sm:$0xff]
      %v358 = vld [vmem:[%s306 + $0x90] sm:$0xff]
      %v359 = vld [vmem:[%s306 + $0x98] sm:$0xff]
      %v360 = vld [vmem:[%s306 + $0xa0] sm:$0xff]
      %v361 = vld [vmem:[%s306 + $0xa8] sm:$0xff]
      %v362 = vld [vmem:[%s306 + $0xb0] sm:$0xff]
      %v363 = vld [vmem:[%s306 + $0xb8] sm:$0xff]
      %v364 = vld [vmem:[%s306 + $0xc0] sm:$0xff]
      %v365 = vld [vmem:[%s306 + $0xc8] sm:$0xff]
      %v366 = vld [vmem:[%s306 + $0xd0] sm:$0xff]
      %v367 = vld [vmem:[%s306 + $0xd8] sm:$0xff]
      %v368 = vld [vmem:[%s306 + $0xe0] sm:$0xff]
      %v369 = vld [vmem:[%s306 + $0xe8] sm:$0xff]
      %v370 = vld [vmem:[%s306 + $0xf0] sm:$0xff]
      %v371 = vld [vmem:[%s306 + $0xf8] sm:$0xff]
      %v372 = vld [vmem:[%s310] sm:$0x3]
      %v373 = vld [vmem:[%s4] sm:$0xff]
      %v374 = vld [vmem:[%s4 + $0x8] sm:$0xff]
      %v375 = vld [vmem:[%s4 + $0x10] sm:$0xff]
      %v376 = vlaneseq
      %v377 = vand.u32 %v376, 127
      %378 = vset.pattern.permute.xlu0 0
      %379 = vperm.xlu0 %378, %v340
      %v380 = vpop.permute.xlu0 %379
      %381 = vset.pattern.permute.xlu0 0
      %382 = vperm.xlu0 %381, %v341
      %v383 = vpop.permute.xlu0 %382
      %384 = vset.pattern.permute.xlu0 0
      %385 = vperm.xlu0 %384, %v342
      %v386 = vpop.permute.xlu0 %385
      %387 = vset.pattern.permute.xlu0 0
      %388 = vperm.xlu0 %387, %v343
      %v389 = vpop.permute.xlu0 %388
      %390 = vset.pattern.permute.xlu0 0
      %391 = vperm.xlu0 %390, %v344
      %v392 = vpop.permute.xlu0 %391
      %393 = vset.pattern.permute.xlu0 0
      %394 = vperm.xlu0 %393, %v345
      %v395 = vpop.permute.xlu0 %394
      %396 = vset.pattern.permute.xlu0 0
      %397 = vperm.xlu0 %396, %v346
      %v398 = vpop.permute.xlu0 %397
      %399 = vset.pattern.permute.xlu0 0
      %400 = vperm.xlu0 %399, %v347
      %v401 = vpop.permute.xlu0 %400
      %402 = vset.pattern.permute.xlu0 0
      %403 = vperm.xlu0 %402, %v348
      %v404 = vpop.permute.xlu0 %403
      %405 = vset.pattern.permute.xlu0 0
      %406 = vperm.xlu0 %405, %v349
      %v407 = vpop.permute.xlu0 %406
      %408 = vset.pattern.permute.xlu0 0
      %409 = vperm.xlu0 %408, %v350
      %v410 = vpop.permute.xlu0 %409
      %411 = vset.pattern.permute.xlu0 0
      %412 = vperm.xlu0 %411, %v351
      %v413 = vpop.permute.xlu0 %412
      %414 = vset.pattern.permute.xlu0 0
      %415 = vperm.xlu0 %414, %v352
      %v416 = vpop.permute.xlu0 %415
      %417 = vset.pattern.permute.xlu0 0
      %418 = vperm.xlu0 %417, %v353
      %v419 = vpop.permute.xlu0 %418
      %420 = vset.pattern.permute.xlu0 0
      %421 = vperm.xlu0 %420, %v354
      %v422 = vpop.permute.xlu0 %421
      %423 = vset.pattern.permute.xlu0 0
      %424 = vperm.xlu0 %423, %v355
      %v425 = vpop.permute.xlu0 %424
      %426 = vset.pattern.permute.xlu0 0
      %427 = vperm.xlu0 %426, %v356
      %v428 = vpop.permute.xlu0 %427
      %429 = vset.pattern.permute.xlu0 0
      %430 = vperm.xlu0 %429, %v357
      %v431 = vpop.permute.xlu0 %430
      %432 = vset.pattern.permute.xlu0 0
      %433 = vperm.xlu0 %432, %v358
      %v434 = vpop.permute.xlu0 %433
      %435 = vset.pattern.permute.xlu0 0
      %436 = vperm.xlu0 %435, %v359
      %v437 = vpop.permute.xlu0 %436
      %438 = vset.pattern.permute.xlu0 0
      %439 = vperm.xlu0 %438, %v360
      %v440 = vpop.permute.xlu0 %439
      %441 = vset.pattern.permute.xlu0 0
      %442 = vperm.xlu0 %441, %v361
      %v443 = vpop.permute.xlu0 %442
      %444 = vset.pattern.permute.xlu0 0
      %445 = vperm.xlu0 %444, %v362
      %v446 = vpop.permute.xlu0 %445
      %447 = vset.pattern.permute.xlu0 0
      %448 = vperm.xlu0 %447, %v363
      %v449 = vpop.permute.xlu0 %448
      %450 = vset.pattern.permute.xlu0 0
      %451 = vperm.xlu0 %450, %v364
      %v452 = vpop.permute.xlu0 %451
      %453 = vset.pattern.permute.xlu0 0
      %454 = vperm.xlu0 %453, %v365
      %v455 = vpop.permute.xlu0 %454
      %456 = vset.pattern.permute.xlu0 0
      %457 = vperm.xlu0 %456, %v366
      %v458 = vpop.permute.xlu0 %457
      %459 = vset.pattern.permute.xlu0 0
      %460 = vperm.xlu0 %459, %v367
      %v461 = vpop.permute.xlu0 %460
      %462 = vset.pattern.permute.xlu0 0
      %463 = vperm.xlu0 %462, %v368
      %v464 = vpop.permute.xlu0 %463
      %465 = vset.pattern.permute.xlu0 0
      %466 = vperm.xlu0 %465, %v369
      %v467 = vpop.permute.xlu0 %466
      %468 = vset.pattern.permute.xlu0 0
      %469 = vperm.xlu0 %468, %v370
      %v470 = vpop.permute.xlu0 %469
      %471 = vset.pattern.permute.xlu0 0
      %472 = vperm.xlu0 %471, %v371
      %v473 = vpop.permute.xlu0 %472
      %vm474 = vcmp.eq.s32.totalorder %v377, %v380
      %vm475 = vcmp.eq.s32.totalorder %v377, %v383
      %vm476 = vcmp.eq.s32.totalorder %v377, %v386
      %vm477 = vcmp.eq.s32.totalorder %v377, %v389
      %vm478 = vcmp.eq.s32.totalorder %v377, %v392
      %vm479 = vcmp.eq.s32.totalorder %v377, %v395
      %vm480 = vcmp.eq.s32.totalorder %v377, %v398
      %vm481 = vcmp.eq.s32.totalorder %v377, %v401
      %vm482 = vcmp.eq.s32.totalorder %v377, %v404
      %vm483 = vcmp.eq.s32.totalorder %v377, %v407
      %vm484 = vcmp.eq.s32.totalorder %v377, %v410
      %vm485 = vcmp.eq.s32.totalorder %v377, %v413
      %vm486 = vcmp.eq.s32.totalorder %v377, %v416
      %vm487 = vcmp.eq.s32.totalorder %v377, %v419
      %vm488 = vcmp.eq.s32.totalorder %v377, %v422
      %vm489 = vcmp.eq.s32.totalorder %v377, %v425
      %vm490 = vcmp.eq.s32.totalorder %v377, %v428
      %vm491 = vcmp.eq.s32.totalorder %v377, %v431
      %vm492 = vcmp.eq.s32.totalorder %v377, %v434
      %vm493 = vcmp.eq.s32.totalorder %v377, %v437
      %vm494 = vcmp.eq.s32.totalorder %v377, %v440
      %vm495 = vcmp.eq.s32.totalorder %v377, %v443
      %vm496 = vcmp.eq.s32.totalorder %v377, %v446
      %vm497 = vcmp.eq.s32.totalorder %v377, %v449
      %vm498 = vcmp.eq.s32.totalorder %v377, %v452
      %vm499 = vcmp.eq.s32.totalorder %v377, %v455
      %vm500 = vcmp.eq.s32.totalorder %v377, %v458
      %vm501 = vcmp.eq.s32.totalorder %v377, %v461
      %vm502 = vcmp.eq.s32.totalorder %v377, %v464
      %vm503 = vcmp.eq.s32.totalorder %v377, %v467
      %vm504 = vcmp.eq.s32.totalorder %v377, %v470
      %vm505 = vcmp.eq.s32.totalorder %v377, %v473
      %v506 = vsel %vm474, 1, 0
      %v507 = vsel %vm475, 1, 0
      %v508 = vsel %vm476, 1, 0
      %v509 = vsel %vm477, 1, 0
      %v510 = vsel %vm478, 1, 0
      %v511 = vsel %vm479, 1, 0
      %v512 = vsel %vm480, 1, 0
      %v513 = vsel %vm481, 1, 0
      %v514 = vsel %vm482, 1, 0
      %v515 = vsel %vm483, 1, 0
      %v516 = vsel %vm484, 1, 0
      %v517 = vsel %vm485, 1, 0
      %v518 = vsel %vm486, 1, 0
      %v519 = vsel %vm487, 1, 0
      %v520 = vsel %vm488, 1, 0
      %v521 = vsel %vm489, 1, 0
      %v522 = vsel %vm490, 1, 0
      %v523 = vsel %vm491, 1, 0
      %v524 = vsel %vm492, 1, 0
      %v525 = vsel %vm493, 1, 0
      %v526 = vsel %vm494, 1, 0
      %v527 = vsel %vm495, 1, 0
      %v528 = vsel %vm496, 1, 0
      %v529 = vsel %vm497, 1, 0
      %v530 = vsel %vm498, 1, 0
      %v531 = vsel %vm499, 1, 0
      %v532 = vsel %vm500, 1, 0
      %v533 = vsel %vm501, 1, 0
      %v534 = vsel %vm502, 1, 0
      %v535 = vsel %vm503, 1, 0
      %v536 = vsel %vm504, 1, 0
      %v537 = vsel %vm505, 1, 0
      %v538 = vcvt.s32.f32 %v506
      %v539 = vcvt.s32.f32 %v507
      %v540 = vcvt.s32.f32 %v508
      %v541 = vcvt.s32.f32 %v509
      %v542 = vcvt.s32.f32 %v510
      %v543 = vcvt.s32.f32 %v511
      %v544 = vcvt.s32.f32 %v512
      %v545 = vcvt.s32.f32 %v513
      %v546 = vcvt.s32.f32 %v514
      %v547 = vcvt.s32.f32 %v515
      %v548 = vcvt.s32.f32 %v516
      %v549 = vcvt.s32.f32 %v517
      %v550 = vcvt.s32.f32 %v518
      %v551 = vcvt.s32.f32 %v519
      %v552 = vcvt.s32.f32 %v520
      %v553 = vcvt.s32.f32 %v521
      %v554 = vcvt.s32.f32 %v522
      %v555 = vcvt.s32.f32 %v523
      %v556 = vcvt.s32.f32 %v524
      %v557 = vcvt.s32.f32 %v525
      %v558 = vcvt.s32.f32 %v526
      %v559 = vcvt.s32.f32 %v527
      %v560 = vcvt.s32.f32 %v528
      %v561 = vcvt.s32.f32 %v529
      %v562 = vcvt.s32.f32 %v530
      %v563 = vcvt.s32.f32 %v531
      %v564 = vcvt.s32.f32 %v532
      %v565 = vcvt.s32.f32 %v533
      %v566 = vcvt.s32.f32 %v534
      %v567 = vcvt.s32.f32 %v535
      %v568 = vcvt.s32.f32 %v536
      %v569 = vcvt.s32.f32 %v537
      %v570 = vlaneseq
      %v571 = vshrl.u32 %v570, 7
      %v572 = vadd.s32 %v571, 8
      %v573 = vadd.s32 %v571, 16
      %v574 = vadd.s32 %v571, 24
      %v575 = vadd.s32 %v571, 32
      %v576 = vadd.s32 %v571, 40
      %v577 = vadd.s32 %v571, 48
      %v578 = vadd.s32 %v571, 56
      %v579 = vlaneseq
      %v580 = vshrl.u32 %v579, 7
      %v581 = vsub.s32 0, %v580
      %v582 = vrot.slane %v372, %v581
      %v583 = vlaneseq
      %v584 = vshrl.u32 %v583, 7
      %v585 = vsub.s32 1, %v584
      %v586 = vrot.slane %v372, %v585
      %vm587 = vcmp.eq.s32.totalorder %v571, %v582
      %vm588 = vcmp.eq.s32.totalorder %v571, %v586
      %vm589 = vcmp.eq.s32.totalorder %v572, %v582
      %vm590 = vcmp.eq.s32.totalorder %v572, %v586
      %vm591 = vcmp.eq.s32.totalorder %v573, %v582
      %vm592 = vcmp.eq.s32.totalorder %v573, %v586
      %vm593 = vcmp.eq.s32.totalorder %v574, %v582
      %vm594 = vcmp.eq.s32.totalorder %v574, %v586
      %vm595 = vcmp.eq.s32.totalorder %v575, %v582
      %vm596 = vcmp.eq.s32.totalorder %v575, %v586
      %vm597 = vcmp.eq.s32.totalorder %v576, %v582
      %vm598 = vcmp.eq.s32.totalorder %v576, %v586
      %vm599 = vcmp.eq.s32.totalorder %v577, %v582
      %vm600 = vcmp.eq.s32.totalorder %v577, %v586
      %vm601 = vcmp.eq.s32.totalorder %v578, %v582
      %vm602 = vcmp.eq.s32.totalorder %v578, %v586
      %v603 = vsel %vm587, 1, 0
      %v604 = vsel %vm588, 1, 0
      %v605 = vsel %vm589, 1, 0
      %v606 = vsel %vm590, 1, 0
      %v607 = vsel %vm591, 1, 0
      %v608 = vsel %vm592, 1, 0
      %v609 = vsel %vm593, 1, 0
      %v610 = vsel %vm594, 1, 0
      %v611 = vsel %vm595, 1, 0
      %v612 = vsel %vm596, 1, 0
      %v613 = vsel %vm597, 1, 0
      %v614 = vsel %vm598, 1, 0
      %v615 = vsel %vm599, 1, 0
      %v616 = vsel %vm600, 1, 0
      %v617 = vsel %vm601, 1, 0
      %v618 = vsel %vm602, 1, 0
      %v619 = vcvt.s32.f32 %v603
      %v620 = vcvt.s32.f32 %v604
      %v621 = vcvt.s32.f32 %v605
      %v622 = vcvt.s32.f32 %v606
      %v623 = vcvt.s32.f32 %v607
      %v624 = vcvt.s32.f32 %v608
      %v625 = vcvt.s32.f32 %v609
      %v626 = vcvt.s32.f32 %v610
      %v627 = vcvt.s32.f32 %v611
      %v628 = vcvt.s32.f32 %v612
      %v629 = vcvt.s32.f32 %v613
      %v630 = vcvt.s32.f32 %v614
      %v631 = vcvt.s32.f32 %v615
      %v632 = vcvt.s32.f32 %v616
      %v633 = vcvt.s32.f32 %v617
      %v634 = vcvt.s32.f32 %v618
      %vm635 = vcmask 523264
      %v637 = vsel %vm635, %v538, 0
      %v640 = vsel %vm635, %v539, 0
      %v643 = vsel %vm635, %v540, 0
      %v646 = vsel %vm635, %v541, 0
      %v649 = vsel %vm635, %v542, 0
      %v652 = vsel %vm635, %v543, 0
      %v655 = vsel %vm635, %v544, 0
      %v658 = vsel %vm635, %v545, 0
      %v661 = vsel %vm635, %v546, 0
      %v664 = vsel %vm635, %v547, 0
      %v667 = vsel %vm635, %v548, 0
      %v670 = vsel %vm635, %v549, 0
      %v673 = vsel %vm635, %v550, 0
      %v676 = vsel %vm635, %v551, 0
      %v679 = vsel %vm635, %v552, 0
      %v682 = vsel %vm635, %v553, 0
      %v685 = vsel %vm635, %v554, 0
      %v688 = vsel %vm635, %v555, 0
      %v691 = vsel %vm635, %v556, 0
      %v694 = vsel %vm635, %v557, 0
      %v697 = vsel %vm635, %v558, 0
      %v700 = vsel %vm635, %v559, 0
      %v703 = vsel %vm635, %v560, 0
      %v706 = vsel %vm635, %v561, 0
      %v709 = vsel %vm635, %v562, 0
      %v712 = vsel %vm635, %v563, 0
      %v715 = vsel %vm635, %v564, 0
      %v718 = vsel %vm635, %v565, 0
      %v721 = vsel %vm635, %v566, 0
      %v724 = vsel %vm635, %v567, 0
      %v727 = vsel %vm635, %v568, 0
      %v730 = vsel %vm635, %v569, 0
      %732 = vmatprep.subr.mxu0 0.0
      %733 = vmatpush1.msra.mxu0 %v316
      %734 = vmatprep.subr.mxu0 0.0
      %735 = vmatpush1.msra.mxu0 %v317
      %736 = vmatprep.subr.mxu0 0.0
      %737 = vmatpush1.msra.mxu0 %v318
      %738 = vmatprep.subr.mxu0 0.0
      %739 = vmatpush1.msra.mxu0 %v319
      %740 = vmatprep.subr.mxu0 0.0
      %741 = vmatpush1.msra.mxu0 %v320
      %742 = vmatprep.subr.mxu0 0.0
      %743 = vmatpush1.msra.mxu0 %v321
      %744 = vmatprep.subr.mxu0 0.0
      %745 = vmatpush1.msra.mxu0 %v322
      %746 = vmatprep.subr.mxu0 0.0
      %747 = vmatpush1.msra.mxu0 %v323
      %748 = vmatprep.subr.mxu0 0.0
      %749 = vmatpush1.msra.mxu0 0.0
      %750 = vmatprep.subr.mxu0 0.0
      %751 = vmatpush1.msra.mxu0 0.0
      %752 = vmatprep.subr.mxu0 0.0
      %753 = vmatpush1.msra.mxu0 0.0
      %754 = vmatprep.subr.mxu0 0.0
      %755 = vmatpush1.msra.mxu0 0.0
      %756 = vmatprep.subr.mxu0 0.0
      %757 = vmatpush1.msra.mxu0 0.0
      %758 = vmatprep.subr.mxu0 0.0
      %759 = vmatpush1.msra.mxu0 0.0
      %760 = vmatprep.subr.mxu0 0.0
      %761 = vmatpush1.msra.mxu0 0.0
      %762 = vmatprep.subr.mxu0 0.0
      %763 = vmatpush1.msra.mxu0 0.0
      %764 = vmatprep.subr.mxu0 0.0
      %765 = vmatpush1.msra.mxu0 0.0
      %766 = vmatprep.subr.mxu0 0.0
      %767 = vmatpush1.msra.mxu0 0.0
      %768 = vmatprep.subr.mxu0 0.0
      %769 = vmatpush1.msra.mxu0 0.0
      %770 = vmatprep.subr.mxu0 0.0
      %771 = vmatpush1.msra.mxu0 0.0
      %772 = vmatprep.subr.mxu0 0.0
      %773 = vmatpush1.msra.mxu0 0.0
      %774 = vmatprep.subr.mxu0 0.0
      %775 = vmatpush1.msra.mxu0 0.0
      %776 = vmatprep.subr.mxu0 0.0
      %777 = vmatpush1.msra.mxu0 0.0
      %778 = vmatprep.subr.mxu0 0.0
      %779 = vmatpush1.msra.mxu0 0.0
      %780 = vmatprep.subr.mxu0 0.0
      %781 = vmatpush1.msra.mxu0 0.0
      %782 = vmatprep.subr.mxu0 0.0
      %783 = vmatpush1.msra.mxu0 0.0
      %784 = vmatprep.subr.mxu0 0.0
      %785 = vmatpush1.msra.mxu0 0.0
      %786 = vmatprep.subr.mxu0 0.0
      %787 = vmatpush1.msra.mxu0 0.0
      %788 = vmatprep.subr.mxu0 0.0
      %789 = vmatpush1.msra.mxu0 0.0
      %790 = vmatprep.subr.mxu0 0.0
      %791 = vmatpush1.msra.mxu0 0.0
      %792 = vmatprep.subr.mxu0 0.0
      %793 = vmatpush1.msra.mxu0 0.0
      %794 = vmatprep.subr.mxu0 0.0
      %795 = vmatpush1.msra.mxu0 0.0
      %796 = vmatprep.mubr.f32.mxu0 0.0
      %797 = vmatmul.mubr.f32.gmra.mrb[0].mxu0 %v637
      %v798 = vpop.f32.mrb[0].mxu0
      %v799 = vadd.f32 0.0, %v798
      %v800 = vpop.f32.mrb[0].mxu0
      %801 = vmatprep.mubr.f32.mxu0 0.0
      %802 = vmatmul.mubr.f32.gmra.mrb[0].mxu0 %v640
      %v803 = vpop.f32.mrb[0].mxu0
      %v804 = vadd.f32 0.0, %v803
      %v805 = vpop.f32.mrb[0].mxu0
      %806 = vmatprep.mubr.f32.mxu0 0.0
      %807 = vmatmul.mubr.f32.gmra.mrb[0].mxu0 %v643
      %v808 = vpop.f32.mrb[0].mxu0
      %v809 = vadd.f32 0.0, %v808
      %v810 = vpop.f32.mrb[0].mxu0
      %811 = vmatprep.mubr.f32.mxu0 0.0
      %812 = vmatmul.mubr.f32.gmra.mrb[0].mxu0 %v646
      %v813 = vpop.f32.mrb[0].mxu0
      %v814 = vadd.f32 0.0, %v813
      %v815 = vpop.f32.mrb[0].mxu0
      %816 = vmatprep.mubr.f32.mxu0 0.0
      %817 = vmatmul.mubr.f32.gmra.mrb[0].mxu0 %v649
      %v818 = vpop.f32.mrb[0].mxu0
      %v819 = vadd.f32 0.0, %v818
      %v820 = vpop.f32.mrb[0].mxu0
      %821 = vmatprep.mubr.f32.mxu0 0.0
      %822 = vmatmul.mubr.f32.gmra.mrb[0].mxu0 %v652
      %v823 = vpop.f32.mrb[0].mxu0
      %v824 = vadd.f32 0.0, %v823
      %v825 = vpop.f32.mrb[0].mxu0
      %826 = vmatprep.mubr.f32.mxu0 0.0
      %827 = vmatmul.mubr.f32.gmra.mrb[0].mxu0 %v655
      %v828 = vpop.f32.mrb[0].mxu0
      %v829 = vadd.f32 0.0, %v828
      %v830 = vpop.f32.mrb[0].mxu0
      %831 = vmatprep.mubr.f32.mxu0 0.0
      %832 = vmatmul.mubr.f32.gmra.mrb[0].mxu0 %v658
      %v833 = vpop.f32.mrb[0].mxu0
      %v834 = vadd.f32 0.0, %v833
      %v835 = vpop.f32.mrb[0].mxu0
      %836 = vmatprep.mubr.f32.mxu0 0.0
      %837 = vmatmul.mubr.f32.gmra.mrb[0].mxu0 %v661
      %v838 = vpop.f32.mrb[0].mxu0
      %v839 = vadd.f32 0.0, %v838
      %v840 = vpop.f32.mrb[0].mxu0
      %841 = vmatprep.mubr.f32.mxu0 0.0
      %842 = vmatmul.mubr.f32.gmra.mrb[0].mxu0 %v664
      %v843 = vpop.f32.mrb[0].mxu0
      %v844 = vadd.f32 0.0, %v843
      %v845 = vpop.f32.mrb[0].mxu0
      %846 = vmatprep.mubr.f32.mxu0 0.0
      %847 = vmatmul.mubr.f32.gmra.mrb[0].mxu0 %v667
      %v848 = vpop.f32.mrb[0].mxu0
      %v849 = vadd.f32 0.0, %v848
      %v850 = vpop.f32.mrb[0].mxu0
      %851 = vmatprep.mubr.f32.mxu0 0.0
      %852 = vmatmul.mubr.f32.gmra.mrb[0].mxu0 %v670
      %v853 = vpop.f32.mrb[0].mxu0
      %v854 = vadd.f32 0.0, %v853
      %v855 = vpop.f32.mrb[0].mxu0
      %856 = vmatprep.mubr.f32.mxu0 0.0
      %857 = vmatmul.mubr.f32.gmra.mrb[0].mxu0 %v673
      %v858 = vpop.f32.mrb[0].mxu0
      %v859 = vadd.f32 0.0, %v858
      %v860 = vpop.f32.mrb[0].mxu0
      %861 = vmatprep.mubr.f32.mxu0 0.0
      %862 = vmatmul.mubr.f32.gmra.mrb[0].mxu0 %v676
      %v863 = vpop.f32.mrb[0].mxu0
      %v864 = vadd.f32 0.0, %v863
      %v865 = vpop.f32.mrb[0].mxu0
      %866 = vmatprep.mubr.f32.mxu0 0.0
      %867 = vmatmul.mubr.f32.gmra.mrb[0].mxu0 %v679
      %v868 = vpop.f32.mrb[0].mxu0
      %v869 = vadd.f32 0.0, %v868
      %v870 = vpop.f32.mrb[0].mxu0
      %871 = vmatprep.mubr.f32.mxu0 0.0
      %872 = vmatmul.mubr.f32.gmra.mrb[0].mxu0 %v682
      %v873 = vpop.f32.mrb[0].mxu0
      %v874 = vadd.f32 0.0, %v873
      %v875 = vpop.f32.mrb[0].mxu0
      %876 = vmatprep.mubr.f32.mxu0 0.0
      %877 = vmatmul.mubr.f32.gmra.mrb[0].mxu0 %v685
      %v878 = vpop.f32.mrb[0].mxu0
      %v879 = vadd.f32 0.0, %v878
      %v880 = vpop.f32.mrb[0].mxu0
      %881 = vmatprep.mubr.f32.mxu0 0.0
      %882 = vmatmul.mubr.f32.gmra.mrb[0].mxu0 %v688
      %v883 = vpop.f32.mrb[0].mxu0
      %v884 = vadd.f32 0.0, %v883
      %v885 = vpop.f32.mrb[0].mxu0
      %886 = vmatprep.mubr.f32.mxu0 0.0
      %887 = vmatmul.mubr.f32.gmra.mrb[0].mxu0 %v691
      %v888 = vpop.f32.mrb[0].mxu0
      %v889 = vadd.f32 0.0, %v888
      %v890 = vpop.f32.mrb[0].mxu0
      %891 = vmatprep.mubr.f32.mxu0 0.0
      %892 = vmatmul.mubr.f32.gmra.mrb[0].mxu0 %v694
      %v893 = vpop.f32.mrb[0].mxu0
      %v894 = vadd.f32 0.0, %v893
      %v895 = vpop.f32.mrb[0].mxu0
      %896 = vmatprep.mubr.f32.mxu0 0.0
      %897 = vmatmul.mubr.f32.gmra.mrb[0].mxu0 %v697
      %v898 = vpop.f32.mrb[0].mxu0
      %v899 = vadd.f32 0.0, %v898
      %v900 = vpop.f32.mrb[0].mxu0
      %901 = vmatprep.mubr.f32.mxu0 0.0
      %902 = vmatmul.mubr.f32.gmra.mrb[0].mxu0 %v700
      %v903 = vpop.f32.mrb[0].mxu0
      %v904 = vadd.f32 0.0, %v903
      %v905 = vpop.f32.mrb[0].mxu0
      %906 = vmatprep.mubr.f32.mxu0 0.0
      %907 = vmatmul.mubr.f32.gmra.mrb[0].mxu0 %v703
      %v908 = vpop.f32.mrb[0].mxu0
      %v909 = vadd.f32 0.0, %v908
      %v910 = vpop.f32.mrb[0].mxu0
      %911 = vmatprep.mubr.f32.mxu0 0.0
      %912 = vmatmul.mubr.f32.gmra.mrb[0].mxu0 %v706
      %v913 = vpop.f32.mrb[0].mxu0
      %v914 = vadd.f32 0.0, %v913
      %v915 = vpop.f32.mrb[0].mxu0
      %916 = vmatprep.mubr.f32.mxu0 0.0
      %917 = vmatmul.mubr.f32.gmra.mrb[0].mxu0 %v709
      %v918 = vpop.f32.mrb[0].mxu0
      %v919 = vadd.f32 0.0, %v918
      %v920 = vpop.f32.mrb[0].mxu0
      %921 = vmatprep.mubr.f32.mxu0 0.0
      %922 = vmatmul.mubr.f32.gmra.mrb[0].mxu0 %v712
      %v923 = vpop.f32.mrb[0].mxu0
      %v924 = vadd.f32 0.0, %v923
      %v925 = vpop.f32.mrb[0].mxu0
      %926 = vmatprep.mubr.f32.mxu0 0.0
      %927 = vmatmul.mubr.f32.gmra.mrb[0].mxu0 %v715
      %v928 = vpop.f32.mrb[0].mxu0
      %v929 = vadd.f32 0.0, %v928
      %v930 = vpop.f32.mrb[0].mxu0
      %931 = vmatprep.mubr.f32.mxu0 0.0
      %932 = vmatmul.mubr.f32.gmra.mrb[0].mxu0 %v718
      %v933 = vpop.f32.mrb[0].mxu0
      %v934 = vadd.f32 0.0, %v933
      %v935 = vpop.f32.mrb[0].mxu0
      %936 = vmatprep.mubr.f32.mxu0 0.0
      %937 = vmatmul.mubr.f32.gmra.mrb[0].mxu0 %v721
      %v938 = vpop.f32.mrb[0].mxu0
      %v939 = vadd.f32 0.0, %v938
      %v940 = vpop.f32.mrb[0].mxu0
      %941 = vmatprep.mubr.f32.mxu0 0.0
      %942 = vmatmul.mubr.f32.gmra.mrb[0].mxu0 %v724
      %v943 = vpop.f32.mrb[0].mxu0
      %v944 = vadd.f32 0.0, %v943
      %v945 = vpop.f32.mrb[0].mxu0
      %946 = vmatprep.mubr.f32.mxu0 0.0
      %947 = vmatmul.mubr.f32.gmra.mrb[0].mxu0 %v727
      %v948 = vpop.f32.mrb[0].mxu0
      %v949 = vadd.f32 0.0, %v948
      %v950 = vpop.f32.mrb[0].mxu0
      %951 = vmatprep.mubr.f32.mxu0 0.0
      %952 = vmatmul.mubr.f32.gmra.mrb[0].mxu0 %v730
      %v953 = vpop.f32.mrb[0].mxu0
      %v954 = vadd.f32 0.0, %v953
      %v955 = vpop.f32.mrb[0].mxu0
      %956 = vdwg.mxu0
      %v957 = vld [vmem:[%s3] sm:$0xff]
      %v958 = vld [vmem:[%s3 + $0x8] sm:$0xff]
      %v959 = vld [vmem:[%s3 + $0x10] sm:$0xff]
      %v960 = vld [vmem:[%s3 + $0x18] sm:$0xff]
      %v961 = vld [vmem:[%s3 + $0x20] sm:$0xff]
      %v962 = vld [vmem:[%s3 + $0x28] sm:$0xff]
      %v963 = vld [vmem:[%s3 + $0x30] sm:$0xff]
      %v964 = vld [vmem:[%s3 + $0x38] sm:$0xff]
      %v965 = vlaneseq
      %v966 = vshrl.u32 %v965, 7
      %v967 = vsub.s32 0, %v966
      %v968 = vrot.slane %v373, %v967
      %v969 = vlaneseq
      %v970 = vshrl.u32 %v969, 7
      %v971 = vsub.s32 0, %v970
      %v972 = vrot.slane %v374, %v971
      %vm973 = vcmask 261120
      %v975 = vsel %vm973, %v799, 0
      %v978 = vsel %vm973, %v804, 0
      %v981 = vsel %vm973, %v809, 0
      %v984 = vsel %vm973, %v814, 0
      %v987 = vsel %vm973, %v819, 0
      %v990 = vsel %vm973, %v824, 0
      %v993 = vsel %vm973, %v829, 0
      %v996 = vsel %vm973, %v834, 0
      %v999 = vsel %vm973, %v839, 0
      %v1002 = vsel %vm973, %v844, 0
      %v1005 = vsel %vm973, %v849, 0
      %v1008 = vsel %vm973, %v854, 0
      %v1011 = vsel %vm973, %v859, 0
      %v1014 = vsel %vm973, %v864, 0
      %v1017 = vsel %vm973, %v869, 0
      %v1020 = vsel %vm973, %v874, 0
      %v1023 = vsel %vm973, %v879, 0
      %v1026 = vsel %vm973, %v884, 0
      %v1029 = vsel %vm973, %v889, 0
      %v1032 = vsel %vm973, %v894, 0
      %v1035 = vsel %vm973, %v899, 0
      %v1038 = vsel %vm973, %v904, 0
      %v1041 = vsel %vm973, %v909, 0
      %v1044 = vsel %vm973, %v914, 0
      %v1047 = vsel %vm973, %v919, 0
      %v1050 = vsel %vm973, %v924, 0
      %v1053 = vsel %vm973, %v929, 0
      %v1056 = vsel %vm973, %v934, 0
      %v1059 = vsel %vm973, %v939, 0
      %v1062 = vsel %vm973, %v944, 0
      %v1065 = vsel %vm973, %v949, 0
      %v1068 = vsel %vm973, %v954, 0
      %v1071 = vsel %vm973, %v324, 0
      %v1074 = vsel %vm973, %v325, 0
      %v1077 = vsel %vm973, %v326, 0
      %v1080 = vsel %vm973, %v327, 0
      %v1083 = vsel %vm973, %v328, 0
      %v1086 = vsel %vm973, %v329, 0
      %v1089 = vsel %vm973, %v330, 0
      %v1092 = vsel %vm973, %v331, 0
      %v1095 = vsel %vm973, %v332, 0
      %v1098 = vsel %vm973, %v333, 0
      %v1101 = vsel %vm973, %v334, 0
      %v1104 = vsel %vm973, %v335, 0
      %v1107 = vsel %vm973, %v336, 0
      %v1110 = vsel %vm973, %v337, 0
      %v1113 = vsel %vm973, %v338, 0
      %v1116 = vsel %vm973, %v339, 0
      %1118 = vmatprep.subr.mxu0 %v958
      %1119 = vmatpush1.msra.mxu0 %v957
      %1120 = vmatprep.subr.mxu0 %v960
      %1121 = vmatpush1.msra.mxu0 %v959
      %1122 = vmatprep.subr.mxu0 %v962
      %1123 = vmatpush1.msra.mxu0 %v961
      %1124 = vmatprep.subr.mxu0 %v964
      %1125 = vmatpush1.msra.mxu0 %v963
      %1126 = vmatprep.subr.mxu0 0.0
      %1127 = vmatpush1.msra.mxu0 0.0
      %1128 = vmatprep.subr.mxu0 0.0
      %1129 = vmatpush1.msra.mxu0 0.0
      %1130 = vmatprep.subr.mxu0 0.0
      %1131 = vmatpush1.msra.mxu0 0.0
      %1132 = vmatprep.subr.mxu0 0.0
      %1133 = vmatpush1.msra.mxu0 0.0
      %1134 = vmatprep.subr.mxu0 0.0
      %1135 = vmatpush1.msra.mxu0 0.0
      %1136 = vmatprep.subr.mxu0 0.0
      %1137 = vmatpush1.msra.mxu0 0.0
      %1138 = vmatprep.subr.mxu0 0.0
      %1139 = vmatpush1.msra.mxu0 0.0
      %1140 = vmatprep.subr.mxu0 0.0
      %1141 = vmatpush1.msra.mxu0 0.0
      %1142 = vmatprep.subr.mxu0 0.0
      %1143 = vmatpush1.msra.mxu0 0.0
      %1144 = vmatprep.subr.mxu0 0.0
      %1145 = vmatpush1.msra.mxu0 0.0
      %1146 = vmatprep.subr.mxu0 0.0
      %1147 = vmatpush1.msra.mxu0 0.0
      %1148 = vmatprep.subr.mxu0 0.0
      %1149 = vmatpush1.msra.mxu0 0.0
      %1150 = vmatprep.subr.mxu0 0.0
      %1151 = vmatpush1.msra.mxu0 0.0
      %1152 = vmatprep.subr.mxu0 0.0
      %1153 = vmatpush1.msra.mxu0 0.0
      %1154 = vmatprep.subr.mxu0 0.0
      %1155 = vmatpush1.msra.mxu0 0.0
      %1156 = vmatprep.subr.mxu0 0.0
      %1157 = vmatpush1.msra.mxu0 0.0
      %1158 = vmatprep.subr.mxu0 0.0
      %1159 = vmatpush1.msra.mxu0 0.0
      %1160 = vmatprep.subr.mxu0 0.0
      %1161 = vmatpush1.msra.mxu0 0.0
      %1162 = vmatprep.subr.mxu0 0.0
      %1163 = vmatpush1.msra.mxu0 0.0
      %1164 = vmatprep.subr.mxu0 0.0
      %1165 = vmatpush1.msra.mxu0 0.0
      %1166 = vmatprep.subr.mxu0 0.0
      %1167 = vmatpush1.msra.mxu0 0.0
      %1168 = vmatprep.subr.mxu0 0.0
      %1169 = vmatpush1.msra.mxu0 0.0
      %1170 = vmatprep.subr.mxu0 0.0
      %1171 = vmatpush1.msra.mxu0 0.0
      %1172 = vmatprep.subr.mxu0 0.0
      %1173 = vmatpush1.msra.mxu0 0.0
      %1174 = vmatprep.subr.mxu0 0.0
      %1175 = vmatpush1.msra.mxu0 0.0
      %1176 = vmatprep.subr.mxu0 0.0
      %1177 = vmatpush1.msra.mxu0 0.0
      %1178 = vmatprep.subr.mxu0 0.0
      %1179 = vmatpush1.msra.mxu0 0.0
      %1180 = vmatprep.subr.mxu0 0.0
      %1181 = vmatpush1.msra.mxu0 0.0
      %1182 = vmatprep.mubr.f32.mxu0 0.0
      %1183 = vmatmul.mubr.f32.gmra.mrb[0].mxu0 %v975
      %v1184 = vpop.f32.mrb[0].mxu0
      %v1185 = vadd.f32 %v968, %v1184
      %v1186 = vpop.f32.mrb[0].mxu0
      %v1187 = vadd.f32 %v972, %v1186
      %1188 = vmatprep.mubr.f32.mxu0 0.0
      %1189 = vmatmul.mubr.f32.gmra.mrb[0].mxu0 %v978
      %v1190 = vpop.f32.mrb[0].mxu0
      %v1191 = vadd.f32 %v968, %v1190
      %v1192 = vpop.f32.mrb[0].mxu0
      %v1193 = vadd.f32 %v972, %v1192
      %1194 = vmatprep.mubr.f32.mxu0 0.0
      %1195 = vmatmul.mubr.f32.gmra.mrb[0].mxu0 %v981
      %v1196 = vpop.f32.mrb[0].mxu0
      %v1197 = vadd.f32 %v968, %v1196
      %v1198 = vpop.f32.mrb[0].mxu0
      %v1199 = vadd.f32 %v972, %v1198
      %1200 = vmatprep.mubr.f32.mxu0 0.0
      %1201 = vmatmul.mubr.f32.gmra.mrb[0].mxu0 %v984
      %v1202 = vpop.f32.mrb[0].mxu0
      %v1203 = vadd.f32 %v968, %v1202
      %v1204 = vpop.f32.mrb[0].mxu0
      %v1205 = vadd.f32 %v972, %v1204
      %1206 = vmatprep.mubr.f32.mxu0 0.0
      %1207 = vmatmul.mubr.f32.gmra.mrb[0].mxu0 %v987
      %v1208 = vpop.f32.mrb[0].mxu0
      %v1209 = vadd.f32 %v968, %v1208
      %v1210 = vpop.f32.mrb[0].mxu0
      %v1211 = vadd.f32 %v972, %v1210
      %1212 = vmatprep.mubr.f32.mxu0 0.0
      %1213 = vmatmul.mubr.f32.gmra.mrb[0].mxu0 %v990
      %v1214 = vpop.f32.mrb[0].mxu0
      %v1215 = vadd.f32 %v968, %v1214
      %v1216 = vpop.f32.mrb[0].mxu0
      %v1217 = vadd.f32 %v972, %v1216
      %1218 = vmatprep.mubr.f32.mxu0 0.0
      %1219 = vmatmul.mubr.f32.gmra.mrb[0].mxu0 %v993
      %v1220 = vpop.f32.mrb[0].mxu0
      %v1221 = vadd.f32 %v968, %v1220
      %v1222 = vpop.f32.mrb[0].mxu0
      %v1223 = vadd.f32 %v972, %v1222
      %1224 = vmatprep.mubr.f32.mxu0 0.0
      %1225 = vmatmul.mubr.f32.gmra.mrb[0].mxu0 %v996
      %v1226 = vpop.f32.mrb[0].mxu0
      %v1227 = vadd.f32 %v968, %v1226
      %v1228 = vpop.f32.mrb[0].mxu0
      %v1229 = vadd.f32 %v972, %v1228
      %1230 = vmatprep.mubr.f32.mxu0 0.0
      %1231 = vmatmul.mubr.f32.gmra.mrb[0].mxu0 %v999
      %v1232 = vpop.f32.mrb[0].mxu0
      %v1233 = vadd.f32 %v968, %v1232
      %v1234 = vpop.f32.mrb[0].mxu0
      %v1235 = vadd.f32 %v972, %v1234
      %1236 = vmatprep.mubr.f32.mxu0 0.0
      %1237 = vmatmul.mubr.f32.gmra.mrb[0].mxu0 %v1002
      %v1238 = vpop.f32.mrb[0].mxu0
      %v1239 = vadd.f32 %v968, %v1238
      %v1240 = vpop.f32.mrb[0].mxu0
      %v1241 = vadd.f32 %v972, %v1240
      %1242 = vmatprep.mubr.f32.mxu0 0.0
      %1243 = vmatmul.mubr.f32.gmra.mrb[0].mxu0 %v1005
      %v1244 = vpop.f32.mrb[0].mxu0
      %v1245 = vadd.f32 %v968, %v1244
      %v1246 = vpop.f32.mrb[0].mxu0
      %v1247 = vadd.f32 %v972, %v1246
      %1248 = vmatprep.mubr.f32.mxu0 0.0
      %1249 = vmatmul.mubr.f32.gmra.mrb[0].mxu0 %v1008
      %v1250 = vpop.f32.mrb[0].mxu0
      %v1251 = vadd.f32 %v968, %v1250
      %v1252 = vpop.f32.mrb[0].mxu0
      %v1253 = vadd.f32 %v972, %v1252
      %1254 = vmatprep.mubr.f32.mxu0 0.0
      %1255 = vmatmul.mubr.f32.gmra.mrb[0].mxu0 %v1011
      %v1256 = vpop.f32.mrb[0].mxu0
      %v1257 = vadd.f32 %v968, %v1256
      %v1258 = vpop.f32.mrb[0].mxu0
      %v1259 = vadd.f32 %v972, %v1258
      %1260 = vmatprep.mubr.f32.mxu0 0.0
      %1261 = vmatmul.mubr.f32.gmra.mrb[0].mxu0 %v1014
      %v1262 = vpop.f32.mrb[0].mxu0
      %v1263 = vadd.f32 %v968, %v1262
      %v1264 = vpop.f32.mrb[0].mxu0
      %v1265 = vadd.f32 %v972, %v1264
      %1266 = vmatprep.mubr.f32.mxu0 0.0
      %1267 = vmatmul.mubr.f32.gmra.mrb[0].mxu0 %v1017
      %v1268 = vpop.f32.mrb[0].mxu0
      %v1269 = vadd.f32 %v968, %v1268
      %v1270 = vpop.f32.mrb[0].mxu0
      %v1271 = vadd.f32 %v972, %v1270
      %1272 = vmatprep.mubr.f32.mxu0 0.0
      %1273 = vmatmul.mubr.f32.gmra.mrb[0].mxu0 %v1020
      %v1274 = vpop.f32.mrb[0].mxu0
      %v1275 = vadd.f32 %v968, %v1274
      %v1276 = vpop.f32.mrb[0].mxu0
      %v1277 = vadd.f32 %v972, %v1276
      %1278 = vmatprep.mubr.f32.mxu0 0.0
      %1279 = vmatmul.mubr.f32.gmra.mrb[0].mxu0 %v1023
      %v1280 = vpop.f32.mrb[0].mxu0
      %v1281 = vadd.f32 %v968, %v1280
      %v1282 = vpop.f32.mrb[0].mxu0
      %v1283 = vadd.f32 %v972, %v1282
      %1284 = vmatprep.mubr.f32.mxu0 0.0
      %1285 = vmatmul.mubr.f32.gmra.mrb[0].mxu0 %v1026
      %v1286 = vpop.f32.mrb[0].mxu0
      %v1287 = vadd.f32 %v968, %v1286
      %v1288 = vpop.f32.mrb[0].mxu0
      %v1289 = vadd.f32 %v972, %v1288
      %1290 = vmatprep.mubr.f32.mxu0 0.0
      %1291 = vmatmul.mubr.f32.gmra.mrb[0].mxu0 %v1029
      %v1292 = vpop.f32.mrb[0].mxu0
      %v1293 = vadd.f32 %v968, %v1292
      %v1294 = vpop.f32.mrb[0].mxu0
      %v1295 = vadd.f32 %v972, %v1294
      %1296 = vmatprep.mubr.f32.mxu0 0.0
      %1297 = vmatmul.mubr.f32.gmra.mrb[0].mxu0 %v1032
      %v1298 = vpop.f32.mrb[0].mxu0
      %v1299 = vadd.f32 %v968, %v1298
      %v1300 = vpop.f32.mrb[0].mxu0
      %v1301 = vadd.f32 %v972, %v1300
      %1302 = vmatprep.mubr.f32.mxu0 0.0
      %1303 = vmatmul.mubr.f32.gmra.mrb[0].mxu0 %v1035
      %v1304 = vpop.f32.mrb[0].mxu0
      %v1305 = vadd.f32 %v968, %v1304
      %v1306 = vpop.f32.mrb[0].mxu0
      %v1307 = vadd.f32 %v972, %v1306
      %1308 = vmatprep.mubr.f32.mxu0 0.0
      %1309 = vmatmul.mubr.f32.gmra.mrb[0].mxu0 %v1038
      %v1310 = vpop.f32.mrb[0].mxu0
      %v1311 = vadd.f32 %v968, %v1310
      %v1312 = vpop.f32.mrb[0].mxu0
      %v1313 = vadd.f32 %v972, %v1312
      %1314 = vmatprep.mubr.f32.mxu0 0.0
      %1315 = vmatmul.mubr.f32.gmra.mrb[0].mxu0 %v1041
      %v1316 = vpop.f32.mrb[0].mxu0
      %v1317 = vadd.f32 %v968, %v1316
      %v1318 = vpop.f32.mrb[0].mxu0
      %v1319 = vadd.f32 %v972, %v1318
      %1320 = vmatprep.mubr.f32.mxu0 0.0
      %1321 = vmatmul.mubr.f32.gmra.mrb[0].mxu0 %v1044
      %v1322 = vpop.f32.mrb[0].mxu0
      %v1323 = vadd.f32 %v968, %v1322
      %v1324 = vpop.f32.mrb[0].mxu0
      %v1325 = vadd.f32 %v972, %v1324
      %1326 = vmatprep.mubr.f32.mxu0 0.0
      %1327 = vmatmul.mubr.f32.gmra.mrb[0].mxu0 %v1047
      %v1328 = vpop.f32.mrb[0].mxu0
      %v1329 = vadd.f32 %v968, %v1328
      %v1330 = vpop.f32.mrb[0].mxu0
      %v1331 = vadd.f32 %v972, %v1330
      %1332 = vmatprep.mubr.f32.mxu0 0.0
      %1333 = vmatmul.mubr.f32.gmra.mrb[0].mxu0 %v1050
      %v1334 = vpop.f32.mrb[0].mxu0
      %v1335 = vadd.f32 %v968, %v1334
      %v1336 = vpop.f32.mrb[0].mxu0
      %v1337 = vadd.f32 %v972, %v1336
      %1338 = vmatprep.mubr.f32.mxu0 0.0
      %1339 = vmatmul.mubr.f32.gmra.mrb[0].mxu0 %v1053
      %v1340 = vpop.f32.mrb[0].mxu0
      %v1341 = vadd.f32 %v968, %v1340
      %v1342 = vpop.f32.mrb[0].mxu0
      %v1343 = vadd.f32 %v972, %v1342
      %1344 = vmatprep.mubr.f32.mxu0 0.0
      %1345 = vmatmul.mubr.f32.gmra.mrb[0].mxu0 %v1056
      %v1346 = vpop.f32.mrb[0].mxu0
      %v1347 = vadd.f32 %v968, %v1346
      %v1348 = vpop.f32.mrb[0].mxu0
      %v1349 = vadd.f32 %v972, %v1348
      %1350 = vmatprep.mubr.f32.mxu0 0.0
      %1351 = vmatmul.mubr.f32.gmra.mrb[0].mxu0 %v1059
      %v1352 = vpop.f32.mrb[0].mxu0
      %v1353 = vadd.f32 %v968, %v1352
      %v1354 = vpop.f32.mrb[0].mxu0
      %v1355 = vadd.f32 %v972, %v1354
      %1356 = vmatprep.mubr.f32.mxu0 0.0
      %1357 = vmatmul.mubr.f32.gmra.mrb[0].mxu0 %v1062
      %v1358 = vpop.f32.mrb[0].mxu0
      %v1359 = vadd.f32 %v968, %v1358
      %v1360 = vpop.f32.mrb[0].mxu0
      %v1361 = vadd.f32 %v972, %v1360
      %1362 = vmatprep.mubr.f32.mxu0 0.0
      %1363 = vmatmul.mubr.f32.gmra.mrb[0].mxu0 %v1065
      %v1364 = vpop.f32.mrb[0].mxu0
      %v1365 = vadd.f32 %v968, %v1364
      %v1366 = vpop.f32.mrb[0].mxu0
      %v1367 = vadd.f32 %v972, %v1366
      %1368 = vmatprep.mubr.f32.mxu0 0.0
      %1369 = vmatmul.mubr.f32.gmra.mrb[0].mxu0 %v1068
      %v1370 = vpop.f32.mrb[0].mxu0
      %v1371 = vadd.f32 %v968, %v1370
      %v1372 = vpop.f32.mrb[0].mxu0
      %v1373 = vadd.f32 %v972, %v1372
      %1374 = vmatprep.mubr.f32.mxu0 0.0
      %1375 = vmatmul.mubr.f32.gmra.mrb[0].mxu0 %v1071
      %v1376 = vpop.f32.mrb[0].mxu0
      %v1377 = vadd.f32 %v968, %v1376
      %v1378 = vpop.f32.mrb[0].mxu0
      %v1379 = vadd.f32 %v972, %v1378
      %1380 = vmatprep.mubr.f32.mxu0 0.0
      %1381 = vmatmul.mubr.f32.gmra.mrb[0].mxu0 %v1074
      %v1382 = vpop.f32.mrb[0].mxu0
      %v1383 = vadd.f32 %v968, %v1382
      %v1384 = vpop.f32.mrb[0].mxu0
      %v1385 = vadd.f32 %v972, %v1384
      %1386 = vmatprep.mubr.f32.mxu0 0.0
      %1387 = vmatmul.mubr.f32.gmra.mrb[0].mxu0 %v1077
      %v1388 = vpop.f32.mrb[0].mxu0
      %v1389 = vadd.f32 %v968, %v1388
      %v1390 = vpop.f32.mrb[0].mxu0
      %v1391 = vadd.f32 %v972, %v1390
      %1392 = vmatprep.mubr.f32.mxu0 0.0
      %1393 = vmatmul.mubr.f32.gmra.mrb[0].mxu0 %v1080
      %v1394 = vpop.f32.mrb[0].mxu0
      %v1395 = vadd.f32 %v968, %v1394
      %v1396 = vpop.f32.mrb[0].mxu0
      %v1397 = vadd.f32 %v972, %v1396
      %1398 = vmatprep.mubr.f32.mxu0 0.0
      %1399 = vmatmul.mubr.f32.gmra.mrb[0].mxu0 %v1083
      %v1400 = vpop.f32.mrb[0].mxu0
      %v1401 = vadd.f32 %v968, %v1400
      %v1402 = vpop.f32.mrb[0].mxu0
      %v1403 = vadd.f32 %v972, %v1402
      %1404 = vmatprep.mubr.f32.mxu0 0.0
      %1405 = vmatmul.mubr.f32.gmra.mrb[0].mxu0 %v1086
      %v1406 = vpop.f32.mrb[0].mxu0
      %v1407 = vadd.f32 %v968, %v1406
      %v1408 = vpop.f32.mrb[0].mxu0
      %v1409 = vadd.f32 %v972, %v1408
      %1410 = vmatprep.mubr.f32.mxu0 0.0
      %1411 = vmatmul.mubr.f32.gmra.mrb[0].mxu0 %v1089
      %v1412 = vpop.f32.mrb[0].mxu0
      %v1413 = vadd.f32 %v968, %v1412
      %v1414 = vpop.f32.mrb[0].mxu0
      %v1415 = vadd.f32 %v972, %v1414
      %1416 = vmatprep.mubr.f32.mxu0 0.0
      %1417 = vmatmul.mubr.f32.gmra.mrb[0].mxu0 %v1092
      %v1418 = vpop.f32.mrb[0].mxu0
      %v1419 = vadd.f32 %v968, %v1418
      %v1420 = vpop.f32.mrb[0].mxu0
      %v1421 = vadd.f32 %v972, %v1420
      %1422 = vmatprep.mubr.f32.mxu0 0.0
      %1423 = vmatmul.mubr.f32.gmra.mrb[0].mxu0 %v1095
      %v1424 = vpop.f32.mrb[0].mxu0
      %v1425 = vadd.f32 %v968, %v1424
      %v1426 = vpop.f32.mrb[0].mxu0
      %v1427 = vadd.f32 %v972, %v1426
      %1428 = vmatprep.mubr.f32.mxu0 0.0
      %1429 = vmatmul.mubr.f32.gmra.mrb[0].mxu0 %v1098
      %v1430 = vpop.f32.mrb[0].mxu0
      %v1431 = vadd.f32 %v968, %v1430
      %v1432 = vpop.f32.mrb[0].mxu0
      %v1433 = vadd.f32 %v972, %v1432
      %1434 = vmatprep.mubr.f32.mxu0 0.0
      %1435 = vmatmul.mubr.f32.gmra.mrb[0].mxu0 %v1101
      %v1436 = vpop.f32.mrb[0].mxu0
      %v1437 = vadd.f32 %v968, %v1436
      %v1438 = vpop.f32.mrb[0].mxu0
      %v1439 = vadd.f32 %v972, %v1438
      %1440 = vmatprep.mubr.f32.mxu0 0.0
      %1441 = vmatmul.mubr.f32.gmra.mrb[0].mxu0 %v1104
      %v1442 = vpop.f32.mrb[0].mxu0
      %v1443 = vadd.f32 %v968, %v1442
      %v1444 = vpop.f32.mrb[0].mxu0
      %v1445 = vadd.f32 %v972, %v1444
      %1446 = vmatprep.mubr.f32.mxu0 0.0
      %1447 = vmatmul.mubr.f32.gmra.mrb[0].mxu0 %v1107
      %v1448 = vpop.f32.mrb[0].mxu0
      %v1449 = vadd.f32 %v968, %v1448
      %v1450 = vpop.f32.mrb[0].mxu0
      %v1451 = vadd.f32 %v972, %v1450
      %1452 = vmatprep.mubr.f32.mxu0 0.0
      %1453 = vmatmul.mubr.f32.gmra.mrb[0].mxu0 %v1110
      %v1454 = vpop.f32.mrb[0].mxu0
      %v1455 = vadd.f32 %v968, %v1454
      %v1456 = vpop.f32.mrb[0].mxu0
      %v1457 = vadd.f32 %v972, %v1456
      %1458 = vmatprep.mubr.f32.mxu0 0.0
      %1459 = vmatmul.mubr.f32.gmra.mrb[0].mxu0 %v1113
      %v1460 = vpop.f32.mrb[0].mxu0
      %v1461 = vadd.f32 %v968, %v1460
      %v1462 = vpop.f32.mrb[0].mxu0
      %v1463 = vadd.f32 %v972, %v1462
      %1464 = vmatprep.mubr.f32.mxu0 0.0
      %1465 = vmatmul.mubr.f32.gmra.mrb[0].mxu0 %v1116
      %v1466 = vpop.f32.mrb[0].mxu0
      %v1467 = vadd.f32 %v968, %v1466
      %v1468 = vpop.f32.mrb[0].mxu0
      %v1469 = vadd.f32 %v972, %v1468
      %1470 = vdwg.mxu0
      %1487 = vrot.lane.b32.xlu0 %v1379, 126
      %v1488 = vpop.permute.xlu0 %1487
      %1489 = vrot.lane.b32.xlu0 %v1385, 126
      %v1490 = vpop.permute.xlu0 %1489
      %1491 = vrot.lane.b32.xlu0 %v1391, 126
      %v1492 = vpop.permute.xlu0 %1491
      %1493 = vrot.lane.b32.xlu0 %v1397, 126
      %v1494 = vpop.permute.xlu0 %1493
      %1495 = vrot.lane.b32.xlu0 %v1403, 126
      %v1496 = vpop.permute.xlu0 %1495
      %1497 = vrot.lane.b32.xlu0 %v1409, 126
      %v1498 = vpop.permute.xlu0 %1497
      %1499 = vrot.lane.b32.xlu0 %v1415, 126
      %v1500 = vpop.permute.xlu0 %1499
      %1501 = vrot.lane.b32.xlu0 %v1421, 126
      %v1502 = vpop.permute.xlu0 %1501
      %1503 = vrot.lane.b32.xlu0 %v1427, 126
      %v1504 = vpop.permute.xlu0 %1503
      %1505 = vrot.lane.b32.xlu0 %v1433, 126
      %v1506 = vpop.permute.xlu0 %1505
      %1507 = vrot.lane.b32.xlu0 %v1439, 126
      %v1508 = vpop.permute.xlu0 %1507
      %1509 = vrot.lane.b32.xlu0 %v1445, 126
      %v1510 = vpop.permute.xlu0 %1509
      %1511 = vrot.lane.b32.xlu0 %v1451, 126
      %v1512 = vpop.permute.xlu0 %1511
      %1513 = vrot.lane.b32.xlu0 %v1457, 126
      %v1514 = vpop.permute.xlu0 %1513
      %1515 = vrot.lane.b32.xlu0 %v1463, 126
      %v1516 = vpop.permute.xlu0 %1515
      %1517 = vrot.lane.b32.xlu0 %v1469, 126
      %v1518 = vpop.permute.xlu0 %1517
      %v1535 = vadd.f32 %v1187, %v1488
      %v1536 = vadd.f32 %v1193, %v1490
      %v1537 = vadd.f32 %v1199, %v1492
      %v1538 = vadd.f32 %v1205, %v1494
      %v1539 = vadd.f32 %v1211, %v1496
      %v1540 = vadd.f32 %v1217, %v1498
      %v1541 = vadd.f32 %v1223, %v1500
      %v1542 = vadd.f32 %v1229, %v1502
      %v1543 = vadd.f32 %v1235, %v1504
      %v1544 = vadd.f32 %v1241, %v1506
      %v1545 = vadd.f32 %v1247, %v1508
      %v1546 = vadd.f32 %v1253, %v1510
      %v1547 = vadd.f32 %v1259, %v1512
      %v1548 = vadd.f32 %v1265, %v1514
      %v1549 = vadd.f32 %v1271, %v1516
      %v1550 = vadd.f32 %v1277, %v1518
      %vm1551 = vcmp.ge.f32.partialorder %v1535, 0.0
      %vm1552 = vcmp.ge.f32.partialorder %v1536, 0.0
      %vm1553 = vcmp.ge.f32.partialorder %v1537, 0.0
      %vm1554 = vcmp.ge.f32.partialorder %v1538, 0.0
      %vm1555 = vcmp.ge.f32.partialorder %v1539, 0.0
      %vm1556 = vcmp.ge.f32.partialorder %v1540, 0.0
      %vm1557 = vcmp.ge.f32.partialorder %v1541, 0.0
      %vm1558 = vcmp.ge.f32.partialorder %v1542, 0.0
      %vm1559 = vcmp.ge.f32.partialorder %v1543, 0.0
      %vm1560 = vcmp.ge.f32.partialorder %v1544, 0.0
      %vm1561 = vcmp.ge.f32.partialorder %v1545, 0.0
      %vm1562 = vcmp.ge.f32.partialorder %v1546, 0.0
      %vm1563 = vcmp.ge.f32.partialorder %v1547, 0.0
      %vm1564 = vcmp.ge.f32.partialorder %v1548, 0.0
      %vm1565 = vcmp.ge.f32.partialorder %v1549, 0.0
      %vm1566 = vcmp.ge.f32.partialorder %v1550, 0.0
      %v1567 = vmul.f32 %v1535, 0.2
      %v1568 = vmul.f32 %v1536, 0.2
      %v1569 = vmul.f32 %v1537, 0.2
      %v1570 = vmul.f32 %v1538, 0.2
      %v1571 = vmul.f32 %v1539, 0.2
      %v1572 = vmul.f32 %v1540, 0.2
      %v1573 = vmul.f32 %v1541, 0.2
      %v1574 = vmul.f32 %v1542, 0.2
      %v1575 = vmul.f32 %v1543, 0.2
      %v1576 = vmul.f32 %v1544, 0.2
      %v1577 = vmul.f32 %v1545, 0.2
      %v1578 = vmul.f32 %v1546, 0.2
      %v1579 = vmul.f32 %v1547, 0.2
      %v1580 = vmul.f32 %v1548, 0.2
      %v1581 = vmul.f32 %v1549, 0.2
      %v1582 = vmul.f32 %v1550, 0.2
      %v1583 = vsel %vm1551, %v1535, %v1567
      %v1584 = vsel %vm1552, %v1536, %v1568
      %v1585 = vsel %vm1553, %v1537, %v1569
      %v1586 = vsel %vm1554, %v1538, %v1570
      %v1587 = vsel %vm1555, %v1539, %v1571
      %v1588 = vsel %vm1556, %v1540, %v1572
      %v1589 = vsel %vm1557, %v1541, %v1573
      %v1590 = vsel %vm1558, %v1542, %v1574
      %v1591 = vsel %vm1559, %v1543, %v1575
      %v1592 = vsel %vm1560, %v1544, %v1576
      %v1593 = vsel %vm1561, %v1545, %v1577
      %v1594 = vsel %vm1562, %v1546, %v1578
      %v1595 = vsel %vm1563, %v1547, %v1579
      %v1596 = vsel %vm1564, %v1548, %v1580
      %v1597 = vsel %vm1565, %v1549, %v1581
      %v1598 = vsel %vm1566, %v1550, %v1582
      %1599 = vrot.lane.b32.xlu0 %v1379, 127
      %v1600 = vpop.permute.xlu0 %1599
      %1601 = vrot.lane.b32.xlu0 %v1385, 127
      %v1602 = vpop.permute.xlu0 %1601
      %1603 = vrot.lane.b32.xlu0 %v1391, 127
      %v1604 = vpop.permute.xlu0 %1603
      %1605 = vrot.lane.b32.xlu0 %v1397, 127
      %v1606 = vpop.permute.xlu0 %1605
      %1607 = vrot.lane.b32.xlu0 %v1403, 127
      %v1608 = vpop.permute.xlu0 %1607
      %1609 = vrot.lane.b32.xlu0 %v1409, 127
      %v1610 = vpop.permute.xlu0 %1609
      %1611 = vrot.lane.b32.xlu0 %v1415, 127
      %v1612 = vpop.permute.xlu0 %1611
      %1613 = vrot.lane.b32.xlu0 %v1421, 127
      %v1614 = vpop.permute.xlu0 %1613
      %1615 = vrot.lane.b32.xlu0 %v1427, 127
      %v1616 = vpop.permute.xlu0 %1615
      %1617 = vrot.lane.b32.xlu0 %v1433, 127
      %v1618 = vpop.permute.xlu0 %1617
      %1619 = vrot.lane.b32.xlu0 %v1439, 127
      %v1620 = vpop.permute.xlu0 %1619
      %1621 = vrot.lane.b32.xlu0 %v1445, 127
      %v1622 = vpop.permute.xlu0 %1621
      %1623 = vrot.lane.b32.xlu0 %v1451, 127
      %v1624 = vpop.permute.xlu0 %1623
      %1625 = vrot.lane.b32.xlu0 %v1457, 127
      %v1626 = vpop.permute.xlu0 %1625
      %1627 = vrot.lane.b32.xlu0 %v1463, 127
      %v1628 = vpop.permute.xlu0 %1627
      %1629 = vrot.lane.b32.xlu0 %v1469, 127
      %v1630 = vpop.permute.xlu0 %1629
      %v1647 = vadd.f32 %v1283, %v1600
      %v1648 = vadd.f32 %v1289, %v1602
      %v1649 = vadd.f32 %v1295, %v1604
      %v1650 = vadd.f32 %v1301, %v1606
      %v1651 = vadd.f32 %v1307, %v1608
      %v1652 = vadd.f32 %v1313, %v1610
      %v1653 = vadd.f32 %v1319, %v1612
      %v1654 = vadd.f32 %v1325, %v1614
      %v1655 = vadd.f32 %v1331, %v1616
      %v1656 = vadd.f32 %v1337, %v1618
      %v1657 = vadd.f32 %v1343, %v1620
      %v1658 = vadd.f32 %v1349, %v1622
      %v1659 = vadd.f32 %v1355, %v1624
      %v1660 = vadd.f32 %v1361, %v1626
      %v1661 = vadd.f32 %v1367, %v1628
      %v1662 = vadd.f32 %v1373, %v1630
      %vm1663 = vcmp.ge.f32.partialorder %v1647, 0.0
      %vm1664 = vcmp.ge.f32.partialorder %v1648, 0.0
      %vm1665 = vcmp.ge.f32.partialorder %v1649, 0.0
      %vm1666 = vcmp.ge.f32.partialorder %v1650, 0.0
      %vm1667 = vcmp.ge.f32.partialorder %v1651, 0.0
      %vm1668 = vcmp.ge.f32.partialorder %v1652, 0.0
      %vm1669 = vcmp.ge.f32.partialorder %v1653, 0.0
      %vm1670 = vcmp.ge.f32.partialorder %v1654, 0.0
      %vm1671 = vcmp.ge.f32.partialorder %v1655, 0.0
      %vm1672 = vcmp.ge.f32.partialorder %v1656, 0.0
      %vm1673 = vcmp.ge.f32.partialorder %v1657, 0.0
      %vm1674 = vcmp.ge.f32.partialorder %v1658, 0.0
      %vm1675 = vcmp.ge.f32.partialorder %v1659, 0.0
      %vm1676 = vcmp.ge.f32.partialorder %v1660, 0.0
      %vm1677 = vcmp.ge.f32.partialorder %v1661, 0.0
      %vm1678 = vcmp.ge.f32.partialorder %v1662, 0.0
      %v1679 = vmul.f32 %v1647, 0.2
      %v1680 = vmul.f32 %v1648, 0.2
      %v1681 = vmul.f32 %v1649, 0.2
      %v1682 = vmul.f32 %v1650, 0.2
      %v1683 = vmul.f32 %v1651, 0.2
      %v1684 = vmul.f32 %v1652, 0.2
      %v1685 = vmul.f32 %v1653, 0.2
      %v1686 = vmul.f32 %v1654, 0.2
      %v1687 = vmul.f32 %v1655, 0.2
      %v1688 = vmul.f32 %v1656, 0.2
      %v1689 = vmul.f32 %v1657, 0.2
      %v1690 = vmul.f32 %v1658, 0.2
      %v1691 = vmul.f32 %v1659, 0.2
      %v1692 = vmul.f32 %v1660, 0.2
      %v1693 = vmul.f32 %v1661, 0.2
      %v1694 = vmul.f32 %v1662, 0.2
      %v1695 = vsel %vm1663, %v1647, %v1679
      %v1696 = vsel %vm1664, %v1648, %v1680
      %v1697 = vsel %vm1665, %v1649, %v1681
      %v1698 = vsel %vm1666, %v1650, %v1682
      %v1699 = vsel %vm1667, %v1651, %v1683
      %v1700 = vsel %vm1668, %v1652, %v1684
      %v1701 = vsel %vm1669, %v1653, %v1685
      %v1702 = vsel %vm1670, %v1654, %v1686
      %v1703 = vsel %vm1671, %v1655, %v1687
      %v1704 = vsel %vm1672, %v1656, %v1688
      %v1705 = vsel %vm1673, %v1657, %v1689
      %v1706 = vsel %vm1674, %v1658, %v1690
      %v1707 = vsel %vm1675, %v1659, %v1691
      %v1708 = vsel %vm1676, %v1660, %v1692
      %v1709 = vsel %vm1677, %v1661, %v1693
      %v1710 = vsel %vm1678, %v1662, %v1694
      %1727 = vrot.lane.b32.xlu0 %v1695, 127
      %v1728 = vpop.permute.xlu0 %1727
      %1729 = vrot.lane.b32.xlu0 %v1696, 127
      %v1730 = vpop.permute.xlu0 %1729
      %1731 = vrot.lane.b32.xlu0 %v1697, 127
      %v1732 = vpop.permute.xlu0 %1731
      %1733 = vrot.lane.b32.xlu0 %v1698, 127
      %v1734 = vpop.permute.xlu0 %1733
      %1735 = vrot.lane.b32.xlu0 %v1699, 127
      %v1736 = vpop.permute.xlu0 %1735
      %1737 = vrot.lane.b32.xlu0 %v1700, 127
      %v1738 = vpop.permute.xlu0 %1737
      %1739 = vrot.lane.b32.xlu0 %v1701, 127
      %v1740 = vpop.permute.xlu0 %1739
      %1741 = vrot.lane.b32.xlu0 %v1702, 127
      %v1742 = vpop.permute.xlu0 %1741
      %1743 = vrot.lane.b32.xlu0 %v1703, 127
      %v1744 = vpop.permute.xlu0 %1743
      %1745 = vrot.lane.b32.xlu0 %v1704, 127
      %v1746 = vpop.permute.xlu0 %1745
      %1747 = vrot.lane.b32.xlu0 %v1705, 127
      %v1748 = vpop.permute.xlu0 %1747
      %1749 = vrot.lane.b32.xlu0 %v1706, 127
      %v1750 = vpop.permute.xlu0 %1749
      %1751 = vrot.lane.b32.xlu0 %v1707, 127
      %v1752 = vpop.permute.xlu0 %1751
      %1753 = vrot.lane.b32.xlu0 %v1708, 127
      %v1754 = vpop.permute.xlu0 %1753
      %1755 = vrot.lane.b32.xlu0 %v1709, 127
      %v1756 = vpop.permute.xlu0 %1755
      %1757 = vrot.lane.b32.xlu0 %v1710, 127
      %v1758 = vpop.permute.xlu0 %1757
      %v1775 = vmax.f32 %v1583, %v1728
      %v1776 = vmax.f32 %v1584, %v1730
      %v1777 = vmax.f32 %v1585, %v1732
      %v1778 = vmax.f32 %v1586, %v1734
      %v1779 = vmax.f32 %v1587, %v1736
      %v1780 = vmax.f32 %v1588, %v1738
      %v1781 = vmax.f32 %v1589, %v1740
      %v1782 = vmax.f32 %v1590, %v1742
      %v1783 = vmax.f32 %v1591, %v1744
      %v1784 = vmax.f32 %v1592, %v1746
      %v1785 = vmax.f32 %v1593, %v1748
      %v1786 = vmax.f32 %v1594, %v1750
      %v1787 = vmax.f32 %v1595, %v1752
      %v1788 = vmax.f32 %v1596, %v1754
      %v1789 = vmax.f32 %v1597, %v1756
      %v1790 = vmax.f32 %v1598, %v1758
      %v1791 = vsub.f32 %v1583, %v1775
      %v1792 = vsub.f32 %v1584, %v1776
      %v1793 = vsub.f32 %v1585, %v1777
      %v1794 = vsub.f32 %v1586, %v1778
      %v1795 = vsub.f32 %v1587, %v1779
      %v1796 = vsub.f32 %v1588, %v1780
      %v1797 = vsub.f32 %v1589, %v1781
      %v1798 = vsub.f32 %v1590, %v1782
      %v1799 = vsub.f32 %v1591, %v1783
      %v1800 = vsub.f32 %v1592, %v1784
      %v1801 = vsub.f32 %v1593, %v1785
      %v1802 = vsub.f32 %v1594, %v1786
      %v1803 = vsub.f32 %v1595, %v1787
      %v1804 = vsub.f32 %v1596, %v1788
      %v1805 = vsub.f32 %v1597, %v1789
      %v1806 = vsub.f32 %v1598, %v1790
      %v1807 = vmul.f32 %v1791, 1.442695
      %v1808 = vpow.pop %v1807
      %v1809 = vmul.f32 %v1792, 1.442695
      %v1810 = vpow.pop %v1809
      %v1811 = vmul.f32 %v1793, 1.442695
      %v1812 = vpow.pop %v1811
      %v1813 = vmul.f32 %v1794, 1.442695
      %v1814 = vpow.pop %v1813
      %v1815 = vmul.f32 %v1795, 1.442695
      %v1816 = vpow.pop %v1815
      %v1817 = vmul.f32 %v1796, 1.442695
      %v1818 = vpow.pop %v1817
      %v1819 = vmul.f32 %v1797, 1.442695
      %v1820 = vpow.pop %v1819
      %v1821 = vmul.f32 %v1798, 1.442695
      %v1822 = vpow.pop %v1821
      %v1823 = vmul.f32 %v1799, 1.442695
      %v1824 = vpow.pop %v1823
      %v1825 = vmul.f32 %v1800, 1.442695
      %v1826 = vpow.pop %v1825
      %v1827 = vmul.f32 %v1801, 1.442695
      %v1828 = vpow.pop %v1827
      %v1829 = vmul.f32 %v1802, 1.442695
      %v1830 = vpow.pop %v1829
      %v1831 = vmul.f32 %v1803, 1.442695
      %v1832 = vpow.pop %v1831
      %v1833 = vmul.f32 %v1804, 1.442695
      %v1834 = vpow.pop %v1833
      %v1835 = vmul.f32 %v1805, 1.442695
      %v1836 = vpow.pop %v1835
      %v1837 = vmul.f32 %v1806, 1.442695
      %v1838 = vpow.pop %v1837
      %1855 = vrot.lane.b32.xlu0 %v1775, 1
      %v1856 = vpop.permute.xlu0 %1855
      %1857 = vrot.lane.b32.xlu0 %v1776, 1
      %v1858 = vpop.permute.xlu0 %1857
      %1859 = vrot.lane.b32.xlu0 %v1777, 1
      %v1860 = vpop.permute.xlu0 %1859
      %1861 = vrot.lane.b32.xlu0 %v1778, 1
      %v1862 = vpop.permute.xlu0 %1861
      %1863 = vrot.lane.b32.xlu0 %v1779, 1
      %v1864 = vpop.permute.xlu0 %1863
      %1865 = vrot.lane.b32.xlu0 %v1780, 1
      %v1866 = vpop.permute.xlu0 %1865
      %1867 = vrot.lane.b32.xlu0 %v1781, 1
      %v1868 = vpop.permute.xlu0 %1867
      %1869 = vrot.lane.b32.xlu0 %v1782, 1
      %v1870 = vpop.permute.xlu0 %1869
      %1871 = vrot.lane.b32.xlu0 %v1783, 1
      %v1872 = vpop.permute.xlu0 %1871
      %1873 = vrot.lane.b32.xlu0 %v1784, 1
      %v1874 = vpop.permute.xlu0 %1873
      %1875 = vrot.lane.b32.xlu0 %v1785, 1
      %v1876 = vpop.permute.xlu0 %1875
      %1877 = vrot.lane.b32.xlu0 %v1786, 1
      %v1878 = vpop.permute.xlu0 %1877
      %1879 = vrot.lane.b32.xlu0 %v1787, 1
      %v1880 = vpop.permute.xlu0 %1879
      %1881 = vrot.lane.b32.xlu0 %v1788, 1
      %v1882 = vpop.permute.xlu0 %1881
      %1883 = vrot.lane.b32.xlu0 %v1789, 1
      %v1884 = vpop.permute.xlu0 %1883
      %1885 = vrot.lane.b32.xlu0 %v1790, 1
      %v1886 = vpop.permute.xlu0 %1885
      %v1903 = vsub.f32 %v1695, %v1856
      %v1904 = vsub.f32 %v1696, %v1858
      %v1905 = vsub.f32 %v1697, %v1860
      %v1906 = vsub.f32 %v1698, %v1862
      %v1907 = vsub.f32 %v1699, %v1864
      %v1908 = vsub.f32 %v1700, %v1866
      %v1909 = vsub.f32 %v1701, %v1868
      %v1910 = vsub.f32 %v1702, %v1870
      %v1911 = vsub.f32 %v1703, %v1872
      %v1912 = vsub.f32 %v1704, %v1874
      %v1913 = vsub.f32 %v1705, %v1876
      %v1914 = vsub.f32 %v1706, %v1878
      %v1915 = vsub.f32 %v1707, %v1880
      %v1916 = vsub.f32 %v1708, %v1882
      %v1917 = vsub.f32 %v1709, %v1884
      %v1918 = vsub.f32 %v1710, %v1886
      %v1919 = vmul.f32 %v1903, 1.442695
      %v1920 = vpow.pop %v1919
      %v1921 = vmul.f32 %v1904, 1.442695
      %v1922 = vpow.pop %v1921
      %v1923 = vmul.f32 %v1905, 1.442695
      %v1924 = vpow.pop %v1923
      %v1925 = vmul.f32 %v1906, 1.442695
      %v1926 = vpow.pop %v1925
      %v1927 = vmul.f32 %v1907, 1.442695
      %v1928 = vpow.pop %v1927
      %v1929 = vmul.f32 %v1908, 1.442695
      %v1930 = vpow.pop %v1929
      %v1931 = vmul.f32 %v1909, 1.442695
      %v1932 = vpow.pop %v1931
      %v1933 = vmul.f32 %v1910, 1.442695
      %v1934 = vpow.pop %v1933
      %v1935 = vmul.f32 %v1911, 1.442695
      %v1936 = vpow.pop %v1935
      %v1937 = vmul.f32 %v1912, 1.442695
      %v1938 = vpow.pop %v1937
      %v1939 = vmul.f32 %v1913, 1.442695
      %v1940 = vpow.pop %v1939
      %v1941 = vmul.f32 %v1914, 1.442695
      %v1942 = vpow.pop %v1941
      %v1943 = vmul.f32 %v1915, 1.442695
      %v1944 = vpow.pop %v1943
      %v1945 = vmul.f32 %v1916, 1.442695
      %v1946 = vpow.pop %v1945
      %v1947 = vmul.f32 %v1917, 1.442695
      %v1948 = vpow.pop %v1947
      %v1949 = vmul.f32 %v1918, 1.442695
      %v1950 = vpow.pop %v1949
      %1967 = vrot.lane.b32.xlu0 %v1920, 127
      %v1968 = vpop.permute.xlu0 %1967
      %1969 = vrot.lane.b32.xlu0 %v1922, 127
      %v1970 = vpop.permute.xlu0 %1969
      %1971 = vrot.lane.b32.xlu0 %v1924, 127
      %v1972 = vpop.permute.xlu0 %1971
      %1973 = vrot.lane.b32.xlu0 %v1926, 127
      %v1974 = vpop.permute.xlu0 %1973
      %1975 = vrot.lane.b32.xlu0 %v1928, 127
      %v1976 = vpop.permute.xlu0 %1975
      %1977 = vrot.lane.b32.xlu0 %v1930, 127
      %v1978 = vpop.permute.xlu0 %1977
      %1979 = vrot.lane.b32.xlu0 %v1932, 127
      %v1980 = vpop.permute.xlu0 %1979
      %1981 = vrot.lane.b32.xlu0 %v1934, 127
      %v1982 = vpop.permute.xlu0 %1981
      %1983 = vrot.lane.b32.xlu0 %v1936, 127
      %v1984 = vpop.permute.xlu0 %1983
      %1985 = vrot.lane.b32.xlu0 %v1938, 127
      %v1986 = vpop.permute.xlu0 %1985
      %1987 = vrot.lane.b32.xlu0 %v1940, 127
      %v1988 = vpop.permute.xlu0 %1987
      %1989 = vrot.lane.b32.xlu0 %v1942, 127
      %v1990 = vpop.permute.xlu0 %1989
      %1991 = vrot.lane.b32.xlu0 %v1944, 127
      %v1992 = vpop.permute.xlu0 %1991
      %1993 = vrot.lane.b32.xlu0 %v1946, 127
      %v1994 = vpop.permute.xlu0 %1993
      %1995 = vrot.lane.b32.xlu0 %v1948, 127
      %v1996 = vpop.permute.xlu0 %1995
      %1997 = vrot.lane.b32.xlu0 %v1950, 127
      %v1998 = vpop.permute.xlu0 %1997
      %v2015 = vadd.f32 %v1808, %v1968
      %v2016 = vadd.f32 %v1810, %v1970
      %v2017 = vadd.f32 %v1812, %v1972
      %v2018 = vadd.f32 %v1814, %v1974
      %v2019 = vadd.f32 %v1816, %v1976
      %v2020 = vadd.f32 %v1818, %v1978
      %v2021 = vadd.f32 %v1820, %v1980
      %v2022 = vadd.f32 %v1822, %v1982
      %v2023 = vadd.f32 %v1824, %v1984
      %v2024 = vadd.f32 %v1826, %v1986
      %v2025 = vadd.f32 %v1828, %v1988
      %v2026 = vadd.f32 %v1830, %v1990
      %v2027 = vadd.f32 %v1832, %v1992
      %v2028 = vadd.f32 %v1834, %v1994
      %v2029 = vadd.f32 %v1836, %v1996
      %v2030 = vadd.f32 %v1838, %v1998
      %v2031 = vrcp.pop %v2015
      %v2032 = vmul.f32 1.0, %v2031
      %v2033 = vrcp.pop %v2016
      %v2034 = vmul.f32 1.0, %v2033
      %v2035 = vrcp.pop %v2017
      %v2036 = vmul.f32 1.0, %v2035
      %v2037 = vrcp.pop %v2018
      %v2038 = vmul.f32 1.0, %v2037
      %v2039 = vrcp.pop %v2019
      %v2040 = vmul.f32 1.0, %v2039
      %v2041 = vrcp.pop %v2020
      %v2042 = vmul.f32 1.0, %v2041
      %v2043 = vrcp.pop %v2021
      %v2044 = vmul.f32 1.0, %v2043
      %v2045 = vrcp.pop %v2022
      %v2046 = vmul.f32 1.0, %v2045
      %v2047 = vrcp.pop %v2023
      %v2048 = vmul.f32 1.0, %v2047
      %v2049 = vrcp.pop %v2024
      %v2050 = vmul.f32 1.0, %v2049
      %v2051 = vrcp.pop %v2025
      %v2052 = vmul.f32 1.0, %v2051
      %v2053 = vrcp.pop %v2026
      %v2054 = vmul.f32 1.0, %v2053
      %v2055 = vrcp.pop %v2027
      %v2056 = vmul.f32 1.0, %v2055
      %v2057 = vrcp.pop %v2028
      %v2058 = vmul.f32 1.0, %v2057
      %v2059 = vrcp.pop %v2029
      %v2060 = vmul.f32 1.0, %v2059
      %v2061 = vrcp.pop %v2030
      %v2062 = vmul.f32 1.0, %v2061
      %v2063 = vmul.f32 %v1808, %v2032
      %v2064 = vmul.f32 %v1810, %v2034
      %v2065 = vmul.f32 %v1812, %v2036
      %v2066 = vmul.f32 %v1814, %v2038
      %v2067 = vmul.f32 %v1816, %v2040
      %v2068 = vmul.f32 %v1818, %v2042
      %v2069 = vmul.f32 %v1820, %v2044
      %v2070 = vmul.f32 %v1822, %v2046
      %v2071 = vmul.f32 %v1824, %v2048
      %v2072 = vmul.f32 %v1826, %v2050
      %v2073 = vmul.f32 %v1828, %v2052
      %v2074 = vmul.f32 %v1830, %v2054
      %v2075 = vmul.f32 %v1832, %v2056
      %v2076 = vmul.f32 %v1834, %v2058
      %v2077 = vmul.f32 %v1836, %v2060
      %v2078 = vmul.f32 %v1838, %v2062
      %2080 = vset.pattern.permute.xlu0 12
      %2081 = vperm.xlu0 %2080, %v2063
      %v2082 = vpop.permute.xlu0 %2081
      %2085 = vset.pattern.permute.xlu0 12
      %2086 = vperm.xlu0 %2085, %v2064
      %v2087 = vpop.permute.xlu0 %2086
      %2090 = vset.pattern.permute.xlu0 12
      %2091 = vperm.xlu0 %2090, %v2065
      %v2092 = vpop.permute.xlu0 %2091
      %2095 = vset.pattern.permute.xlu0 12
      %2096 = vperm.xlu0 %2095, %v2066
      %v2097 = vpop.permute.xlu0 %2096
      %2100 = vset.pattern.permute.xlu0 12
      %2101 = vperm.xlu0 %2100, %v2067
      %v2102 = vpop.permute.xlu0 %2101
      %2105 = vset.pattern.permute.xlu0 12
      %2106 = vperm.xlu0 %2105, %v2068
      %v2107 = vpop.permute.xlu0 %2106
      %2110 = vset.pattern.permute.xlu0 12
      %2111 = vperm.xlu0 %2110, %v2069
      %v2112 = vpop.permute.xlu0 %2111
      %2115 = vset.pattern.permute.xlu0 12
      %2116 = vperm.xlu0 %2115, %v2070
      %v2117 = vpop.permute.xlu0 %2116
      %2120 = vset.pattern.permute.xlu0 12
      %2121 = vperm.xlu0 %2120, %v2071
      %v2122 = vpop.permute.xlu0 %2121
      %2125 = vset.pattern.permute.xlu0 12
      %2126 = vperm.xlu0 %2125, %v2072
      %v2127 = vpop.permute.xlu0 %2126
      %2130 = vset.pattern.permute.xlu0 12
      %2131 = vperm.xlu0 %2130, %v2073
      %v2132 = vpop.permute.xlu0 %2131
      %2135 = vset.pattern.permute.xlu0 12
      %2136 = vperm.xlu0 %2135, %v2074
      %v2137 = vpop.permute.xlu0 %2136
      %2140 = vset.pattern.permute.xlu0 12
      %2141 = vperm.xlu0 %2140, %v2075
      %v2142 = vpop.permute.xlu0 %2141
      %2145 = vset.pattern.permute.xlu0 12
      %2146 = vperm.xlu0 %2145, %v2076
      %v2147 = vpop.permute.xlu0 %2146
      %2150 = vset.pattern.permute.xlu0 12
      %2151 = vperm.xlu0 %2150, %v2077
      %v2152 = vpop.permute.xlu0 %2151
      %2155 = vset.pattern.permute.xlu0 12
      %2156 = vperm.xlu0 %2155, %v2078
      %v2157 = vpop.permute.xlu0 %2156
      %v2159 = vmul.f32 %v2082, %v1185
      %v2160 = vmul.f32 %v2087, %v1191
      %v2161 = vmul.f32 %v2092, %v1197
      %v2162 = vmul.f32 %v2097, %v1203
      %v2163 = vmul.f32 %v2102, %v1209
      %v2164 = vmul.f32 %v2107, %v1215
      %v2165 = vmul.f32 %v2112, %v1221
      %v2166 = vmul.f32 %v2117, %v1227
      %v2167 = vmul.f32 %v2122, %v1233
      %v2168 = vmul.f32 %v2127, %v1239
      %v2169 = vmul.f32 %v2132, %v1245
      %v2170 = vmul.f32 %v2137, %v1251
      %v2171 = vmul.f32 %v2142, %v1257
      %v2172 = vmul.f32 %v2147, %v1263
      %v2173 = vmul.f32 %v2152, %v1269
      %v2174 = vmul.f32 %v2157, %v1275
      %2191 = vrot.lane.b32.xlu0 %v2032, 1
      %v2192 = vpop.permute.xlu0 %2191
      %2193 = vrot.lane.b32.xlu0 %v2034, 1
      %v2194 = vpop.permute.xlu0 %2193
      %2195 = vrot.lane.b32.xlu0 %v2036, 1
      %v2196 = vpop.permute.xlu0 %2195
      %2197 = vrot.lane.b32.xlu0 %v2038, 1
      %v2198 = vpop.permute.xlu0 %2197
      %2199 = vrot.lane.b32.xlu0 %v2040, 1
      %v2200 = vpop.permute.xlu0 %2199
      %2201 = vrot.lane.b32.xlu0 %v2042, 1
      %v2202 = vpop.permute.xlu0 %2201
      %2203 = vrot.lane.b32.xlu0 %v2044, 1
      %v2204 = vpop.permute.xlu0 %2203
      %2205 = vrot.lane.b32.xlu0 %v2046, 1
      %v2206 = vpop.permute.xlu0 %2205
      %2207 = vrot.lane.b32.xlu0 %v2048, 1
      %v2208 = vpop.permute.xlu0 %2207
      %2209 = vrot.lane.b32.xlu0 %v2050, 1
      %v2210 = vpop.permute.xlu0 %2209
      %2211 = vrot.lane.b32.xlu0 %v2052, 1
      %v2212 = vpop.permute.xlu0 %2211
      %2213 = vrot.lane.b32.xlu0 %v2054, 1
      %v2214 = vpop.permute.xlu0 %2213
      %2215 = vrot.lane.b32.xlu0 %v2056, 1
      %v2216 = vpop.permute.xlu0 %2215
      %2217 = vrot.lane.b32.xlu0 %v2058, 1
      %v2218 = vpop.permute.xlu0 %2217
      %2219 = vrot.lane.b32.xlu0 %v2060, 1
      %v2220 = vpop.permute.xlu0 %2219
      %2221 = vrot.lane.b32.xlu0 %v2062, 1
      %v2222 = vpop.permute.xlu0 %2221
      %v2239 = vmul.f32 %v1920, %v2192
      %v2240 = vmul.f32 %v1922, %v2194
      %v2241 = vmul.f32 %v1924, %v2196
      %v2242 = vmul.f32 %v1926, %v2198
      %v2243 = vmul.f32 %v1928, %v2200
      %v2244 = vmul.f32 %v1930, %v2202
      %v2245 = vmul.f32 %v1932, %v2204
      %v2246 = vmul.f32 %v1934, %v2206
      %v2247 = vmul.f32 %v1936, %v2208
      %v2248 = vmul.f32 %v1938, %v2210
      %v2249 = vmul.f32 %v1940, %v2212
      %v2250 = vmul.f32 %v1942, %v2214
      %v2251 = vmul.f32 %v1944, %v2216
      %v2252 = vmul.f32 %v1946, %v2218
      %v2253 = vmul.f32 %v1948, %v2220
      %v2254 = vmul.f32 %v1950, %v2222
      %2256 = vset.pattern.permute.xlu0 13
      %2257 = vperm.xlu0 %2256, %v2239
      %v2258 = vpop.permute.xlu0 %2257
      %2261 = vset.pattern.permute.xlu0 13
      %2262 = vperm.xlu0 %2261, %v2240
      %v2263 = vpop.permute.xlu0 %2262
      %2266 = vset.pattern.permute.xlu0 13
      %2267 = vperm.xlu0 %2266, %v2241
      %v2268 = vpop.permute.xlu0 %2267
      %2271 = vset.pattern.permute.xlu0 13
      %2272 = vperm.xlu0 %2271, %v2242
      %v2273 = vpop.permute.xlu0 %2272
      %2276 = vset.pattern.permute.xlu0 13
      %2277 = vperm.xlu0 %2276, %v2243
      %v2278 = vpop.permute.xlu0 %2277
      %2281 = vset.pattern.permute.xlu0 13
      %2282 = vperm.xlu0 %2281, %v2244
      %v2283 = vpop.permute.xlu0 %2282
      %2286 = vset.pattern.permute.xlu0 13
      %2287 = vperm.xlu0 %2286, %v2245
      %v2288 = vpop.permute.xlu0 %2287
      %2291 = vset.pattern.permute.xlu0 13
      %2292 = vperm.xlu0 %2291, %v2246
      %v2293 = vpop.permute.xlu0 %2292
      %2296 = vset.pattern.permute.xlu0 13
      %2297 = vperm.xlu0 %2296, %v2247
      %v2298 = vpop.permute.xlu0 %2297
      %2301 = vset.pattern.permute.xlu0 13
      %2302 = vperm.xlu0 %2301, %v2248
      %v2303 = vpop.permute.xlu0 %2302
      %2306 = vset.pattern.permute.xlu0 13
      %2307 = vperm.xlu0 %2306, %v2249
      %v2308 = vpop.permute.xlu0 %2307
      %2311 = vset.pattern.permute.xlu0 13
      %2312 = vperm.xlu0 %2311, %v2250
      %v2313 = vpop.permute.xlu0 %2312
      %2316 = vset.pattern.permute.xlu0 13
      %2317 = vperm.xlu0 %2316, %v2251
      %v2318 = vpop.permute.xlu0 %2317
      %2321 = vset.pattern.permute.xlu0 13
      %2322 = vperm.xlu0 %2321, %v2252
      %v2323 = vpop.permute.xlu0 %2322
      %2326 = vset.pattern.permute.xlu0 13
      %2327 = vperm.xlu0 %2326, %v2253
      %v2328 = vpop.permute.xlu0 %2327
      %2331 = vset.pattern.permute.xlu0 13
      %2332 = vperm.xlu0 %2331, %v2254
      %v2333 = vpop.permute.xlu0 %2332
      %v2335 = vmul.f32 %v2258, %v1281
      %v2336 = vmul.f32 %v2263, %v1287
      %v2337 = vmul.f32 %v2268, %v1293
      %v2338 = vmul.f32 %v2273, %v1299
      %v2339 = vmul.f32 %v2278, %v1305
      %v2340 = vmul.f32 %v2283, %v1311
      %v2341 = vmul.f32 %v2288, %v1317
      %v2342 = vmul.f32 %v2293, %v1323
      %v2343 = vmul.f32 %v2298, %v1329
      %v2344 = vmul.f32 %v2303, %v1335
      %v2345 = vmul.f32 %v2308, %v1341
      %v2346 = vmul.f32 %v2313, %v1347
      %v2347 = vmul.f32 %v2318, %v1353
      %v2348 = vmul.f32 %v2323, %v1359
      %v2349 = vmul.f32 %v2328, %v1365
      %v2350 = vmul.f32 %v2333, %v1371
      %2367 = vrot.lane.b32.xlu0 %v2335, 96
      %v2368 = vpop.permute.xlu0 %2367
      %2369 = vrot.lane.b32.xlu0 %v2336, 96
      %v2370 = vpop.permute.xlu0 %2369
      %2371 = vrot.lane.b32.xlu0 %v2337, 96
      %v2372 = vpop.permute.xlu0 %2371
      %2373 = vrot.lane.b32.xlu0 %v2338, 96
      %v2374 = vpop.permute.xlu0 %2373
      %2375 = vrot.lane.b32.xlu0 %v2339, 96
      %v2376 = vpop.permute.xlu0 %2375
      %2377 = vrot.lane.b32.xlu0 %v2340, 96
      %v2378 = vpop.permute.xlu0 %2377
      %2379 = vrot.lane.b32.xlu0 %v2341, 96
      %v2380 = vpop.permute.xlu0 %2379
      %2381 = vrot.lane.b32.xlu0 %v2342, 96
      %v2382 = vpop.permute.xlu0 %2381
      %2383 = vrot.lane.b32.xlu0 %v2343, 96
      %v2384 = vpop.permute.xlu0 %2383
      %2385 = vrot.lane.b32.xlu0 %v2344, 96
      %v2386 = vpop.permute.xlu0 %2385
      %2387 = vrot.lane.b32.xlu0 %v2345, 96
      %v2388 = vpop.permute.xlu0 %2387
      %2389 = vrot.lane.b32.xlu0 %v2346, 96
      %v2390 = vpop.permute.xlu0 %2389
      %2391 = vrot.lane.b32.xlu0 %v2347, 96
      %v2392 = vpop.permute.xlu0 %2391
      %2393 = vrot.lane.b32.xlu0 %v2348, 96
      %v2394 = vpop.permute.xlu0 %2393
      %2395 = vrot.lane.b32.xlu0 %v2349, 96
      %v2396 = vpop.permute.xlu0 %2395
      %2397 = vrot.lane.b32.xlu0 %v2350, 96
      %v2398 = vpop.permute.xlu0 %2397
      %v2415 = vadd.f32 %v2159, %v2368
      %v2416 = vadd.f32 %v2160, %v2370
      %v2417 = vadd.f32 %v2161, %v2372
      %v2418 = vadd.f32 %v2162, %v2374
      %v2419 = vadd.f32 %v2163, %v2376
      %v2420 = vadd.f32 %v2164, %v2378
      %v2421 = vadd.f32 %v2165, %v2380
      %v2422 = vadd.f32 %v2166, %v2382
      %v2423 = vadd.f32 %v2167, %v2384
      %v2424 = vadd.f32 %v2168, %v2386
      %v2425 = vadd.f32 %v2169, %v2388
      %v2426 = vadd.f32 %v2170, %v2390
      %v2427 = vadd.f32 %v2171, %v2392
      %v2428 = vadd.f32 %v2172, %v2394
      %v2429 = vadd.f32 %v2173, %v2396
      %v2430 = vadd.f32 %v2174, %v2398
      %2431 = vrot.lane.b32.xlu0 %v1379, 124
      %v2432 = vpop.permute.xlu0 %2431
      %2433 = vrot.lane.b32.xlu0 %v1385, 124
      %v2434 = vpop.permute.xlu0 %2433
      %2435 = vrot.lane.b32.xlu0 %v1391, 124
      %v2436 = vpop.permute.xlu0 %2435
      %2437 = vrot.lane.b32.xlu0 %v1397, 124
      %v2438 = vpop.permute.xlu0 %2437
      %2439 = vrot.lane.b32.xlu0 %v1403, 124
      %v2440 = vpop.permute.xlu0 %2439
      %2441 = vrot.lane.b32.xlu0 %v1409, 124
      %v2442 = vpop.permute.xlu0 %2441
      %2443 = vrot.lane.b32.xlu0 %v1415, 124
      %v2444 = vpop.permute.xlu0 %2443
      %2445 = vrot.lane.b32.xlu0 %v1421, 124
      %v2446 = vpop.permute.xlu0 %2445
      %2447 = vrot.lane.b32.xlu0 %v1427, 124
      %v2448 = vpop.permute.xlu0 %2447
      %2449 = vrot.lane.b32.xlu0 %v1433, 124
      %v2450 = vpop.permute.xlu0 %2449
      %2451 = vrot.lane.b32.xlu0 %v1439, 124
      %v2452 = vpop.permute.xlu0 %2451
      %2453 = vrot.lane.b32.xlu0 %v1445, 124
      %v2454 = vpop.permute.xlu0 %2453
      %2455 = vrot.lane.b32.xlu0 %v1451, 124
      %v2456 = vpop.permute.xlu0 %2455
      %2457 = vrot.lane.b32.xlu0 %v1457, 124
      %v2458 = vpop.permute.xlu0 %2457
      %2459 = vrot.lane.b32.xlu0 %v1463, 124
      %v2460 = vpop.permute.xlu0 %2459
      %2461 = vrot.lane.b32.xlu0 %v1469, 124
      %v2462 = vpop.permute.xlu0 %2461
      %2463 = vrot.lane.b32.xlu0 %v2432, 124
      %v2464 = vpop.permute.xlu0 %2463
      %2465 = vrot.lane.b32.xlu0 %v2434, 124
      %v2466 = vpop.permute.xlu0 %2465
      %2467 = vrot.lane.b32.xlu0 %v2436, 124
      %v2468 = vpop.permute.xlu0 %2467
      %2469 = vrot.lane.b32.xlu0 %v2438, 124
      %v2470 = vpop.permute.xlu0 %2469
      %2471 = vrot.lane.b32.xlu0 %v2440, 124
      %v2472 = vpop.permute.xlu0 %2471
      %2473 = vrot.lane.b32.xlu0 %v2442, 124
      %v2474 = vpop.permute.xlu0 %2473
      %2475 = vrot.lane.b32.xlu0 %v2444, 124
      %v2476 = vpop.permute.xlu0 %2475
      %2477 = vrot.lane.b32.xlu0 %v2446, 124
      %v2478 = vpop.permute.xlu0 %2477
      %2479 = vrot.lane.b32.xlu0 %v2448, 124
      %v2480 = vpop.permute.xlu0 %2479
      %2481 = vrot.lane.b32.xlu0 %v2450, 124
      %v2482 = vpop.permute.xlu0 %2481
      %2483 = vrot.lane.b32.xlu0 %v2452, 124
      %v2484 = vpop.permute.xlu0 %2483
      %2485 = vrot.lane.b32.xlu0 %v2454, 124
      %v2486 = vpop.permute.xlu0 %2485
      %2487 = vrot.lane.b32.xlu0 %v2456, 124
      %v2488 = vpop.permute.xlu0 %2487
      %2489 = vrot.lane.b32.xlu0 %v2458, 124
      %v2490 = vpop.permute.xlu0 %2489
      %2491 = vrot.lane.b32.xlu0 %v2460, 124
      %v2492 = vpop.permute.xlu0 %2491
      %2493 = vrot.lane.b32.xlu0 %v2462, 124
      %v2494 = vpop.permute.xlu0 %2493
      %v2527 = vadd.f32 %v1187, %v2432
      %v2528 = vadd.f32 %v1193, %v2434
      %v2529 = vadd.f32 %v1199, %v2436
      %v2530 = vadd.f32 %v1205, %v2438
      %v2531 = vadd.f32 %v1211, %v2440
      %v2532 = vadd.f32 %v1217, %v2442
      %v2533 = vadd.f32 %v1223, %v2444
      %v2534 = vadd.f32 %v1229, %v2446
      %v2535 = vadd.f32 %v1235, %v2448
      %v2536 = vadd.f32 %v1241, %v2450
      %v2537 = vadd.f32 %v1247, %v2452
      %v2538 = vadd.f32 %v1253, %v2454
      %v2539 = vadd.f32 %v1259, %v2456
      %v2540 = vadd.f32 %v1265, %v2458
      %v2541 = vadd.f32 %v1271, %v2460
      %v2542 = vadd.f32 %v1277, %v2462
      %v2543 = vadd.f32 %v1283, %v2464
      %v2544 = vadd.f32 %v1289, %v2466
      %v2545 = vadd.f32 %v1295, %v2468
      %v2546 = vadd.f32 %v1301, %v2470
      %v2547 = vadd.f32 %v1307, %v2472
      %v2548 = vadd.f32 %v1313, %v2474
      %v2549 = vadd.f32 %v1319, %v2476
      %v2550 = vadd.f32 %v1325, %v2478
      %v2551 = vadd.f32 %v1331, %v2480
      %v2552 = vadd.f32 %v1337, %v2482
      %v2553 = vadd.f32 %v1343, %v2484
      %v2554 = vadd.f32 %v1349, %v2486
      %v2555 = vadd.f32 %v1355, %v2488
      %v2556 = vadd.f32 %v1361, %v2490
      %v2557 = vadd.f32 %v1367, %v2492
      %v2558 = vadd.f32 %v1373, %v2494
      %vm2559 = vcmp.ge.f32.partialorder %v2527, 0.0
      %vm2560 = vcmp.ge.f32.partialorder %v2528, 0.0
      %vm2561 = vcmp.ge.f32.partialorder %v2529, 0.0
      %vm2562 = vcmp.ge.f32.partialorder %v2530, 0.0
      %vm2563 = vcmp.ge.f32.partialorder %v2531, 0.0
      %vm2564 = vcmp.ge.f32.partialorder %v2532, 0.0
      %vm2565 = vcmp.ge.f32.partialorder %v2533, 0.0
      %vm2566 = vcmp.ge.f32.partialorder %v2534, 0.0
      %vm2567 = vcmp.ge.f32.partialorder %v2535, 0.0
      %vm2568 = vcmp.ge.f32.partialorder %v2536, 0.0
      %vm2569 = vcmp.ge.f32.partialorder %v2537, 0.0
      %vm2570 = vcmp.ge.f32.partialorder %v2538, 0.0
      %vm2571 = vcmp.ge.f32.partialorder %v2539, 0.0
      %vm2572 = vcmp.ge.f32.partialorder %v2540, 0.0
      %vm2573 = vcmp.ge.f32.partialorder %v2541, 0.0
      %vm2574 = vcmp.ge.f32.partialorder %v2542, 0.0
      %vm2575 = vcmp.ge.f32.partialorder %v2543, 0.0
      %vm2576 = vcmp.ge.f32.partialorder %v2544, 0.0
      %vm2577 = vcmp.ge.f32.partialorder %v2545, 0.0
      %vm2578 = vcmp.ge.f32.partialorder %v2546, 0.0
      %vm2579 = vcmp.ge.f32.partialorder %v2547, 0.0
      %vm2580 = vcmp.ge.f32.partialorder %v2548, 0.0
      %vm2581 = vcmp.ge.f32.partialorder %v2549, 0.0
      %vm2582 = vcmp.ge.f32.partialorder %v2550, 0.0
      %vm2583 = vcmp.ge.f32.partialorder %v2551, 0.0
      %vm2584 = vcmp.ge.f32.partialorder %v2552, 0.0
      %vm2585 = vcmp.ge.f32.partialorder %v2553, 0.0
      %vm2586 = vcmp.ge.f32.partialorder %v2554, 0.0
      %vm2587 = vcmp.ge.f32.partialorder %v2555, 0.0
      %vm2588 = vcmp.ge.f32.partialorder %v2556, 0.0
      %vm2589 = vcmp.ge.f32.partialorder %v2557, 0.0
      %vm2590 = vcmp.ge.f32.partialorder %v2558, 0.0
      %v2591 = vmul.f32 %v2527, 0.2
      %v2592 = vmul.f32 %v2528, 0.2
      %v2593 = vmul.f32 %v2529, 0.2
      %v2594 = vmul.f32 %v2530, 0.2
      %v2595 = vmul.f32 %v2531, 0.2
      %v2596 = vmul.f32 %v2532, 0.2
      %v2597 = vmul.f32 %v2533, 0.2
      %v2598 = vmul.f32 %v2534, 0.2
      %v2599 = vmul.f32 %v2535, 0.2
      %v2600 = vmul.f32 %v2536, 0.2
      %v2601 = vmul.f32 %v2537, 0.2
      %v2602 = vmul.f32 %v2538, 0.2
      %v2603 = vmul.f32 %v2539, 0.2
      %v2604 = vmul.f32 %v2540, 0.2
      %v2605 = vmul.f32 %v2541, 0.2
      %v2606 = vmul.f32 %v2542, 0.2
      %v2607 = vmul.f32 %v2543, 0.2
      %v2608 = vmul.f32 %v2544, 0.2
      %v2609 = vmul.f32 %v2545, 0.2
      %v2610 = vmul.f32 %v2546, 0.2
      %v2611 = vmul.f32 %v2547, 0.2
      %v2612 = vmul.f32 %v2548, 0.2
      %v2613 = vmul.f32 %v2549, 0.2
      %v2614 = vmul.f32 %v2550, 0.2
      %v2615 = vmul.f32 %v2551, 0.2
      %v2616 = vmul.f32 %v2552, 0.2
      %v2617 = vmul.f32 %v2553, 0.2
      %v2618 = vmul.f32 %v2554, 0.2
      %v2619 = vmul.f32 %v2555, 0.2
      %v2620 = vmul.f32 %v2556, 0.2
      %v2621 = vmul.f32 %v2557, 0.2
      %v2622 = vmul.f32 %v2558, 0.2
      %v2623 = vsel %vm2559, %v2527, %v2591
      %v2624 = vsel %vm2560, %v2528, %v2592
      %v2625 = vsel %vm2561, %v2529, %v2593
      %v2626 = vsel %vm2562, %v2530, %v2594
      %v2627 = vsel %vm2563, %v2531, %v2595
      %v2628 = vsel %vm2564, %v2532, %v2596
      %v2629 = vsel %vm2565, %v2533, %v2597
      %v2630 = vsel %vm2566, %v2534, %v2598
      %v2631 = vsel %vm2567, %v2535, %v2599
      %v2632 = vsel %vm2568, %v2536, %v2600
      %v2633 = vsel %vm2569, %v2537, %v2601
      %v2634 = vsel %vm2570, %v2538, %v2602
      %v2635 = vsel %vm2571, %v2539, %v2603
      %v2636 = vsel %vm2572, %v2540, %v2604
      %v2637 = vsel %vm2573, %v2541, %v2605
      %v2638 = vsel %vm2574, %v2542, %v2606
      %v2639 = vsel %vm2575, %v2543, %v2607
      %v2640 = vsel %vm2576, %v2544, %v2608
      %v2641 = vsel %vm2577, %v2545, %v2609
      %v2642 = vsel %vm2578, %v2546, %v2610
      %v2643 = vsel %vm2579, %v2547, %v2611
      %v2644 = vsel %vm2580, %v2548, %v2612
      %v2645 = vsel %vm2581, %v2549, %v2613
      %v2646 = vsel %vm2582, %v2550, %v2614
      %v2647 = vsel %vm2583, %v2551, %v2615
      %v2648 = vsel %vm2584, %v2552, %v2616
      %v2649 = vsel %vm2585, %v2553, %v2617
      %v2650 = vsel %vm2586, %v2554, %v2618
      %v2651 = vsel %vm2587, %v2555, %v2619
      %v2652 = vsel %vm2588, %v2556, %v2620
      %v2653 = vsel %vm2589, %v2557, %v2621
      %v2654 = vsel %vm2590, %v2558, %v2622
      %vm2655 = vcmask 31744
      %v2656 = vsel %vm2655, %v2623, -inf
      %v2657 = vsel %vm2655, %v2624, -inf
      %v2658 = vsel %vm2655, %v2625, -inf
      %v2659 = vsel %vm2655, %v2626, -inf
      %v2660 = vsel %vm2655, %v2627, -inf
      %v2661 = vmax.f32 %v2656, %v2660
      %v2662 = vsel %vm2655, %v2628, -inf
      %v2663 = vmax.f32 %v2657, %v2662
      %v2664 = vsel %vm2655, %v2629, -inf
      %v2665 = vmax.f32 %v2658, %v2664
      %v2666 = vsel %vm2655, %v2630, -inf
      %v2667 = vmax.f32 %v2659, %v2666
      %v2668 = vsel %vm2655, %v2631, -inf
      %v2669 = vmax.f32 %v2661, %v2668
      %v2670 = vsel %vm2655, %v2632, -inf
      %v2671 = vmax.f32 %v2663, %v2670
      %v2672 = vsel %vm2655, %v2633, -inf
      %v2673 = vmax.f32 %v2665, %v2672
      %v2674 = vsel %vm2655, %v2634, -inf
      %v2675 = vmax.f32 %v2667, %v2674
      %v2676 = vsel %vm2655, %v2635, -inf
      %v2677 = vmax.f32 %v2669, %v2676
      %v2678 = vsel %vm2655, %v2636, -inf
      %v2679 = vmax.f32 %v2671, %v2678
      %v2680 = vsel %vm2655, %v2637, -inf
      %v2681 = vmax.f32 %v2673, %v2680
      %v2682 = vsel %vm2655, %v2638, -inf
      %v2683 = vmax.f32 %v2675, %v2682
      %v2684 = vsel %vm2655, %v2639, -inf
      %v2685 = vmax.f32 %v2677, %v2684
      %v2686 = vsel %vm2655, %v2640, -inf
      %v2687 = vmax.f32 %v2679, %v2686
      %v2688 = vsel %vm2655, %v2641, -inf
      %v2689 = vmax.f32 %v2681, %v2688
      %v2690 = vsel %vm2655, %v2642, -inf
      %v2691 = vmax.f32 %v2683, %v2690
      %v2692 = vsel %vm2655, %v2643, -inf
      %v2693 = vmax.f32 %v2685, %v2692
      %v2694 = vsel %vm2655, %v2644, -inf
      %v2695 = vmax.f32 %v2687, %v2694
      %v2696 = vsel %vm2655, %v2645, -inf
      %v2697 = vmax.f32 %v2689, %v2696
      %v2698 = vsel %vm2655, %v2646, -inf
      %v2699 = vmax.f32 %v2691, %v2698
      %v2700 = vsel %vm2655, %v2647, -inf
      %v2701 = vmax.f32 %v2693, %v2700
      %v2702 = vsel %vm2655, %v2648, -inf
      %v2703 = vmax.f32 %v2695, %v2702
      %v2704 = vsel %vm2655, %v2649, -inf
      %v2705 = vmax.f32 %v2697, %v2704
      %v2706 = vsel %vm2655, %v2650, -inf
      %v2707 = vmax.f32 %v2699, %v2706
      %v2708 = vsel %vm2655, %v2651, -inf
      %v2709 = vmax.f32 %v2701, %v2708
      %v2710 = vsel %vm2655, %v2652, -inf
      %v2711 = vmax.f32 %v2703, %v2710
      %v2712 = vsel %vm2655, %v2653, -inf
      %v2713 = vmax.f32 %v2705, %v2712
      %v2714 = vsel %vm2655, %v2654, -inf
      %v2715 = vmax.f32 %v2707, %v2714
      %v2716 = vmax.f32 %v2709, %v2711
      %v2717 = vmax.f32 %v2713, %v2715
      %v2718 = vmax.f32 %v2716, %v2717
      %v2719 = vrot.slane %v2718, 4
      %v2720 = vmax.f32 %v2718, %v2719
      %v2721 = vrot.slane %v2720, 2
      %v2722 = vmax.f32 %v2720, %v2721
      %v2723 = vrot.slane %v2722, 1
      %v2724 = vmax.f32 %v2722, %v2723
      %v2725 = vsub.f32 %v2623, %v2724
      %v2726 = vsub.f32 %v2624, %v2724
      %v2727 = vsub.f32 %v2625, %v2724
      %v2728 = vsub.f32 %v2626, %v2724
      %v2729 = vsub.f32 %v2627, %v2724
      %v2730 = vsub.f32 %v2628, %v2724
      %v2731 = vsub.f32 %v2629, %v2724
      %v2732 = vsub.f32 %v2630, %v2724
      %v2733 = vsub.f32 %v2631, %v2724
      %v2734 = vsub.f32 %v2632, %v2724
      %v2735 = vsub.f32 %v2633, %v2724
      %v2736 = vsub.f32 %v2634, %v2724
      %v2737 = vsub.f32 %v2635, %v2724
      %v2738 = vsub.f32 %v2636, %v2724
      %v2739 = vsub.f32 %v2637, %v2724
      %v2740 = vsub.f32 %v2638, %v2724
      %v2741 = vsub.f32 %v2639, %v2724
      %v2742 = vsub.f32 %v2640, %v2724
      %v2743 = vsub.f32 %v2641, %v2724
      %v2744 = vsub.f32 %v2642, %v2724
      %v2745 = vsub.f32 %v2643, %v2724
      %v2746 = vsub.f32 %v2644, %v2724
      %v2747 = vsub.f32 %v2645, %v2724
      %v2748 = vsub.f32 %v2646, %v2724
      %v2749 = vsub.f32 %v2647, %v2724
      %v2750 = vsub.f32 %v2648, %v2724
      %v2751 = vsub.f32 %v2649, %v2724
      %v2752 = vsub.f32 %v2650, %v2724
      %v2753 = vsub.f32 %v2651, %v2724
      %v2754 = vsub.f32 %v2652, %v2724
      %v2755 = vsub.f32 %v2653, %v2724
      %v2756 = vsub.f32 %v2654, %v2724
      %v2757 = vmul.f32 %v2725, 1.442695
      %v2758 = vpow.pop %v2757
      %v2759 = vmul.f32 %v2726, 1.442695
      %v2760 = vpow.pop %v2759
      %v2761 = vmul.f32 %v2727, 1.442695
      %v2762 = vpow.pop %v2761
      %v2763 = vmul.f32 %v2728, 1.442695
      %v2764 = vpow.pop %v2763
      %v2765 = vmul.f32 %v2729, 1.442695
      %v2766 = vpow.pop %v2765
      %v2767 = vmul.f32 %v2730, 1.442695
      %v2768 = vpow.pop %v2767
      %v2769 = vmul.f32 %v2731, 1.442695
      %v2770 = vpow.pop %v2769
      %v2771 = vmul.f32 %v2732, 1.442695
      %v2772 = vpow.pop %v2771
      %v2773 = vmul.f32 %v2733, 1.442695
      %v2774 = vpow.pop %v2773
      %v2775 = vmul.f32 %v2734, 1.442695
      %v2776 = vpow.pop %v2775
      %v2777 = vmul.f32 %v2735, 1.442695
      %v2778 = vpow.pop %v2777
      %v2779 = vmul.f32 %v2736, 1.442695
      %v2780 = vpow.pop %v2779
      %v2781 = vmul.f32 %v2737, 1.442695
      %v2782 = vpow.pop %v2781
      %v2783 = vmul.f32 %v2738, 1.442695
      %v2784 = vpow.pop %v2783
      %v2785 = vmul.f32 %v2739, 1.442695
      %v2786 = vpow.pop %v2785
      %v2787 = vmul.f32 %v2740, 1.442695
      %v2788 = vpow.pop %v2787
      %v2789 = vmul.f32 %v2741, 1.442695
      %v2790 = vpow.pop %v2789
      %v2791 = vmul.f32 %v2742, 1.442695
      %v2792 = vpow.pop %v2791
      %v2793 = vmul.f32 %v2743, 1.442695
      %v2794 = vpow.pop %v2793
      %v2795 = vmul.f32 %v2744, 1.442695
      %v2796 = vpow.pop %v2795
      %v2797 = vmul.f32 %v2745, 1.442695
      %v2798 = vpow.pop %v2797
      %v2799 = vmul.f32 %v2746, 1.442695
      %v2800 = vpow.pop %v2799
      %v2801 = vmul.f32 %v2747, 1.442695
      %v2802 = vpow.pop %v2801
      %v2803 = vmul.f32 %v2748, 1.442695
      %v2804 = vpow.pop %v2803
      %v2805 = vmul.f32 %v2749, 1.442695
      %v2806 = vpow.pop %v2805
      %v2807 = vmul.f32 %v2750, 1.442695
      %v2808 = vpow.pop %v2807
      %v2809 = vmul.f32 %v2751, 1.442695
      %v2810 = vpow.pop %v2809
      %v2811 = vmul.f32 %v2752, 1.442695
      %v2812 = vpow.pop %v2811
      %v2813 = vmul.f32 %v2753, 1.442695
      %v2814 = vpow.pop %v2813
      %v2815 = vmul.f32 %v2754, 1.442695
      %v2816 = vpow.pop %v2815
      %v2817 = vmul.f32 %v2755, 1.442695
      %v2818 = vpow.pop %v2817
      %v2819 = vmul.f32 %v2756, 1.442695
      %v2820 = vpow.pop %v2819
      %v2821 = vadd.s32 %v571, 64
      %v2822 = vadd.s32 %v571, 72
      %v2823 = vadd.s32 %v571, 80
      %v2824 = vadd.s32 %v571, 88
      %v2825 = vadd.s32 %v571, 96
      %v2826 = vadd.s32 %v571, 104
      %v2827 = vadd.s32 %v571, 112
      %v2828 = vadd.s32 %v571, 120
      %v2829 = vadd.s32 %v571, 128
      %v2830 = vadd.s32 %v571, 136
      %v2831 = vadd.s32 %v571, 144
      %v2832 = vadd.s32 %v571, 152
      %v2833 = vadd.s32 %v571, 160
      %v2834 = vadd.s32 %v571, 168
      %v2835 = vadd.s32 %v571, 176
      %v2836 = vadd.s32 %v571, 184
      %v2837 = vadd.s32 %v571, 192
      %v2838 = vadd.s32 %v571, 200
      %v2839 = vadd.s32 %v571, 208
      %v2840 = vadd.s32 %v571, 216
      %v2841 = vadd.s32 %v571, 224
      %v2842 = vadd.s32 %v571, 232
      %v2843 = vadd.s32 %v571, 240
      %v2844 = vadd.s32 %v571, 248
      %vm2845 = vcmp.lt.s32.totalorder %v571, 128
      %vm2846 = vcmp.lt.s32.totalorder %v572, 128
      %vm2847 = vcmp.lt.s32.totalorder %v573, 128
      %vm2848 = vcmp.lt.s32.totalorder %v574, 128
      %vm2849 = vcmp.lt.s32.totalorder %v575, 128
      %vm2850 = vcmp.lt.s32.totalorder %v576, 128
      %vm2851 = vcmp.lt.s32.totalorder %v577, 128
      %vm2852 = vcmp.lt.s32.totalorder %v578, 128
      %vm2853 = vcmp.lt.s32.totalorder %v2821, 128
      %vm2854 = vcmp.lt.s32.totalorder %v2822, 128
      %vm2855 = vcmp.lt.s32.totalorder %v2823, 128
      %vm2856 = vcmp.lt.s32.totalorder %v2824, 128
      %vm2857 = vcmp.lt.s32.totalorder %v2825, 128
      %vm2858 = vcmp.lt.s32.totalorder %v2826, 128
      %vm2859 = vcmp.lt.s32.totalorder %v2827, 128
      %vm2860 = vcmp.lt.s32.totalorder %v2828, 128
      %vm2861 = vcmp.lt.s32.totalorder %v2829, 128
      %vm2862 = vcmp.lt.s32.totalorder %v2830, 128
      %vm2863 = vcmp.lt.s32.totalorder %v2831, 128
      %vm2864 = vcmp.lt.s32.totalorder %v2832, 128
      %vm2865 = vcmp.lt.s32.totalorder %v2833, 128
      %vm2866 = vcmp.lt.s32.totalorder %v2834, 128
      %vm2867 = vcmp.lt.s32.totalorder %v2835, 128
      %vm2868 = vcmp.lt.s32.totalorder %v2836, 128
      %vm2869 = vcmp.lt.s32.totalorder %v2837, 128
      %vm2870 = vcmp.lt.s32.totalorder %v2838, 128
      %vm2871 = vcmp.lt.s32.totalorder %v2839, 128
      %vm2872 = vcmp.lt.s32.totalorder %v2840, 128
      %vm2873 = vcmp.lt.s32.totalorder %v2841, 128
      %vm2874 = vcmp.lt.s32.totalorder %v2842, 128
      %vm2875 = vcmp.lt.s32.totalorder %v2843, 128
      %vm2876 = vcmp.lt.s32.totalorder %v2844, 128
      %v2877 = vsel %vm2845, 1, 0
      %v2878 = vsel %vm2846, 1, 0
      %v2879 = vsel %vm2847, 1, 0
      %v2880 = vsel %vm2848, 1, 0
      %v2881 = vsel %vm2849, 1, 0
      %v2882 = vsel %vm2850, 1, 0
      %v2883 = vsel %vm2851, 1, 0
      %v2884 = vsel %vm2852, 1, 0
      %v2885 = vsel %vm2853, 1, 0
      %v2886 = vsel %vm2854, 1, 0
      %v2887 = vsel %vm2855, 1, 0
      %v2888 = vsel %vm2856, 1, 0
      %v2889 = vsel %vm2857, 1, 0
      %v2890 = vsel %vm2858, 1, 0
      %v2891 = vsel %vm2859, 1, 0
      %v2892 = vsel %vm2860, 1, 0
      %v2893 = vsel %vm2861, 1, 0
      %v2894 = vsel %vm2862, 1, 0
      %v2895 = vsel %vm2863, 1, 0
      %v2896 = vsel %vm2864, 1, 0
      %v2897 = vsel %vm2865, 1, 0
      %v2898 = vsel %vm2866, 1, 0
      %v2899 = vsel %vm2867, 1, 0
      %v2900 = vsel %vm2868, 1, 0
      %v2901 = vsel %vm2869, 1, 0
      %v2902 = vsel %vm2870, 1, 0
      %v2903 = vsel %vm2871, 1, 0
      %v2904 = vsel %vm2872, 1, 0
      %v2905 = vsel %vm2873, 1, 0
      %v2906 = vsel %vm2874, 1, 0
      %v2907 = vsel %vm2875, 1, 0
      %v2908 = vsel %vm2876, 1, 0
      %vm2909 = vcmp.eq.s32.totalorder %v2877, 1
      %vm2910 = vcmp.eq.s32.totalorder %v2878, 1
      %vm2911 = vcmp.eq.s32.totalorder %v2879, 1
      %vm2912 = vcmp.eq.s32.totalorder %v2880, 1
      %vm2913 = vcmp.eq.s32.totalorder %v2881, 1
      %vm2914 = vcmp.eq.s32.totalorder %v2882, 1
      %vm2915 = vcmp.eq.s32.totalorder %v2883, 1
      %vm2916 = vcmp.eq.s32.totalorder %v2884, 1
      %vm2917 = vcmp.eq.s32.totalorder %v2885, 1
      %vm2918 = vcmp.eq.s32.totalorder %v2886, 1
      %vm2919 = vcmp.eq.s32.totalorder %v2887, 1
      %vm2920 = vcmp.eq.s32.totalorder %v2888, 1
      %vm2921 = vcmp.eq.s32.totalorder %v2889, 1
      %vm2922 = vcmp.eq.s32.totalorder %v2890, 1
      %vm2923 = vcmp.eq.s32.totalorder %v2891, 1
      %vm2924 = vcmp.eq.s32.totalorder %v2892, 1
      %vm2925 = vcmp.eq.s32.totalorder %v2893, 1
      %vm2926 = vcmp.eq.s32.totalorder %v2894, 1
      %vm2927 = vcmp.eq.s32.totalorder %v2895, 1
      %vm2928 = vcmp.eq.s32.totalorder %v2896, 1
      %vm2929 = vcmp.eq.s32.totalorder %v2897, 1
      %vm2930 = vcmp.eq.s32.totalorder %v2898, 1
      %vm2931 = vcmp.eq.s32.totalorder %v2899, 1
      %vm2932 = vcmp.eq.s32.totalorder %v2900, 1
      %vm2933 = vcmp.eq.s32.totalorder %v2901, 1
      %vm2934 = vcmp.eq.s32.totalorder %v2902, 1
      %vm2935 = vcmp.eq.s32.totalorder %v2903, 1
      %vm2936 = vcmp.eq.s32.totalorder %v2904, 1
      %vm2937 = vcmp.eq.s32.totalorder %v2905, 1
      %vm2938 = vcmp.eq.s32.totalorder %v2906, 1
      %vm2939 = vcmp.eq.s32.totalorder %v2907, 1
      %vm2940 = vcmp.eq.s32.totalorder %v2908, 1
      %v2941 = vsel %vm2909, %v2758, 0.0
      %v2942 = vsel %vm2910, %v2760, 0.0
      %v2943 = vsel %vm2911, %v2762, 0.0
      %v2944 = vsel %vm2912, %v2764, 0.0
      %v2945 = vsel %vm2913, %v2766, 0.0
      %v2946 = vsel %vm2914, %v2768, 0.0
      %v2947 = vsel %vm2915, %v2770, 0.0
      %v2948 = vsel %vm2916, %v2772, 0.0
      %v2949 = vsel %vm2917, %v2774, 0.0
      %v2950 = vsel %vm2918, %v2776, 0.0
      %v2951 = vsel %vm2919, %v2778, 0.0
      %v2952 = vsel %vm2920, %v2780, 0.0
      %v2953 = vsel %vm2921, %v2782, 0.0
      %v2954 = vsel %vm2922, %v2784, 0.0
      %v2955 = vsel %vm2923, %v2786, 0.0
      %v2956 = vsel %vm2924, %v2788, 0.0
      %v2957 = vsel %vm2925, %v2790, 0.0
      %v2958 = vsel %vm2926, %v2792, 0.0
      %v2959 = vsel %vm2927, %v2794, 0.0
      %v2960 = vsel %vm2928, %v2796, 0.0
      %v2961 = vsel %vm2929, %v2798, 0.0
      %v2962 = vsel %vm2930, %v2800, 0.0
      %v2963 = vsel %vm2931, %v2802, 0.0
      %v2964 = vsel %vm2932, %v2804, 0.0
      %v2965 = vsel %vm2933, %v2806, 0.0
      %v2966 = vsel %vm2934, %v2808, 0.0
      %v2967 = vsel %vm2935, %v2810, 0.0
      %v2968 = vsel %vm2936, %v2812, 0.0
      %v2969 = vsel %vm2937, %v2814, 0.0
      %v2970 = vsel %vm2938, %v2816, 0.0
      %v2971 = vsel %vm2939, %v2818, 0.0
      %v2972 = vsel %vm2940, %v2820, 0.0
      %v2973 = vsel %vm2909, 0.0, %v2758
      %v2974 = vsel %vm2910, 0.0, %v2760
      %v2975 = vsel %vm2911, 0.0, %v2762
      %v2976 = vsel %vm2912, 0.0, %v2764
      %v2977 = vsel %vm2913, 0.0, %v2766
      %v2978 = vsel %vm2914, 0.0, %v2768
      %v2979 = vsel %vm2915, 0.0, %v2770
      %v2980 = vsel %vm2916, 0.0, %v2772
      %v2981 = vsel %vm2917, 0.0, %v2774
      %v2982 = vsel %vm2918, 0.0, %v2776
      %v2983 = vsel %vm2919, 0.0, %v2778
      %v2984 = vsel %vm2920, 0.0, %v2780
      %v2985 = vsel %vm2921, 0.0, %v2782
      %v2986 = vsel %vm2922, 0.0, %v2784
      %v2987 = vsel %vm2923, 0.0, %v2786
      %v2988 = vsel %vm2924, 0.0, %v2788
      %v2989 = vsel %vm2925, 0.0, %v2790
      %v2990 = vsel %vm2926, 0.0, %v2792
      %v2991 = vsel %vm2927, 0.0, %v2794
      %v2992 = vsel %vm2928, 0.0, %v2796
      %v2993 = vsel %vm2929, 0.0, %v2798
      %v2994 = vsel %vm2930, 0.0, %v2800
      %v2995 = vsel %vm2931, 0.0, %v2802
      %v2996 = vsel %vm2932, 0.0, %v2804
      %v2997 = vsel %vm2933, 0.0, %v2806
      %v2998 = vsel %vm2934, 0.0, %v2808
      %v2999 = vsel %vm2935, 0.0, %v2810
      %v3000 = vsel %vm2936, 0.0, %v2812
      %v3001 = vsel %vm2937, 0.0, %v2814
      %v3002 = vsel %vm2938, 0.0, %v2816
      %v3003 = vsel %vm2939, 0.0, %v2818
      %v3004 = vsel %vm2940, 0.0, %v2820
      %3037 = vrot.lane.b32.xlu0 %v2973, 4
      %v3038 = vpop.permute.xlu0 %3037
      %3039 = vrot.lane.b32.xlu0 %v2974, 4
      %v3040 = vpop.permute.xlu0 %3039
      %3041 = vrot.lane.b32.xlu0 %v2975, 4
      %v3042 = vpop.permute.xlu0 %3041
      %3043 = vrot.lane.b32.xlu0 %v2976, 4
      %v3044 = vpop.permute.xlu0 %3043
      %3045 = vrot.lane.b32.xlu0 %v2977, 4
      %v3046 = vpop.permute.xlu0 %3045
      %3047 = vrot.lane.b32.xlu0 %v2978, 4
      %v3048 = vpop.permute.xlu0 %3047
      %3049 = vrot.lane.b32.xlu0 %v2979, 4
      %v3050 = vpop.permute.xlu0 %3049
      %3051 = vrot.lane.b32.xlu0 %v2980, 4
      %v3052 = vpop.permute.xlu0 %3051
      %3053 = vrot.lane.b32.xlu0 %v2981, 4
      %v3054 = vpop.permute.xlu0 %3053
      %3055 = vrot.lane.b32.xlu0 %v2982, 4
      %v3056 = vpop.permute.xlu0 %3055
      %3057 = vrot.lane.b32.xlu0 %v2983, 4
      %v3058 = vpop.permute.xlu0 %3057
      %3059 = vrot.lane.b32.xlu0 %v2984, 4
      %v3060 = vpop.permute.xlu0 %3059
      %3061 = vrot.lane.b32.xlu0 %v2985, 4
      %v3062 = vpop.permute.xlu0 %3061
      %3063 = vrot.lane.b32.xlu0 %v2986, 4
      %v3064 = vpop.permute.xlu0 %3063
      %3065 = vrot.lane.b32.xlu0 %v2987, 4
      %v3066 = vpop.permute.xlu0 %3065
      %3067 = vrot.lane.b32.xlu0 %v2988, 4
      %v3068 = vpop.permute.xlu0 %3067
      %3069 = vrot.lane.b32.xlu0 %v2989, 4
      %v3070 = vpop.permute.xlu0 %3069
      %3071 = vrot.lane.b32.xlu0 %v2990, 4
      %v3072 = vpop.permute.xlu0 %3071
      %3073 = vrot.lane.b32.xlu0 %v2991, 4
      %v3074 = vpop.permute.xlu0 %3073
      %3075 = vrot.lane.b32.xlu0 %v2992, 4
      %v3076 = vpop.permute.xlu0 %3075
      %3077 = vrot.lane.b32.xlu0 %v2993, 4
      %v3078 = vpop.permute.xlu0 %3077
      %3079 = vrot.lane.b32.xlu0 %v2994, 4
      %v3080 = vpop.permute.xlu0 %3079
      %3081 = vrot.lane.b32.xlu0 %v2995, 4
      %v3082 = vpop.permute.xlu0 %3081
      %3083 = vrot.lane.b32.xlu0 %v2996, 4
      %v3084 = vpop.permute.xlu0 %3083
      %3085 = vrot.lane.b32.xlu0 %v2997, 4
      %v3086 = vpop.permute.xlu0 %3085
      %3087 = vrot.lane.b32.xlu0 %v2998, 4
      %v3088 = vpop.permute.xlu0 %3087
      %3089 = vrot.lane.b32.xlu0 %v2999, 4
      %v3090 = vpop.permute.xlu0 %3089
      %3091 = vrot.lane.b32.xlu0 %v3000, 4
      %v3092 = vpop.permute.xlu0 %3091
      %3093 = vrot.lane.b32.xlu0 %v3001, 4
      %v3094 = vpop.permute.xlu0 %3093
      %3095 = vrot.lane.b32.xlu0 %v3002, 4
      %v3096 = vpop.permute.xlu0 %3095
      %3097 = vrot.lane.b32.xlu0 %v3003, 4
      %v3098 = vpop.permute.xlu0 %3097
      %3099 = vrot.lane.b32.xlu0 %v3004, 4
      %v3100 = vpop.permute.xlu0 %3099
      %v3133 = vsel %vm2655, %v2941, %v3038
      %v3134 = vsel %vm2655, %v2942, %v3040
      %v3135 = vsel %vm2655, %v2943, %v3042
      %v3136 = vsel %vm2655, %v2944, %v3044
      %v3137 = vsel %vm2655, %v2945, %v3046
      %v3138 = vsel %vm2655, %v2946, %v3048
      %v3139 = vsel %vm2655, %v2947, %v3050
      %v3140 = vsel %vm2655, %v2948, %v3052
      %v3141 = vsel %vm2655, %v2949, %v3054
      %v3142 = vsel %vm2655, %v2950, %v3056
      %v3143 = vsel %vm2655, %v2951, %v3058
      %v3144 = vsel %vm2655, %v2952, %v3060
      %v3145 = vsel %vm2655, %v2953, %v3062
      %v3146 = vsel %vm2655, %v2954, %v3064
      %v3147 = vsel %vm2655, %v2955, %v3066
      %v3148 = vsel %vm2655, %v2956, %v3068
      %v3149 = vsel %vm2655, %v2957, %v3070
      %v3150 = vsel %vm2655, %v2958, %v3072
      %v3151 = vsel %vm2655, %v2959, %v3074
      %v3152 = vsel %vm2655, %v2960, %v3076
      %v3153 = vsel %vm2655, %v2961, %v3078
      %v3154 = vsel %vm2655, %v2962, %v3080
      %v3155 = vsel %vm2655, %v2963, %v3082
      %v3156 = vsel %vm2655, %v2964, %v3084
      %v3157 = vsel %vm2655, %v2965, %v3086
      %v3158 = vsel %vm2655, %v2966, %v3088
      %v3159 = vsel %vm2655, %v2967, %v3090
      %v3160 = vsel %vm2655, %v2968, %v3092
      %v3161 = vsel %vm2655, %v2969, %v3094
      %v3162 = vsel %vm2655, %v2970, %v3096
      %v3163 = vsel %vm2655, %v2971, %v3098
      %v3164 = vsel %vm2655, %v2972, %v3100
      %3165 = vmatprep.subr.mxu0 0.0
      %3166 = vmatpush1.msra.mxu0 %v3133
      %3167 = vmatprep.subr.mxu0 0.0
      %3168 = vmatpush1.msra.mxu0 %v3134
      %3169 = vmatprep.subr.mxu0 0.0
      %3170 = vmatpush1.msra.mxu0 %v3135
      %3171 = vmatprep.subr.mxu0 0.0
      %3172 = vmatpush1.msra.mxu0 %v3136
      %3173 = vmatprep.subr.mxu0 0.0
      %3174 = vmatpush1.msra.mxu0 %v3137
      %3175 = vmatprep.subr.mxu0 0.0
      %3176 = vmatpush1.msra.mxu0 %v3138
      %3177 = vmatprep.subr.mxu0 0.0
      %3178 = vmatpush1.msra.mxu0 %v3139
      %3179 = vmatprep.subr.mxu0 0.0
      %3180 = vmatpush1.msra.mxu0 %v3140
      %3181 = vmatprep.subr.mxu0 0.0
      %3182 = vmatpush1.msra.mxu0 %v3141
      %3183 = vmatprep.subr.mxu0 0.0
      %3184 = vmatpush1.msra.mxu0 %v3142
      %3185 = vmatprep.subr.mxu0 0.0
      %3186 = vmatpush1.msra.mxu0 %v3143
      %3187 = vmatprep.subr.mxu0 0.0
      %3188 = vmatpush1.msra.mxu0 %v3144
      %3189 = vmatprep.subr.mxu0 0.0
      %3190 = vmatpush1.msra.mxu0 %v3145
      %3191 = vmatprep.subr.mxu0 0.0
      %3192 = vmatpush1.msra.mxu0 %v3146
      %3193 = vmatprep.subr.mxu0 0.0
      %3194 = vmatpush1.msra.mxu0 %v3147
      %3195 = vmatprep.subr.mxu0 0.0
      %3196 = vmatpush1.msra.mxu0 %v3148
      %3197 = vmatprep.subr.mxu0 0.0
      %3198 = vmatpush1.msra.mxu0 %v3149
      %3199 = vmatprep.subr.mxu0 0.0
      %3200 = vmatpush1.msra.mxu0 %v3150
      %3201 = vmatprep.subr.mxu0 0.0
      %3202 = vmatpush1.msra.mxu0 %v3151
      %3203 = vmatprep.subr.mxu0 0.0
      %3204 = vmatpush1.msra.mxu0 %v3152
      %3205 = vmatprep.subr.mxu0 0.0
      %3206 = vmatpush1.msra.mxu0 %v3153
      %3207 = vmatprep.subr.mxu0 0.0
      %3208 = vmatpush1.msra.mxu0 %v3154
      %3209 = vmatprep.subr.mxu0 0.0
      %3210 = vmatpush1.msra.mxu0 %v3155
      %3211 = vmatprep.subr.mxu0 0.0
      %3212 = vmatpush1.msra.mxu0 %v3156
      %3213 = vmatprep.subr.mxu0 0.0
      %3214 = vmatpush1.msra.mxu0 %v3157
      %3215 = vmatprep.subr.mxu0 0.0
      %3216 = vmatpush1.msra.mxu0 %v3158
      %3217 = vmatprep.subr.mxu0 0.0
      %3218 = vmatpush1.msra.mxu0 %v3159
      %3219 = vmatprep.subr.mxu0 0.0
      %3220 = vmatpush1.msra.mxu0 %v3160
      %3221 = vmatprep.subr.mxu0 0.0
      %3222 = vmatpush1.msra.mxu0 %v3161
      %3223 = vmatprep.subr.mxu0 0.0
      %3224 = vmatpush1.msra.mxu0 %v3162
      %3225 = vmatprep.subr.mxu0 0.0
      %3226 = vmatpush1.msra.mxu0 %v3163
      %3227 = vmatprep.subr.mxu0 0.0
      %3228 = vmatpush1.msra.mxu0 %v3164
      %3229 = vmatprep.mubr.f32.mxu0 %v620
      %3230 = vmatmul.mubr.f32.gmra.mrb[0].mxu0 %v619
      %v3231 = vpop.f32.mrb[0].mxu0
      %v3232 = vadd.f32 0.0, %v3231
      %v3233 = vpop.f32.mrb[0].mxu0
      %3234 = vmatprep.mubr.f32.mxu0 %v622
      %3235 = vmatmul.mubr.f32.gmra.mrb[0].mxu0 %v621
      %v3236 = vpop.f32.mrb[0].mxu0
      %v3237 = vadd.f32 0.0, %v3236
      %v3238 = vpop.f32.mrb[0].mxu0
      %3239 = vmatprep.mubr.f32.mxu0 %v624
      %3240 = vmatmul.mubr.f32.gmra.mrb[0].mxu0 %v623
      %v3241 = vpop.f32.mrb[0].mxu0
      %v3242 = vadd.f32 0.0, %v3241
      %v3243 = vpop.f32.mrb[0].mxu0
      %3244 = vmatprep.mubr.f32.mxu0 %v626
      %3245 = vmatmul.mubr.f32.gmra.mrb[0].mxu0 %v625
      %v3246 = vpop.f32.mrb[0].mxu0
      %v3247 = vadd.f32 0.0, %v3246
      %v3248 = vpop.f32.mrb[0].mxu0
      %3249 = vmatprep.mubr.f32.mxu0 %v628
      %3250 = vmatmul.mubr.f32.gmra.mrb[0].mxu0 %v627
      %v3251 = vpop.f32.mrb[0].mxu0
      %v3252 = vadd.f32 0.0, %v3251
      %v3253 = vpop.f32.mrb[0].mxu0
      %3254 = vmatprep.mubr.f32.mxu0 %v630
      %3255 = vmatmul.mubr.f32.gmra.mrb[0].mxu0 %v629
      %v3256 = vpop.f32.mrb[0].mxu0
      %v3257 = vadd.f32 0.0, %v3256
      %v3258 = vpop.f32.mrb[0].mxu0
      %3259 = vmatprep.mubr.f32.mxu0 %v632
      %3260 = vmatmul.mubr.f32.gmra.mrb[0].mxu0 %v631
      %v3261 = vpop.f32.mrb[0].mxu0
      %v3262 = vadd.f32 0.0, %v3261
      %v3263 = vpop.f32.mrb[0].mxu0
      %3264 = vmatprep.mubr.f32.mxu0 %v634
      %3265 = vmatmul.mubr.f32.gmra.mrb[0].mxu0 %v633
      %v3266 = vpop.f32.mrb[0].mxu0
      %v3267 = vadd.f32 0.0, %v3266
      %v3268 = vpop.f32.mrb[0].mxu0
      %3269 = vdwg.mxu0
      %3270 = vmatprep.subr.mxu0 0.0
      %3271 = vmatpush1.msra.mxu0 %v3232
      %3272 = vmatprep.subr.mxu0 0.0
      %3273 = vmatpush1.msra.mxu0 %v3237
      %3274 = vmatprep.subr.mxu0 0.0
      %3275 = vmatpush1.msra.mxu0 %v3242
      %3276 = vmatprep.subr.mxu0 0.0
      %3277 = vmatpush1.msra.mxu0 %v3247
      %3278 = vmatprep.subr.mxu0 0.0
      %3279 = vmatpush1.msra.mxu0 %v3252
      %3280 = vmatprep.subr.mxu0 0.0
      %3281 = vmatpush1.msra.mxu0 %v3257
      %3282 = vmatprep.subr.mxu0 0.0
      %3283 = vmatpush1.msra.mxu0 %v3262
      %3284 = vmatprep.subr.mxu0 0.0
      %3285 = vmatpush1.msra.mxu0 %v3267
      %3286 = vmatprep.subr.mxu0 0.0
      %3287 = vmatpush1.msra.mxu0 0.0
      %3288 = vmatprep.subr.mxu0 0.0
      %3289 = vmatpush1.msra.mxu0 0.0
      %3290 = vmatprep.subr.mxu0 0.0
      %3291 = vmatpush1.msra.mxu0 0.0
      %3292 = vmatprep.subr.mxu0 0.0
      %3293 = vmatpush1.msra.mxu0 0.0
      %3294 = vmatprep.subr.mxu0 0.0
      %3295 = vmatpush1.msra.mxu0 0.0
      %3296 = vmatprep.subr.mxu0 0.0
      %3297 = vmatpush1.msra.mxu0 0.0
      %3298 = vmatprep.subr.mxu0 0.0
      %3299 = vmatpush1.msra.mxu0 0.0
      %3300 = vmatprep.subr.mxu0 0.0
      %3301 = vmatpush1.msra.mxu0 0.0
      %3302 = vmatprep.subr.mxu0 0.0
      %3303 = vmatpush1.msra.mxu0 0.0
      %3304 = vmatprep.subr.mxu0 0.0
      %3305 = vmatpush1.msra.mxu0 0.0
      %3306 = vmatprep.subr.mxu0 0.0
      %3307 = vmatpush1.msra.mxu0 0.0
      %3308 = vmatprep.subr.mxu0 0.0
      %3309 = vmatpush1.msra.mxu0 0.0
      %3310 = vmatprep.subr.mxu0 0.0
      %3311 = vmatpush1.msra.mxu0 0.0
      %3312 = vmatprep.subr.mxu0 0.0
      %3313 = vmatpush1.msra.mxu0 0.0
      %3314 = vmatprep.subr.mxu0 0.0
      %3315 = vmatpush1.msra.mxu0 0.0
      %3316 = vmatprep.subr.mxu0 0.0
      %3317 = vmatpush1.msra.mxu0 0.0
      %3318 = vmatprep.subr.mxu0 0.0
      %3319 = vmatpush1.msra.mxu0 0.0
      %3320 = vmatprep.subr.mxu0 0.0
      %3321 = vmatpush1.msra.mxu0 0.0
      %3322 = vmatprep.subr.mxu0 0.0
      %3323 = vmatpush1.msra.mxu0 0.0
      %3324 = vmatprep.subr.mxu0 0.0
      %3325 = vmatpush1.msra.mxu0 0.0
      %3326 = vmatprep.subr.mxu0 0.0
      %3327 = vmatpush1.msra.mxu0 0.0
      %3328 = vmatprep.subr.mxu0 0.0
      %3329 = vmatpush1.msra.mxu0 0.0
      %3330 = vmatprep.subr.mxu0 0.0
      %3331 = vmatpush1.msra.mxu0 0.0
      %3332 = vmatprep.subr.mxu0 0.0
      %3333 = vmatpush1.msra.mxu0 0.0
      %3334 = vmatprep.mubr.f32.mxu0 0.0
      %3335 = vmatmul.mubr.f32.gmra.mrb[0].mxu0 %v637
      %v3336 = vpop.f32.mrb[0].mxu0
      %v3337 = vadd.f32 0.0, %v3336
      %v3338 = vpop.f32.mrb[0].mxu0
      %3339 = vmatprep.mubr.f32.mxu0 0.0
      %3340 = vmatmul.mubr.f32.gmra.mrb[0].mxu0 %v640
      %v3341 = vpop.f32.mrb[0].mxu0
      %v3342 = vadd.f32 0.0, %v3341
      %v3343 = vpop.f32.mrb[0].mxu0
      %3344 = vmatprep.mubr.f32.mxu0 0.0
      %3345 = vmatmul.mubr.f32.gmra.mrb[0].mxu0 %v643
      %v3346 = vpop.f32.mrb[0].mxu0
      %v3347 = vadd.f32 0.0, %v3346
      %v3348 = vpop.f32.mrb[0].mxu0
      %3349 = vmatprep.mubr.f32.mxu0 0.0
      %3350 = vmatmul.mubr.f32.gmra.mrb[0].mxu0 %v646
      %v3351 = vpop.f32.mrb[0].mxu0
      %v3352 = vadd.f32 0.0, %v3351
      %v3353 = vpop.f32.mrb[0].mxu0
      %3354 = vmatprep.mubr.f32.mxu0 0.0
      %3355 = vmatmul.mubr.f32.gmra.mrb[0].mxu0 %v649
      %v3356 = vpop.f32.mrb[0].mxu0
      %v3357 = vadd.f32 0.0, %v3356
      %v3358 = vpop.f32.mrb[0].mxu0
      %3359 = vmatprep.mubr.f32.mxu0 0.0
      %3360 = vmatmul.mubr.f32.gmra.mrb[0].mxu0 %v652
      %v3361 = vpop.f32.mrb[0].mxu0
      %v3362 = vadd.f32 0.0, %v3361
      %v3363 = vpop.f32.mrb[0].mxu0
      %3364 = vmatprep.mubr.f32.mxu0 0.0
      %3365 = vmatmul.mubr.f32.gmra.mrb[0].mxu0 %v655
      %v3366 = vpop.f32.mrb[0].mxu0
      %v3367 = vadd.f32 0.0, %v3366
      %v3368 = vpop.f32.mrb[0].mxu0
      %3369 = vmatprep.mubr.f32.mxu0 0.0
      %3370 = vmatmul.mubr.f32.gmra.mrb[0].mxu0 %v658
      %v3371 = vpop.f32.mrb[0].mxu0
      %v3372 = vadd.f32 0.0, %v3371
      %v3373 = vpop.f32.mrb[0].mxu0
      %3374 = vmatprep.mubr.f32.mxu0 0.0
      %3375 = vmatmul.mubr.f32.gmra.mrb[0].mxu0 %v661
      %v3376 = vpop.f32.mrb[0].mxu0
      %v3377 = vadd.f32 0.0, %v3376
      %v3378 = vpop.f32.mrb[0].mxu0
      %3379 = vmatprep.mubr.f32.mxu0 0.0
      %3380 = vmatmul.mubr.f32.gmra.mrb[0].mxu0 %v664
      %v3381 = vpop.f32.mrb[0].mxu0
      %v3382 = vadd.f32 0.0, %v3381
      %v3383 = vpop.f32.mrb[0].mxu0
      %3384 = vmatprep.mubr.f32.mxu0 0.0
      %3385 = vmatmul.mubr.f32.gmra.mrb[0].mxu0 %v667
      %v3386 = vpop.f32.mrb[0].mxu0
      %v3387 = vadd.f32 0.0, %v3386
      %v3388 = vpop.f32.mrb[0].mxu0
      %3389 = vmatprep.mubr.f32.mxu0 0.0
      %3390 = vmatmul.mubr.f32.gmra.mrb[0].mxu0 %v670
      %v3391 = vpop.f32.mrb[0].mxu0
      %v3392 = vadd.f32 0.0, %v3391
      %v3393 = vpop.f32.mrb[0].mxu0
      %3394 = vmatprep.mubr.f32.mxu0 0.0
      %3395 = vmatmul.mubr.f32.gmra.mrb[0].mxu0 %v673
      %v3396 = vpop.f32.mrb[0].mxu0
      %v3397 = vadd.f32 0.0, %v3396
      %v3398 = vpop.f32.mrb[0].mxu0
      %3399 = vmatprep.mubr.f32.mxu0 0.0
      %3400 = vmatmul.mubr.f32.gmra.mrb[0].mxu0 %v676
      %v3401 = vpop.f32.mrb[0].mxu0
      %v3402 = vadd.f32 0.0, %v3401
      %v3403 = vpop.f32.mrb[0].mxu0
      %3404 = vmatprep.mubr.f32.mxu0 0.0
      %3405 = vmatmul.mubr.f32.gmra.mrb[0].mxu0 %v679
      %v3406 = vpop.f32.mrb[0].mxu0
      %v3407 = vadd.f32 0.0, %v3406
      %v3408 = vpop.f32.mrb[0].mxu0
      %3409 = vmatprep.mubr.f32.mxu0 0.0
      %3410 = vmatmul.mubr.f32.gmra.mrb[0].mxu0 %v682
      %v3411 = vpop.f32.mrb[0].mxu0
      %v3412 = vadd.f32 0.0, %v3411
      %v3413 = vpop.f32.mrb[0].mxu0
      %3414 = vmatprep.mubr.f32.mxu0 0.0
      %3415 = vmatmul.mubr.f32.gmra.mrb[0].mxu0 %v685
      %v3416 = vpop.f32.mrb[0].mxu0
      %v3417 = vadd.f32 0.0, %v3416
      %v3418 = vpop.f32.mrb[0].mxu0
      %3419 = vmatprep.mubr.f32.mxu0 0.0
      %3420 = vmatmul.mubr.f32.gmra.mrb[0].mxu0 %v688
      %v3421 = vpop.f32.mrb[0].mxu0
      %v3422 = vadd.f32 0.0, %v3421
      %v3423 = vpop.f32.mrb[0].mxu0
      %3424 = vmatprep.mubr.f32.mxu0 0.0
      %3425 = vmatmul.mubr.f32.gmra.mrb[0].mxu0 %v691
      %v3426 = vpop.f32.mrb[0].mxu0
      %v3427 = vadd.f32 0.0, %v3426
      %v3428 = vpop.f32.mrb[0].mxu0
      %3429 = vmatprep.mubr.f32.mxu0 0.0
      %3430 = vmatmul.mubr.f32.gmra.mrb[0].mxu0 %v694
      %v3431 = vpop.f32.mrb[0].mxu0
      %v3432 = vadd.f32 0.0, %v3431
      %v3433 = vpop.f32.mrb[0].mxu0
      %3434 = vmatprep.mubr.f32.mxu0 0.0
      %3435 = vmatmul.mubr.f32.gmra.mrb[0].mxu0 %v697
      %v3436 = vpop.f32.mrb[0].mxu0
      %v3437 = vadd.f32 0.0, %v3436
      %v3438 = vpop.f32.mrb[0].mxu0
      %3439 = vmatprep.mubr.f32.mxu0 0.0
      %3440 = vmatmul.mubr.f32.gmra.mrb[0].mxu0 %v700
      %v3441 = vpop.f32.mrb[0].mxu0
      %v3442 = vadd.f32 0.0, %v3441
      %v3443 = vpop.f32.mrb[0].mxu0
      %3444 = vmatprep.mubr.f32.mxu0 0.0
      %3445 = vmatmul.mubr.f32.gmra.mrb[0].mxu0 %v703
      %v3446 = vpop.f32.mrb[0].mxu0
      %v3447 = vadd.f32 0.0, %v3446
      %v3448 = vpop.f32.mrb[0].mxu0
      %3449 = vmatprep.mubr.f32.mxu0 0.0
      %3450 = vmatmul.mubr.f32.gmra.mrb[0].mxu0 %v706
      %v3451 = vpop.f32.mrb[0].mxu0
      %v3452 = vadd.f32 0.0, %v3451
      %v3453 = vpop.f32.mrb[0].mxu0
      %3454 = vmatprep.mubr.f32.mxu0 0.0
      %3455 = vmatmul.mubr.f32.gmra.mrb[0].mxu0 %v709
      %v3456 = vpop.f32.mrb[0].mxu0
      %v3457 = vadd.f32 0.0, %v3456
      %v3458 = vpop.f32.mrb[0].mxu0
      %3459 = vmatprep.mubr.f32.mxu0 0.0
      %3460 = vmatmul.mubr.f32.gmra.mrb[0].mxu0 %v712
      %v3461 = vpop.f32.mrb[0].mxu0
      %v3462 = vadd.f32 0.0, %v3461
      %v3463 = vpop.f32.mrb[0].mxu0
      %3464 = vmatprep.mubr.f32.mxu0 0.0
      %3465 = vmatmul.mubr.f32.gmra.mrb[0].mxu0 %v715
      %v3466 = vpop.f32.mrb[0].mxu0
      %v3467 = vadd.f32 0.0, %v3466
      %v3468 = vpop.f32.mrb[0].mxu0
      %3469 = vmatprep.mubr.f32.mxu0 0.0
      %3470 = vmatmul.mubr.f32.gmra.mrb[0].mxu0 %v718
      %v3471 = vpop.f32.mrb[0].mxu0
      %v3472 = vadd.f32 0.0, %v3471
      %v3473 = vpop.f32.mrb[0].mxu0
      %3474 = vmatprep.mubr.f32.mxu0 0.0
      %3475 = vmatmul.mubr.f32.gmra.mrb[0].mxu0 %v721
      %v3476 = vpop.f32.mrb[0].mxu0
      %v3477 = vadd.f32 0.0, %v3476
      %v3478 = vpop.f32.mrb[0].mxu0
      %3479 = vmatprep.mubr.f32.mxu0 0.0
      %3480 = vmatmul.mubr.f32.gmra.mrb[0].mxu0 %v724
      %v3481 = vpop.f32.mrb[0].mxu0
      %v3482 = vadd.f32 0.0, %v3481
      %v3483 = vpop.f32.mrb[0].mxu0
      %3484 = vmatprep.mubr.f32.mxu0 0.0
      %3485 = vmatmul.mubr.f32.gmra.mrb[0].mxu0 %v727
      %v3486 = vpop.f32.mrb[0].mxu0
      %v3487 = vadd.f32 0.0, %v3486
      %v3488 = vpop.f32.mrb[0].mxu0
      %3489 = vmatprep.mubr.f32.mxu0 0.0
      %3490 = vmatmul.mubr.f32.gmra.mrb[0].mxu0 %v730
      %v3491 = vpop.f32.mrb[0].mxu0
      %v3492 = vadd.f32 0.0, %v3491
      %v3493 = vpop.f32.mrb[0].mxu0
      %3494 = vdwg.mxu0
      %3527 = vrot.lane.b32.xlu0 %v3337, 124
      %v3528 = vpop.permute.xlu0 %3527
      %3529 = vrot.lane.b32.xlu0 %v3342, 124
      %v3530 = vpop.permute.xlu0 %3529
      %3531 = vrot.lane.b32.xlu0 %v3347, 124
      %v3532 = vpop.permute.xlu0 %3531
      %3533 = vrot.lane.b32.xlu0 %v3352, 124
      %v3534 = vpop.permute.xlu0 %3533
      %3535 = vrot.lane.b32.xlu0 %v3357, 124
      %v3536 = vpop.permute.xlu0 %3535
      %3537 = vrot.lane.b32.xlu0 %v3362, 124
      %v3538 = vpop.permute.xlu0 %3537
      %3539 = vrot.lane.b32.xlu0 %v3367, 124
      %v3540 = vpop.permute.xlu0 %3539
      %3541 = vrot.lane.b32.xlu0 %v3372, 124
      %v3542 = vpop.permute.xlu0 %3541
      %3543 = vrot.lane.b32.xlu0 %v3377, 124
      %v3544 = vpop.permute.xlu0 %3543
      %3545 = vrot.lane.b32.xlu0 %v3382, 124
      %v3546 = vpop.permute.xlu0 %3545
      %3547 = vrot.lane.b32.xlu0 %v3387, 124
      %v3548 = vpop.permute.xlu0 %3547
      %3549 = vrot.lane.b32.xlu0 %v3392, 124
      %v3550 = vpop.permute.xlu0 %3549
      %3551 = vrot.lane.b32.xlu0 %v3397, 124
      %v3552 = vpop.permute.xlu0 %3551
      %3553 = vrot.lane.b32.xlu0 %v3402, 124
      %v3554 = vpop.permute.xlu0 %3553
      %3555 = vrot.lane.b32.xlu0 %v3407, 124
      %v3556 = vpop.permute.xlu0 %3555
      %3557 = vrot.lane.b32.xlu0 %v3412, 124
      %v3558 = vpop.permute.xlu0 %3557
      %3559 = vrot.lane.b32.xlu0 %v3417, 124
      %v3560 = vpop.permute.xlu0 %3559
      %3561 = vrot.lane.b32.xlu0 %v3422, 124
      %v3562 = vpop.permute.xlu0 %3561
      %3563 = vrot.lane.b32.xlu0 %v3427, 124
      %v3564 = vpop.permute.xlu0 %3563
      %3565 = vrot.lane.b32.xlu0 %v3432, 124
      %v3566 = vpop.permute.xlu0 %3565
      %3567 = vrot.lane.b32.xlu0 %v3437, 124
      %v3568 = vpop.permute.xlu0 %3567
      %3569 = vrot.lane.b32.xlu0 %v3442, 124
      %v3570 = vpop.permute.xlu0 %3569
      %3571 = vrot.lane.b32.xlu0 %v3447, 124
      %v3572 = vpop.permute.xlu0 %3571
      %3573 = vrot.lane.b32.xlu0 %v3452, 124
      %v3574 = vpop.permute.xlu0 %3573
      %3575 = vrot.lane.b32.xlu0 %v3457, 124
      %v3576 = vpop.permute.xlu0 %3575
      %3577 = vrot.lane.b32.xlu0 %v3462, 124
      %v3578 = vpop.permute.xlu0 %3577
      %3579 = vrot.lane.b32.xlu0 %v3467, 124
      %v3580 = vpop.permute.xlu0 %3579
      %3581 = vrot.lane.b32.xlu0 %v3472, 124
      %v3582 = vpop.permute.xlu0 %3581
      %3583 = vrot.lane.b32.xlu0 %v3477, 124
      %v3584 = vpop.permute.xlu0 %3583
      %3585 = vrot.lane.b32.xlu0 %v3482, 124
      %v3586 = vpop.permute.xlu0 %3585
      %3587 = vrot.lane.b32.xlu0 %v3487, 124
      %v3588 = vpop.permute.xlu0 %3587
      %3589 = vrot.lane.b32.xlu0 %v3492, 124
      %v3590 = vpop.permute.xlu0 %3589
      %v3623 = vsel %vm2909, %v3337, %v3528
      %v3624 = vsel %vm2910, %v3342, %v3530
      %v3625 = vsel %vm2911, %v3347, %v3532
      %v3626 = vsel %vm2912, %v3352, %v3534
      %v3627 = vsel %vm2913, %v3357, %v3536
      %v3628 = vsel %vm2914, %v3362, %v3538
      %v3629 = vsel %vm2915, %v3367, %v3540
      %v3630 = vsel %vm2916, %v3372, %v3542
      %v3631 = vsel %vm2917, %v3377, %v3544
      %v3632 = vsel %vm2918, %v3382, %v3546
      %v3633 = vsel %vm2919, %v3387, %v3548
      %v3634 = vsel %vm2920, %v3392, %v3550
      %v3635 = vsel %vm2921, %v3397, %v3552
      %v3636 = vsel %vm2922, %v3402, %v3554
      %v3637 = vsel %vm2923, %v3407, %v3556
      %v3638 = vsel %vm2924, %v3412, %v3558
      %v3639 = vsel %vm2925, %v3417, %v3560
      %v3640 = vsel %vm2926, %v3422, %v3562
      %v3641 = vsel %vm2927, %v3427, %v3564
      %v3642 = vsel %vm2928, %v3432, %v3566
      %v3643 = vsel %vm2929, %v3437, %v3568
      %v3644 = vsel %vm2930, %v3442, %v3570
      %v3645 = vsel %vm2931, %v3447, %v3572
      %v3646 = vsel %vm2932, %v3452, %v3574
      %v3647 = vsel %vm2933, %v3457, %v3576
      %v3648 = vsel %vm2934, %v3462, %v3578
      %v3649 = vsel %vm2935, %v3467, %v3580
      %v3650 = vsel %vm2936, %v3472, %v3582
      %v3651 = vsel %vm2937, %v3477, %v3584
      %v3652 = vsel %vm2938, %v3482, %v3586
      %v3653 = vsel %vm2939, %v3487, %v3588
      %v3654 = vsel %vm2940, %v3492, %v3590
      %v3655 = vrcp.pop %v3623
      %v3656 = vmul.f32 %v2758, %v3655
      %v3657 = vrcp.pop %v3624
      %v3658 = vmul.f32 %v2760, %v3657
      %v3659 = vrcp.pop %v3625
      %v3660 = vmul.f32 %v2762, %v3659
      %v3661 = vrcp.pop %v3626
      %v3662 = vmul.f32 %v2764, %v3661
      %v3663 = vrcp.pop %v3627
      %v3664 = vmul.f32 %v2766, %v3663
      %v3665 = vrcp.pop %v3628
      %v3666 = vmul.f32 %v2768, %v3665
      %v3667 = vrcp.pop %v3629
      %v3668 = vmul.f32 %v2770, %v3667
      %v3669 = vrcp.pop %v3630
      %v3670 = vmul.f32 %v2772, %v3669
      %v3671 = vrcp.pop %v3631
      %v3672 = vmul.f32 %v2774, %v3671
      %v3673 = vrcp.pop %v3632
      %v3674 = vmul.f32 %v2776, %v3673
      %v3675 = vrcp.pop %v3633
      %v3676 = vmul.f32 %v2778, %v3675
      %v3677 = vrcp.pop %v3634
      %v3678 = vmul.f32 %v2780, %v3677
      %v3679 = vrcp.pop %v3635
      %v3680 = vmul.f32 %v2782, %v3679
      %v3681 = vrcp.pop %v3636
      %v3682 = vmul.f32 %v2784, %v3681
      %v3683 = vrcp.pop %v3637
      %v3684 = vmul.f32 %v2786, %v3683
      %v3685 = vrcp.pop %v3638
      %v3686 = vmul.f32 %v2788, %v3685
      %v3687 = vrcp.pop %v3639
      %v3688 = vmul.f32 %v2790, %v3687
      %v3689 = vrcp.pop %v3640
      %v3690 = vmul.f32 %v2792, %v3689
      %v3691 = vrcp.pop %v3641
      %v3692 = vmul.f32 %v2794, %v3691
      %v3693 = vrcp.pop %v3642
      %v3694 = vmul.f32 %v2796, %v3693
      %v3695 = vrcp.pop %v3643
      %v3696 = vmul.f32 %v2798, %v3695
      %v3697 = vrcp.pop %v3644
      %v3698 = vmul.f32 %v2800, %v3697
      %v3699 = vrcp.pop %v3645
      %v3700 = vmul.f32 %v2802, %v3699
      %v3701 = vrcp.pop %v3646
      %v3702 = vmul.f32 %v2804, %v3701
      %v3703 = vrcp.pop %v3647
      %v3704 = vmul.f32 %v2806, %v3703
      %v3705 = vrcp.pop %v3648
      %v3706 = vmul.f32 %v2808, %v3705
      %v3707 = vrcp.pop %v3649
      %v3708 = vmul.f32 %v2810, %v3707
      %v3709 = vrcp.pop %v3650
      %v3710 = vmul.f32 %v2812, %v3709
      %v3711 = vrcp.pop %v3651
      %v3712 = vmul.f32 %v2814, %v3711
      %v3713 = vrcp.pop %v3652
      %v3714 = vmul.f32 %v2816, %v3713
      %v3715 = vrcp.pop %v3653
      %v3716 = vmul.f32 %v2818, %v3715
      %v3717 = vrcp.pop %v3654
      %v3718 = vmul.f32 %v2820, %v3717
      %v3719 = vsel %vm2655, %v3656, 0.0
      %3720 = vadd.xlane.f32.xlu0 %v3719
      %v3721 = vpop.xlane.xlu0 %3720
      %v3722 = vsel %vm2655, %v3658, 0.0
      %3723 = vadd.xlane.f32.xlu0 %v3722
      %v3724 = vpop.xlane.xlu0 %3723
      %v3725 = vsel %vm2655, %v3660, 0.0
      %3726 = vadd.xlane.f32.xlu0 %v3725
      %v3727 = vpop.xlane.xlu0 %3726
      %v3728 = vsel %vm2655, %v3662, 0.0
      %3729 = vadd.xlane.f32.xlu0 %v3728
      %v3730 = vpop.xlane.xlu0 %3729
      %v3731 = vsel %vm2655, %v3664, 0.0
      %3732 = vadd.xlane.f32.xlu0 %v3731
      %v3733 = vpop.xlane.xlu0 %3732
      %v3734 = vsel %vm2655, %v3666, 0.0
      %3735 = vadd.xlane.f32.xlu0 %v3734
      %v3736 = vpop.xlane.xlu0 %3735
      %v3737 = vsel %vm2655, %v3668, 0.0
      %3738 = vadd.xlane.f32.xlu0 %v3737
      %v3739 = vpop.xlane.xlu0 %3738
      %v3740 = vsel %vm2655, %v3670, 0.0
      %3741 = vadd.xlane.f32.xlu0 %v3740
      %v3742 = vpop.xlane.xlu0 %3741
      %v3743 = vsel %vm2655, %v3672, 0.0
      %3744 = vadd.xlane.f32.xlu0 %v3743
      %v3745 = vpop.xlane.xlu0 %3744
      %v3746 = vsel %vm2655, %v3674, 0.0
      %3747 = vadd.xlane.f32.xlu0 %v3746
      %v3748 = vpop.xlane.xlu0 %3747
      %v3749 = vsel %vm2655, %v3676, 0.0
      %3750 = vadd.xlane.f32.xlu0 %v3749
      %v3751 = vpop.xlane.xlu0 %3750
      %v3752 = vsel %vm2655, %v3678, 0.0
      %3753 = vadd.xlane.f32.xlu0 %v3752
      %v3754 = vpop.xlane.xlu0 %3753
      %v3755 = vsel %vm2655, %v3680, 0.0
      %3756 = vadd.xlane.f32.xlu0 %v3755
      %v3757 = vpop.xlane.xlu0 %3756
      %v3758 = vsel %vm2655, %v3682, 0.0
      %3759 = vadd.xlane.f32.xlu0 %v3758
      %v3760 = vpop.xlane.xlu0 %3759
      %v3761 = vsel %vm2655, %v3684, 0.0
      %3762 = vadd.xlane.f32.xlu0 %v3761
      %v3763 = vpop.xlane.xlu0 %3762
      %v3764 = vsel %vm2655, %v3686, 0.0
      %3765 = vadd.xlane.f32.xlu0 %v3764
      %v3766 = vpop.xlane.xlu0 %3765
      %v3767 = vsel %vm2655, %v3688, 0.0
      %3768 = vadd.xlane.f32.xlu0 %v3767
      %v3769 = vpop.xlane.xlu0 %3768
      %v3770 = vsel %vm2655, %v3690, 0.0
      %3771 = vadd.xlane.f32.xlu0 %v3770
      %v3772 = vpop.xlane.xlu0 %3771
      %v3773 = vsel %vm2655, %v3692, 0.0
      %3774 = vadd.xlane.f32.xlu0 %v3773
      %v3775 = vpop.xlane.xlu0 %3774
      %v3776 = vsel %vm2655, %v3694, 0.0
      %3777 = vadd.xlane.f32.xlu0 %v3776
      %v3778 = vpop.xlane.xlu0 %3777
      %v3779 = vsel %vm2655, %v3696, 0.0
      %3780 = vadd.xlane.f32.xlu0 %v3779
      %v3781 = vpop.xlane.xlu0 %3780
      %v3782 = vsel %vm2655, %v3698, 0.0
      %3783 = vadd.xlane.f32.xlu0 %v3782
      %v3784 = vpop.xlane.xlu0 %3783
      %v3785 = vsel %vm2655, %v3700, 0.0
      %3786 = vadd.xlane.f32.xlu0 %v3785
      %v3787 = vpop.xlane.xlu0 %3786
      %v3788 = vsel %vm2655, %v3702, 0.0
      %3789 = vadd.xlane.f32.xlu0 %v3788
      %v3790 = vpop.xlane.xlu0 %3789
      %v3791 = vsel %vm2655, %v3704, 0.0
      %3792 = vadd.xlane.f32.xlu0 %v3791
      %v3793 = vpop.xlane.xlu0 %3792
      %v3794 = vsel %vm2655, %v3706, 0.0
      %3795 = vadd.xlane.f32.xlu0 %v3794
      %v3796 = vpop.xlane.xlu0 %3795
      %v3797 = vsel %vm2655, %v3708, 0.0
      %3798 = vadd.xlane.f32.xlu0 %v3797
      %v3799 = vpop.xlane.xlu0 %3798
      %v3800 = vsel %vm2655, %v3710, 0.0
      %3801 = vadd.xlane.f32.xlu0 %v3800
      %v3802 = vpop.xlane.xlu0 %3801
      %v3803 = vsel %vm2655, %v3712, 0.0
      %3804 = vadd.xlane.f32.xlu0 %v3803
      %v3805 = vpop.xlane.xlu0 %3804
      %v3806 = vsel %vm2655, %v3714, 0.0
      %3807 = vadd.xlane.f32.xlu0 %v3806
      %v3808 = vpop.xlane.xlu0 %3807
      %v3809 = vsel %vm2655, %v3716, 0.0
      %3810 = vadd.xlane.f32.xlu0 %v3809
      %v3811 = vpop.xlane.xlu0 %3810
      %v3812 = vsel %vm2655, %v3718, 0.0
      %3813 = vadd.xlane.f32.xlu0 %v3812
      %v3814 = vpop.xlane.xlu0 %3813
      %v3815 = vmul.f32 %v3721, 0.25
      %v3816 = vmul.f32 %v3724, 0.25
      %v3817 = vmul.f32 %v3727, 0.25
      %v3818 = vmul.f32 %v3730, 0.25
      %v3819 = vmul.f32 %v3733, 0.25
      %v3820 = vmul.f32 %v3736, 0.25
      %v3821 = vmul.f32 %v3739, 0.25
      %v3822 = vmul.f32 %v3742, 0.25
      %v3823 = vmul.f32 %v3745, 0.25
      %v3824 = vmul.f32 %v3748, 0.25
      %v3825 = vmul.f32 %v3751, 0.25
      %v3826 = vmul.f32 %v3754, 0.25
      %v3827 = vmul.f32 %v3757, 0.25
      %v3828 = vmul.f32 %v3760, 0.25
      %v3829 = vmul.f32 %v3763, 0.25
      %v3830 = vmul.f32 %v3766, 0.25
      %v3831 = vmul.f32 %v3769, 0.25
      %v3832 = vmul.f32 %v3772, 0.25
      %v3833 = vmul.f32 %v3775, 0.25
      %v3834 = vmul.f32 %v3778, 0.25
      %v3835 = vmul.f32 %v3781, 0.25
      %v3836 = vmul.f32 %v3784, 0.25
      %v3837 = vmul.f32 %v3787, 0.25
      %v3838 = vmul.f32 %v3790, 0.25
      %v3839 = vmul.f32 %v3793, 0.25
      %v3840 = vmul.f32 %v3796, 0.25
      %v3841 = vmul.f32 %v3799, 0.25
      %v3842 = vmul.f32 %v3802, 0.25
      %v3843 = vmul.f32 %v3805, 0.25
      %v3844 = vmul.f32 %v3808, 0.25
      %v3845 = vmul.f32 %v3811, 0.25
      %v3846 = vmul.f32 %v3814, 0.25
      %3863 = vrot.lane.b32.xlu0 %v1377, 96
      %v3864 = vpop.permute.xlu0 %3863
      %3865 = vrot.lane.b32.xlu0 %v1383, 96
      %v3866 = vpop.permute.xlu0 %3865
      %3867 = vrot.lane.b32.xlu0 %v1389, 96
      %v3868 = vpop.permute.xlu0 %3867
      %3869 = vrot.lane.b32.xlu0 %v1395, 96
      %v3870 = vpop.permute.xlu0 %3869
      %3871 = vrot.lane.b32.xlu0 %v1401, 96
      %v3872 = vpop.permute.xlu0 %3871
      %3873 = vrot.lane.b32.xlu0 %v1407, 96
      %v3874 = vpop.permute.xlu0 %3873
      %3875 = vrot.lane.b32.xlu0 %v1413, 96
      %v3876 = vpop.permute.xlu0 %3875
      %3877 = vrot.lane.b32.xlu0 %v1419, 96
      %v3878 = vpop.permute.xlu0 %3877
      %3879 = vrot.lane.b32.xlu0 %v1425, 96
      %v3880 = vpop.permute.xlu0 %3879
      %3881 = vrot.lane.b32.xlu0 %v1431, 96
      %v3882 = vpop.permute.xlu0 %3881
      %3883 = vrot.lane.b32.xlu0 %v1437, 96
      %v3884 = vpop.permute.xlu0 %3883
      %3885 = vrot.lane.b32.xlu0 %v1443, 96
      %v3886 = vpop.permute.xlu0 %3885
      %3887 = vrot.lane.b32.xlu0 %v1449, 96
      %v3888 = vpop.permute.xlu0 %3887
      %3889 = vrot.lane.b32.xlu0 %v1455, 96
      %v3890 = vpop.permute.xlu0 %3889
      %3891 = vrot.lane.b32.xlu0 %v1461, 96
      %v3892 = vpop.permute.xlu0 %3891
      %3893 = vrot.lane.b32.xlu0 %v1467, 96
      %v3894 = vpop.permute.xlu0 %3893
      %v3911 = vmul.f32 %v3815, %v1377
      %v3912 = vmul.f32 %v3816, %v1383
      %v3913 = vmul.f32 %v3817, %v1389
      %v3914 = vmul.f32 %v3818, %v1395
      %v3915 = vmul.f32 %v3819, %v1401
      %v3916 = vmul.f32 %v3820, %v1407
      %v3917 = vmul.f32 %v3821, %v1413
      %v3918 = vmul.f32 %v3822, %v1419
      %v3919 = vmul.f32 %v3823, %v1425
      %v3920 = vmul.f32 %v3824, %v1431
      %v3921 = vmul.f32 %v3825, %v1437
      %v3922 = vmul.f32 %v3826, %v1443
      %v3923 = vmul.f32 %v3827, %v1449
      %v3924 = vmul.f32 %v3828, %v1455
      %v3925 = vmul.f32 %v3829, %v1461
      %v3926 = vmul.f32 %v3830, %v1467
      %v3927 = vmul.f32 %v3831, %v3864
      %v3928 = vmul.f32 %v3832, %v3866
      %v3929 = vmul.f32 %v3833, %v3868
      %v3930 = vmul.f32 %v3834, %v3870
      %v3931 = vmul.f32 %v3835, %v3872
      %v3932 = vmul.f32 %v3836, %v3874
      %v3933 = vmul.f32 %v3837, %v3876
      %v3934 = vmul.f32 %v3838, %v3878
      %v3935 = vmul.f32 %v3839, %v3880
      %v3936 = vmul.f32 %v3840, %v3882
      %v3937 = vmul.f32 %v3841, %v3884
      %v3938 = vmul.f32 %v3842, %v3886
      %v3939 = vmul.f32 %v3843, %v3888
      %v3940 = vmul.f32 %v3844, %v3890
      %v3941 = vmul.f32 %v3845, %v3892
      %v3942 = vmul.f32 %v3846, %v3894
      %3975 = vrot.lane.b32.xlu0 %v3911, 64
      %v3976 = vpop.permute.xlu0 %3975
      %3977 = vrot.lane.b32.xlu0 %v3912, 64
      %v3978 = vpop.permute.xlu0 %3977
      %3979 = vrot.lane.b32.xlu0 %v3913, 64
      %v3980 = vpop.permute.xlu0 %3979
      %3981 = vrot.lane.b32.xlu0 %v3914, 64
      %v3982 = vpop.permute.xlu0 %3981
      %3983 = vrot.lane.b32.xlu0 %v3915, 64
      %v3984 = vpop.permute.xlu0 %3983
      %3985 = vrot.lane.b32.xlu0 %v3916, 64
      %v3986 = vpop.permute.xlu0 %3985
      %3987 = vrot.lane.b32.xlu0 %v3917, 64
      %v3988 = vpop.permute.xlu0 %3987
      %3989 = vrot.lane.b32.xlu0 %v3918, 64
      %v3990 = vpop.permute.xlu0 %3989
      %3991 = vrot.lane.b32.xlu0 %v3919, 64
      %v3992 = vpop.permute.xlu0 %3991
      %3993 = vrot.lane.b32.xlu0 %v3920, 64
      %v3994 = vpop.permute.xlu0 %3993
      %3995 = vrot.lane.b32.xlu0 %v3921, 64
      %v3996 = vpop.permute.xlu0 %3995
      %3997 = vrot.lane.b32.xlu0 %v3922, 64
      %v3998 = vpop.permute.xlu0 %3997
      %3999 = vrot.lane.b32.xlu0 %v3923, 64
      %v4000 = vpop.permute.xlu0 %3999
      %4001 = vrot.lane.b32.xlu0 %v3924, 64
      %v4002 = vpop.permute.xlu0 %4001
      %4003 = vrot.lane.b32.xlu0 %v3925, 64
      %v4004 = vpop.permute.xlu0 %4003
      %4005 = vrot.lane.b32.xlu0 %v3926, 64
      %v4006 = vpop.permute.xlu0 %4005
      %4007 = vrot.lane.b32.xlu0 %v3927, 64
      %v4008 = vpop.permute.xlu0 %4007
      %4009 = vrot.lane.b32.xlu0 %v3928, 64
      %v4010 = vpop.permute.xlu0 %4009
      %4011 = vrot.lane.b32.xlu0 %v3929, 64
      %v4012 = vpop.permute.xlu0 %4011
      %4013 = vrot.lane.b32.xlu0 %v3930, 64
      %v4014 = vpop.permute.xlu0 %4013
      %4015 = vrot.lane.b32.xlu0 %v3931, 64
      %v4016 = vpop.permute.xlu0 %4015
      %4017 = vrot.lane.b32.xlu0 %v3932, 64
      %v4018 = vpop.permute.xlu0 %4017
      %4019 = vrot.lane.b32.xlu0 %v3933, 64
      %v4020 = vpop.permute.xlu0 %4019
      %4021 = vrot.lane.b32.xlu0 %v3934, 64
      %v4022 = vpop.permute.xlu0 %4021
      %4023 = vrot.lane.b32.xlu0 %v3935, 64
      %v4024 = vpop.permute.xlu0 %4023
      %4025 = vrot.lane.b32.xlu0 %v3936, 64
      %v4026 = vpop.permute.xlu0 %4025
      %4027 = vrot.lane.b32.xlu0 %v3937, 64
      %v4028 = vpop.permute.xlu0 %4027
      %4029 = vrot.lane.b32.xlu0 %v3938, 64
      %v4030 = vpop.permute.xlu0 %4029
      %4031 = vrot.lane.b32.xlu0 %v3939, 64
      %v4032 = vpop.permute.xlu0 %4031
      %4033 = vrot.lane.b32.xlu0 %v3940, 64
      %v4034 = vpop.permute.xlu0 %4033
      %4035 = vrot.lane.b32.xlu0 %v3941, 64
      %v4036 = vpop.permute.xlu0 %4035
      %4037 = vrot.lane.b32.xlu0 %v3942, 64
      %v4038 = vpop.permute.xlu0 %4037
      %4071 = vmatprep.subr.mxu0 0.0
      %4072 = vmatpush1.msra.mxu0 %v3976
      %4073 = vmatprep.subr.mxu0 0.0
      %4074 = vmatpush1.msra.mxu0 %v3978
      %4075 = vmatprep.subr.mxu0 0.0
      %4076 = vmatpush1.msra.mxu0 %v3980
      %4077 = vmatprep.subr.mxu0 0.0
      %4078 = vmatpush1.msra.mxu0 %v3982
      %4079 = vmatprep.subr.mxu0 0.0
      %4080 = vmatpush1.msra.mxu0 %v3984
      %4081 = vmatprep.subr.mxu0 0.0
      %4082 = vmatpush1.msra.mxu0 %v3986
      %4083 = vmatprep.subr.mxu0 0.0
      %4084 = vmatpush1.msra.mxu0 %v3988
      %4085 = vmatprep.subr.mxu0 0.0
      %4086 = vmatpush1.msra.mxu0 %v3990
      %4087 = vmatprep.subr.mxu0 0.0
      %4088 = vmatpush1.msra.mxu0 %v3992
      %4089 = vmatprep.subr.mxu0 0.0
      %4090 = vmatpush1.msra.mxu0 %v3994
      %4091 = vmatprep.subr.mxu0 0.0
      %4092 = vmatpush1.msra.mxu0 %v3996
      %4093 = vmatprep.subr.mxu0 0.0
      %4094 = vmatpush1.msra.mxu0 %v3998
      %4095 = vmatprep.subr.mxu0 0.0
      %4096 = vmatpush1.msra.mxu0 %v4000
      %4097 = vmatprep.subr.mxu0 0.0
      %4098 = vmatpush1.msra.mxu0 %v4002
      %4099 = vmatprep.subr.mxu0 0.0
      %4100 = vmatpush1.msra.mxu0 %v4004
      %4101 = vmatprep.subr.mxu0 0.0
      %4102 = vmatpush1.msra.mxu0 %v4006
      %4103 = vmatprep.subr.mxu0 0.0
      %4104 = vmatpush1.msra.mxu0 %v4008
      %4105 = vmatprep.subr.mxu0 0.0
      %4106 = vmatpush1.msra.mxu0 %v4010
      %4107 = vmatprep.subr.mxu0 0.0
      %4108 = vmatpush1.msra.mxu0 %v4012
      %4109 = vmatprep.subr.mxu0 0.0
      %4110 = vmatpush1.msra.mxu0 %v4014
      %4111 = vmatprep.subr.mxu0 0.0
      %4112 = vmatpush1.msra.mxu0 %v4016
      %4113 = vmatprep.subr.mxu0 0.0
      %4114 = vmatpush1.msra.mxu0 %v4018
      %4115 = vmatprep.subr.mxu0 0.0
      %4116 = vmatpush1.msra.mxu0 %v4020
      %4117 = vmatprep.subr.mxu0 0.0
      %4118 = vmatpush1.msra.mxu0 %v4022
      %4119 = vmatprep.subr.mxu0 0.0
      %4120 = vmatpush1.msra.mxu0 %v4024
      %4121 = vmatprep.subr.mxu0 0.0
      %4122 = vmatpush1.msra.mxu0 %v4026
      %4123 = vmatprep.subr.mxu0 0.0
      %4124 = vmatpush1.msra.mxu0 %v4028
      %4125 = vmatprep.subr.mxu0 0.0
      %4126 = vmatpush1.msra.mxu0 %v4030
      %4127 = vmatprep.subr.mxu0 0.0
      %4128 = vmatpush1.msra.mxu0 %v4032
      %4129 = vmatprep.subr.mxu0 0.0
      %4130 = vmatpush1.msra.mxu0 %v4034
      %4131 = vmatprep.subr.mxu0 0.0
      %4132 = vmatpush1.msra.mxu0 %v4036
      %4133 = vmatprep.subr.mxu0 0.0
      %4134 = vmatpush1.msra.mxu0 %v4038
      %4135 = vmatprep.mubr.f32.mxu0 %v620
      %4136 = vmatmul.mubr.f32.gmra.mrb[0].mxu0 %v619
      %v4137 = vpop.f32.mrb[0].mxu0
      %v4138 = vadd.f32 %v316, %v4137
      %v4139 = vpop.f32.mrb[0].mxu0
      %4140 = vmatprep.mubr.f32.mxu0 %v622
      %4141 = vmatmul.mubr.f32.gmra.mrb[0].mxu0 %v621
      %v4142 = vpop.f32.mrb[0].mxu0
      %v4143 = vadd.f32 %v317, %v4142
      %v4144 = vpop.f32.mrb[0].mxu0
      %4145 = vmatprep.mubr.f32.mxu0 %v624
      %4146 = vmatmul.mubr.f32.gmra.mrb[0].mxu0 %v623
      %v4147 = vpop.f32.mrb[0].mxu0
      %v4148 = vadd.f32 %v318, %v4147
      %v4149 = vpop.f32.mrb[0].mxu0
      %4150 = vmatprep.mubr.f32.mxu0 %v626
      %4151 = vmatmul.mubr.f32.gmra.mrb[0].mxu0 %v625
      %v4152 = vpop.f32.mrb[0].mxu0
      %v4153 = vadd.f32 %v319, %v4152
      %v4154 = vpop.f32.mrb[0].mxu0
      %4155 = vmatprep.mubr.f32.mxu0 %v628
      %4156 = vmatmul.mubr.f32.gmra.mrb[0].mxu0 %v627
      %v4157 = vpop.f32.mrb[0].mxu0
      %v4158 = vadd.f32 %v320, %v4157
      %v4159 = vpop.f32.mrb[0].mxu0
      %4160 = vmatprep.mubr.f32.mxu0 %v630
      %4161 = vmatmul.mubr.f32.gmra.mrb[0].mxu0 %v629
      %v4162 = vpop.f32.mrb[0].mxu0
      %v4163 = vadd.f32 %v321, %v4162
      %v4164 = vpop.f32.mrb[0].mxu0
      %4165 = vmatprep.mubr.f32.mxu0 %v632
      %4166 = vmatmul.mubr.f32.gmra.mrb[0].mxu0 %v631
      %v4167 = vpop.f32.mrb[0].mxu0
      %v4168 = vadd.f32 %v322, %v4167
      %v4169 = vpop.f32.mrb[0].mxu0
      %4170 = vmatprep.mubr.f32.mxu0 %v634
      %4171 = vmatmul.mubr.f32.gmra.mrb[0].mxu0 %v633
      %v4172 = vpop.f32.mrb[0].mxu0
      %v4173 = vadd.f32 %v323, %v4172
      %v4174 = vpop.f32.mrb[0].mxu0
      %4175 = vdwg.mxu0
      %v4176 = vadd.f32 %v2415, %v324
      %v4177 = vadd.f32 %v2416, %v325
      %v4178 = vadd.f32 %v2417, %v326
      %v4179 = vadd.f32 %v2418, %v327
      %v4180 = vadd.f32 %v2419, %v328
      %v4181 = vadd.f32 %v2420, %v329
      %v4182 = vadd.f32 %v2421, %v330
      %v4183 = vadd.f32 %v2422, %v331
      %v4184 = vadd.f32 %v2423, %v332
      %v4185 = vadd.f32 %v2424, %v333
      %v4186 = vadd.f32 %v2425, %v334
      %v4187 = vadd.f32 %v2426, %v335
      %v4188 = vadd.f32 %v2427, %v336
      %v4189 = vadd.f32 %v2428, %v337
      %v4190 = vadd.f32 %v2429, %v338
      %v4191 = vadd.f32 %v2430, %v339
      %vm4192 = vcmp.lt.s32.totalorder %v571, 64
      %vm4193 = vcmp.lt.s32.totalorder %v572, 64
      %vm4194 = vcmp.lt.s32.totalorder %v573, 64
      %vm4195 = vcmp.lt.s32.totalorder %v574, 64
      %vm4196 = vcmp.lt.s32.totalorder %v575, 64
      %vm4197 = vcmp.lt.s32.totalorder %v576, 64
      %vm4198 = vcmp.lt.s32.totalorder %v577, 64
      %vm4199 = vcmp.lt.s32.totalorder %v578, 64
      %vm4200 = vcmp.lt.s32.totalorder %v2821, 64
      %vm4201 = vcmp.lt.s32.totalorder %v2822, 64
      %vm4202 = vcmp.lt.s32.totalorder %v2823, 64
      %vm4203 = vcmp.lt.s32.totalorder %v2824, 64
      %vm4204 = vcmp.lt.s32.totalorder %v2825, 64
      %vm4205 = vcmp.lt.s32.totalorder %v2826, 64
      %vm4206 = vcmp.lt.s32.totalorder %v2827, 64
      %vm4207 = vcmp.lt.s32.totalorder %v2828, 64
      %vm4208 = vcmp.lt.s32.totalorder %v2829, 64
      %vm4209 = vcmp.lt.s32.totalorder %v2830, 64
      %vm4210 = vcmp.lt.s32.totalorder %v2831, 64
      %vm4211 = vcmp.lt.s32.totalorder %v2832, 64
      %vm4212 = vcmp.lt.s32.totalorder %v2833, 64
      %vm4213 = vcmp.lt.s32.totalorder %v2834, 64
      %vm4214 = vcmp.lt.s32.totalorder %v2835, 64
      %vm4215 = vcmp.lt.s32.totalorder %v2836, 64
      %v4216 = vsel %vm4192, 1, 0
      %v4217 = vsel %vm4193, 1, 0
      %v4218 = vsel %vm4194, 1, 0
      %v4219 = vsel %vm4195, 1, 0
      %v4220 = vsel %vm4196, 1, 0
      %v4221 = vsel %vm4197, 1, 0
      %v4222 = vsel %vm4198, 1, 0
      %v4223 = vsel %vm4199, 1, 0
      %v4224 = vsel %vm4200, 1, 0
      %v4225 = vsel %vm4201, 1, 0
      %v4226 = vsel %vm4202, 1, 0
      %v4227 = vsel %vm4203, 1, 0
      %v4228 = vsel %vm4204, 1, 0
      %v4229 = vsel %vm4205, 1, 0
      %v4230 = vsel %vm4206, 1, 0
      %v4231 = vsel %vm4207, 1, 0
      %v4232 = vsel %vm4208, 1, 0
      %v4233 = vsel %vm4209, 1, 0
      %v4234 = vsel %vm4210, 1, 0
      %v4235 = vsel %vm4211, 1, 0
      %v4236 = vsel %vm4212, 1, 0
      %v4237 = vsel %vm4213, 1, 0
      %v4238 = vsel %vm4214, 1, 0
      %v4239 = vsel %vm4215, 1, 0
      %vm4240 = vcmp.eq.s32.totalorder %v4216, 1
      %vm4241 = vcmp.eq.s32.totalorder %v4217, 1
      %vm4242 = vcmp.eq.s32.totalorder %v4218, 1
      %vm4243 = vcmp.eq.s32.totalorder %v4219, 1
      %vm4244 = vcmp.eq.s32.totalorder %v4220, 1
      %vm4245 = vcmp.eq.s32.totalorder %v4221, 1
      %vm4246 = vcmp.eq.s32.totalorder %v4222, 1
      %vm4247 = vcmp.eq.s32.totalorder %v4223, 1
      %vm4248 = vcmp.eq.s32.totalorder %v4224, 1
      %vm4249 = vcmp.eq.s32.totalorder %v4225, 1
      %vm4250 = vcmp.eq.s32.totalorder %v4226, 1
      %vm4251 = vcmp.eq.s32.totalorder %v4227, 1
      %vm4252 = vcmp.eq.s32.totalorder %v4228, 1
      %vm4253 = vcmp.eq.s32.totalorder %v4229, 1
      %vm4254 = vcmp.eq.s32.totalorder %v4230, 1
      %vm4255 = vcmp.eq.s32.totalorder %v4231, 1
      %vm4256 = vcmp.eq.s32.totalorder %v4232, 1
      %vm4257 = vcmp.eq.s32.totalorder %v4233, 1
      %vm4258 = vcmp.eq.s32.totalorder %v4234, 1
      %vm4259 = vcmp.eq.s32.totalorder %v4235, 1
      %vm4260 = vcmp.eq.s32.totalorder %v4236, 1
      %vm4261 = vcmp.eq.s32.totalorder %v4237, 1
      %vm4262 = vcmp.eq.s32.totalorder %v4238, 1
      %vm4263 = vcmp.eq.s32.totalorder %v4239, 1
      %v4264 = vlaneseq
      %v4265 = vshrl.u32 %v4264, 7
      %v4266 = vsub.s32 5, %v4265
      %v4267 = vrot.slane %v373, %v4266
      %v4268 = vlaneseq
      %v4269 = vshrl.u32 %v4268, 7
      %v4270 = vsub.s32 7, %v4269
      %v4271 = vrot.slane %v373, %v4270
      %v4272 = vsel %vm4240, %v4267, %v4271
      %v4273 = vsel %vm4241, %v4267, %v4271
      %v4274 = vsel %vm4242, %v4267, %v4271
      %v4275 = vsel %vm4243, %v4267, %v4271
      %v4276 = vsel %vm4244, %v4267, %v4271
      %v4277 = vsel %vm4245, %v4267, %v4271
      %v4278 = vsel %vm4246, %v4267, %v4271
      %v4279 = vsel %vm4247, %v4267, %v4271
      %v4280 = vsel %vm4248, %v4267, %v4271
      %v4281 = vsel %vm4249, %v4267, %v4271
      %v4282 = vsel %vm4250, %v4267, %v4271
      %v4283 = vsel %vm4251, %v4267, %v4271
      %v4284 = vsel %vm4252, %v4267, %v4271
      %v4285 = vsel %vm4253, %v4267, %v4271
      %v4286 = vsel %vm4254, %v4267, %v4271
      %v4287 = vsel %vm4255, %v4267, %v4271
      %v4288 = vsel %vm4256, %v4267, %v4271
      %v4289 = vsel %vm4257, %v4267, %v4271
      %v4290 = vsel %vm4258, %v4267, %v4271
      %v4291 = vsel %vm4259, %v4267, %v4271
      %v4292 = vsel %vm4260, %v4267, %v4271
      %v4293 = vsel %vm4261, %v4267, %v4271
      %v4294 = vsel %vm4262, %v4267, %v4271
      %v4295 = vsel %vm4263, %v4267, %v4271
      %v4296 = vlaneseq
      %v4297 = vshrl.u32 %v4296, 7
      %v4298 = vsub.s32 6, %v4297
      %v4299 = vrot.slane %v373, %v4298
      %v4300 = vlaneseq
      %v4301 = vshrl.u32 %v4300, 7
      %v4302 = vsub.s32 0, %v4301
      %v4303 = vrot.slane %v375, %v4302
      %v4304 = vsel %vm4240, %v4299, %v4303
      %v4305 = vsel %vm4241, %v4299, %v4303
      %v4306 = vsel %vm4242, %v4299, %v4303
      %v4307 = vsel %vm4243, %v4299, %v4303
      %v4308 = vsel %vm4244, %v4299, %v4303
      %v4309 = vsel %vm4245, %v4299, %v4303
      %v4310 = vsel %vm4246, %v4299, %v4303
      %v4311 = vsel %vm4247, %v4299, %v4303
      %v4312 = vsel %vm4248, %v4299, %v4303
      %v4313 = vsel %vm4249, %v4299, %v4303
      %v4314 = vsel %vm4250, %v4299, %v4303
      %v4315 = vsel %vm4251, %v4299, %v4303
      %v4316 = vsel %vm4252, %v4299, %v4303
      %v4317 = vsel %vm4253, %v4299, %v4303
      %v4318 = vsel %vm4254, %v4299, %v4303
      %v4319 = vsel %vm4255, %v4299, %v4303
      %v4320 = vsel %vm4256, %v4299, %v4303
      %v4321 = vsel %vm4257, %v4299, %v4303
      %v4322 = vsel %vm4258, %v4299, %v4303
      %v4323 = vsel %vm4259, %v4299, %v4303
      %v4324 = vsel %vm4260, %v4299, %v4303
      %v4325 = vsel %vm4261, %v4299, %v4303
      %v4326 = vsel %vm4262, %v4299, %v4303
      %v4327 = vsel %vm4263, %v4299, %v4303
      %v4328 = vsel %vm973, %v4138, 0.0
      %4329 = vadd.xlane.f32.xlu0 %v4328
      %v4330 = vpop.xlane.xlu0 %4329
      %v4331 = vsel %vm973, %v4143, 0.0
      %4332 = vadd.xlane.f32.xlu0 %v4331
      %v4333 = vpop.xlane.xlu0 %4332
      %v4334 = vsel %vm973, %v4148, 0.0
      %4335 = vadd.xlane.f32.xlu0 %v4334
      %v4336 = vpop.xlane.xlu0 %4335
      %v4337 = vsel %vm973, %v4153, 0.0
      %4338 = vadd.xlane.f32.xlu0 %v4337
      %v4339 = vpop.xlane.xlu0 %4338
      %v4340 = vsel %vm973, %v4158, 0.0
      %4341 = vadd.xlane.f32.xlu0 %v4340
      %v4342 = vpop.xlane.xlu0 %4341
      %v4343 = vsel %vm973, %v4163, 0.0
      %4344 = vadd.xlane.f32.xlu0 %v4343
      %v4345 = vpop.xlane.xlu0 %4344
      %v4346 = vsel %vm973, %v4168, 0.0
      %4347 = vadd.xlane.f32.xlu0 %v4346
      %v4348 = vpop.xlane.xlu0 %4347
      %v4349 = vsel %vm973, %v4173, 0.0
      %4350 = vadd.xlane.f32.xlu0 %v4349
      %v4351 = vpop.xlane.xlu0 %4350
      %v4352 = vsel %vm973, %v4176, 0.0
      %4353 = vadd.xlane.f32.xlu0 %v4352
      %v4354 = vpop.xlane.xlu0 %4353
      %v4355 = vsel %vm973, %v4177, 0.0
      %4356 = vadd.xlane.f32.xlu0 %v4355
      %v4357 = vpop.xlane.xlu0 %4356
      %v4358 = vsel %vm973, %v4178, 0.0
      %4359 = vadd.xlane.f32.xlu0 %v4358
      %v4360 = vpop.xlane.xlu0 %4359
      %v4361 = vsel %vm973, %v4179, 0.0
      %4362 = vadd.xlane.f32.xlu0 %v4361
      %v4363 = vpop.xlane.xlu0 %4362
      %v4364 = vsel %vm973, %v4180, 0.0
      %4365 = vadd.xlane.f32.xlu0 %v4364
      %v4366 = vpop.xlane.xlu0 %4365
      %v4367 = vsel %vm973, %v4181, 0.0
      %4368 = vadd.xlane.f32.xlu0 %v4367
      %v4369 = vpop.xlane.xlu0 %4368
      %v4370 = vsel %vm973, %v4182, 0.0
      %4371 = vadd.xlane.f32.xlu0 %v4370
      %v4372 = vpop.xlane.xlu0 %4371
      %v4373 = vsel %vm973, %v4183, 0.0
      %4374 = vadd.xlane.f32.xlu0 %v4373
      %v4375 = vpop.xlane.xlu0 %4374
      %v4376 = vsel %vm973, %v4184, 0.0
      %4377 = vadd.xlane.f32.xlu0 %v4376
      %v4378 = vpop.xlane.xlu0 %4377
      %v4379 = vsel %vm973, %v4185, 0.0
      %4380 = vadd.xlane.f32.xlu0 %v4379
      %v4381 = vpop.xlane.xlu0 %4380
      %v4382 = vsel %vm973, %v4186, 0.0
      %4383 = vadd.xlane.f32.xlu0 %v4382
      %v4384 = vpop.xlane.xlu0 %4383
      %v4385 = vsel %vm973, %v4187, 0.0
      %4386 = vadd.xlane.f32.xlu0 %v4385
      %v4387 = vpop.xlane.xlu0 %4386
      %v4388 = vsel %vm973, %v4188, 0.0
      %4389 = vadd.xlane.f32.xlu0 %v4388
      %v4390 = vpop.xlane.xlu0 %4389
      %v4391 = vsel %vm973, %v4189, 0.0
      %4392 = vadd.xlane.f32.xlu0 %v4391
      %v4393 = vpop.xlane.xlu0 %4392
      %v4394 = vsel %vm973, %v4190, 0.0
      %4395 = vadd.xlane.f32.xlu0 %v4394
      %v4396 = vpop.xlane.xlu0 %4395
      %v4397 = vsel %vm973, %v4191, 0.0
      %4398 = vadd.xlane.f32.xlu0 %v4397
      %v4399 = vpop.xlane.xlu0 %4398
      %v4400 = vrcp.pop 32.0
      %v4401 = vmul.f32 %v4330, %v4400
      %v4402 = vmul.f32 %v4333, %v4400
      %v4403 = vmul.f32 %v4336, %v4400
      %v4404 = vmul.f32 %v4339, %v4400
      %v4405 = vmul.f32 %v4342, %v4400
      %v4406 = vmul.f32 %v4345, %v4400
      %v4407 = vmul.f32 %v4348, %v4400
      %v4408 = vmul.f32 %v4351, %v4400
      %v4409 = vmul.f32 %v4354, %v4400
      %v4410 = vmul.f32 %v4357, %v4400
      %v4411 = vmul.f32 %v4360, %v4400
      %v4412 = vmul.f32 %v4363, %v4400
      %v4413 = vmul.f32 %v4366, %v4400
      %v4414 = vmul.f32 %v4369, %v4400
      %v4415 = vmul.f32 %v4372, %v4400
      %v4416 = vmul.f32 %v4375, %v4400
      %v4417 = vmul.f32 %v4378, %v4400
      %v4418 = vmul.f32 %v4381, %v4400
      %v4419 = vmul.f32 %v4384, %v4400
      %v4420 = vmul.f32 %v4387, %v4400
      %v4421 = vmul.f32 %v4390, %v4400
      %v4422 = vmul.f32 %v4393, %v4400
      %v4423 = vmul.f32 %v4396, %v4400
      %v4424 = vmul.f32 %v4399, %v4400
      %v4425 = vsub.f32 %v4138, %v4401
      %v4426 = vsub.f32 %v4143, %v4402
      %v4427 = vsub.f32 %v4148, %v4403
      %v4428 = vsub.f32 %v4153, %v4404
      %v4429 = vsub.f32 %v4158, %v4405
      %v4430 = vsub.f32 %v4163, %v4406
      %v4431 = vsub.f32 %v4168, %v4407
      %v4432 = vsub.f32 %v4173, %v4408
      %v4433 = vsub.f32 %v4176, %v4409
      %v4434 = vsub.f32 %v4177, %v4410
      %v4435 = vsub.f32 %v4178, %v4411
      %v4436 = vsub.f32 %v4179, %v4412
      %v4437 = vsub.f32 %v4180, %v4413
      %v4438 = vsub.f32 %v4181, %v4414
      %v4439 = vsub.f32 %v4182, %v4415
      %v4440 = vsub.f32 %v4183, %v4416
      %v4441 = vsub.f32 %v4184, %v4417
      %v4442 = vsub.f32 %v4185, %v4418
      %v4443 = vsub.f32 %v4186, %v4419
      %v4444 = vsub.f32 %v4187, %v4420
      %v4445 = vsub.f32 %v4188, %v4421
      %v4446 = vsub.f32 %v4189, %v4422
      %v4447 = vsub.f32 %v4190, %v4423
      %v4448 = vsub.f32 %v4191, %v4424
      %v4449 = vmul.f32 %v4425, %v4425
      %v4450 = vmul.f32 %v4426, %v4426
      %v4451 = vmul.f32 %v4427, %v4427
      %v4452 = vmul.f32 %v4428, %v4428
      %v4453 = vmul.f32 %v4429, %v4429
      %v4454 = vmul.f32 %v4430, %v4430
      %v4455 = vmul.f32 %v4431, %v4431
      %v4456 = vmul.f32 %v4432, %v4432
      %v4457 = vmul.f32 %v4433, %v4433
      %v4458 = vmul.f32 %v4434, %v4434
      %v4459 = vmul.f32 %v4435, %v4435
      %v4460 = vmul.f32 %v4436, %v4436
      %v4461 = vmul.f32 %v4437, %v4437
      %v4462 = vmul.f32 %v4438, %v4438
      %v4463 = vmul.f32 %v4439, %v4439
      %v4464 = vmul.f32 %v4440, %v4440
      %v4465 = vmul.f32 %v4441, %v4441
      %v4466 = vmul.f32 %v4442, %v4442
      %v4467 = vmul.f32 %v4443, %v4443
      %v4468 = vmul.f32 %v4444, %v4444
      %v4469 = vmul.f32 %v4445, %v4445
      %v4470 = vmul.f32 %v4446, %v4446
      %v4471 = vmul.f32 %v4447, %v4447
      %v4472 = vmul.f32 %v4448, %v4448
      %v4473 = vsel %vm973, %v4449, 0.0
      %4474 = vadd.xlane.f32.xlu0 %v4473
      %v4475 = vpop.xlane.xlu0 %4474
      %v4476 = vsel %vm973, %v4450, 0.0
      %4477 = vadd.xlane.f32.xlu0 %v4476
      %v4478 = vpop.xlane.xlu0 %4477
      %v4479 = vsel %vm973, %v4451, 0.0
      %4480 = vadd.xlane.f32.xlu0 %v4479
      %v4481 = vpop.xlane.xlu0 %4480
      %v4482 = vsel %vm973, %v4452, 0.0
      %4483 = vadd.xlane.f32.xlu0 %v4482
      %v4484 = vpop.xlane.xlu0 %4483
      %v4485 = vsel %vm973, %v4453, 0.0
      %4486 = vadd.xlane.f32.xlu0 %v4485
      %v4487 = vpop.xlane.xlu0 %4486
      %v4488 = vsel %vm973, %v4454, 0.0
      %4489 = vadd.xlane.f32.xlu0 %v4488
      %v4490 = vpop.xlane.xlu0 %4489
      %v4491 = vsel %vm973, %v4455, 0.0
      %4492 = vadd.xlane.f32.xlu0 %v4491
      %v4493 = vpop.xlane.xlu0 %4492
      %v4494 = vsel %vm973, %v4456, 0.0
      %4495 = vadd.xlane.f32.xlu0 %v4494
      %v4496 = vpop.xlane.xlu0 %4495
      %v4497 = vsel %vm973, %v4457, 0.0
      %4498 = vadd.xlane.f32.xlu0 %v4497
      %v4499 = vpop.xlane.xlu0 %4498
      %v4500 = vsel %vm973, %v4458, 0.0
      %4501 = vadd.xlane.f32.xlu0 %v4500
      %v4502 = vpop.xlane.xlu0 %4501
      %v4503 = vsel %vm973, %v4459, 0.0
      %4504 = vadd.xlane.f32.xlu0 %v4503
      %v4505 = vpop.xlane.xlu0 %4504
      %v4506 = vsel %vm973, %v4460, 0.0
      %4507 = vadd.xlane.f32.xlu0 %v4506
      %v4508 = vpop.xlane.xlu0 %4507
      %v4509 = vsel %vm973, %v4461, 0.0
      %4510 = vadd.xlane.f32.xlu0 %v4509
      %v4511 = vpop.xlane.xlu0 %4510
      %v4512 = vsel %vm973, %v4462, 0.0
      %4513 = vadd.xlane.f32.xlu0 %v4512
      %v4514 = vpop.xlane.xlu0 %4513
      %v4515 = vsel %vm973, %v4463, 0.0
      %4516 = vadd.xlane.f32.xlu0 %v4515
      %v4517 = vpop.xlane.xlu0 %4516
      %v4518 = vsel %vm973, %v4464, 0.0
      %4519 = vadd.xlane.f32.xlu0 %v4518
      %v4520 = vpop.xlane.xlu0 %4519
      %v4521 = vsel %vm973, %v4465, 0.0
      %4522 = vadd.xlane.f32.xlu0 %v4521
      %v4523 = vpop.xlane.xlu0 %4522
      %v4524 = vsel %vm973, %v4466, 0.0
      %4525 = vadd.xlane.f32.xlu0 %v4524
      %v4526 = vpop.xlane.xlu0 %4525
      %v4527 = vsel %vm973, %v4467, 0.0
      %4528 = vadd.xlane.f32.xlu0 %v4527
      %v4529 = vpop.xlane.xlu0 %4528
      %v4530 = vsel %vm973, %v4468, 0.0
      %4531 = vadd.xlane.f32.xlu0 %v4530
      %v4532 = vpop.xlane.xlu0 %4531
      %v4533 = vsel %vm973, %v4469, 0.0
      %4534 = vadd.xlane.f32.xlu0 %v4533
      %v4535 = vpop.xlane.xlu0 %4534
      %v4536 = vsel %vm973, %v4470, 0.0
      %4537 = vadd.xlane.f32.xlu0 %v4536
      %v4538 = vpop.xlane.xlu0 %4537
      %v4539 = vsel %vm973, %v4471, 0.0
      %4540 = vadd.xlane.f32.xlu0 %v4539
      %v4541 = vpop.xlane.xlu0 %4540
      %v4542 = vsel %vm973, %v4472, 0.0
      %4543 = vadd.xlane.f32.xlu0 %v4542
      %v4544 = vpop.xlane.xlu0 %4543
      %v4545 = vmul.f32 %v4475, %v4400
      %v4546 = vmul.f32 %v4478, %v4400
      %v4547 = vmul.f32 %v4481, %v4400
      %v4548 = vmul.f32 %v4484, %v4400
      %v4549 = vmul.f32 %v4487, %v4400
      %v4550 = vmul.f32 %v4490, %v4400
      %v4551 = vmul.f32 %v4493, %v4400
      %v4552 = vmul.f32 %v4496, %v4400
      %v4553 = vmul.f32 %v4499, %v4400
      %v4554 = vmul.f32 %v4502, %v4400
      %v4555 = vmul.f32 %v4505, %v4400
      %v4556 = vmul.f32 %v4508, %v4400
      %v4557 = vmul.f32 %v4511, %v4400
      %v4558 = vmul.f32 %v4514, %v4400
      %v4559 = vmul.f32 %v4517, %v4400
      %v4560 = vmul.f32 %v4520, %v4400
      %v4561 = vmul.f32 %v4523, %v4400
      %v4562 = vmul.f32 %v4526, %v4400
      %v4563 = vmul.f32 %v4529, %v4400
      %v4564 = vmul.f32 %v4532, %v4400
      %v4565 = vmul.f32 %v4535, %v4400
      %v4566 = vmul.f32 %v4538, %v4400
      %v4567 = vmul.f32 %v4541, %v4400
      %v4568 = vmul.f32 %v4544, %v4400
      %v4569 = vadd.f32 %v4545, 1e-05
      %v4570 = vadd.f32 %v4546, 1e-05
      %v4571 = vadd.f32 %v4547, 1e-05
      %v4572 = vadd.f32 %v4548, 1e-05
      %v4573 = vadd.f32 %v4549, 1e-05
      %v4574 = vadd.f32 %v4550, 1e-05
      %v4575 = vadd.f32 %v4551, 1e-05
      %v4576 = vadd.f32 %v4552, 1e-05
      %v4577 = vadd.f32 %v4553, 1e-05
      %v4578 = vadd.f32 %v4554, 1e-05
      %v4579 = vadd.f32 %v4555, 1e-05
      %v4580 = vadd.f32 %v4556, 1e-05
      %v4581 = vadd.f32 %v4557, 1e-05
      %v4582 = vadd.f32 %v4558, 1e-05
      %v4583 = vadd.f32 %v4559, 1e-05
      %v4584 = vadd.f32 %v4560, 1e-05
      %v4585 = vadd.f32 %v4561, 1e-05
      %v4586 = vadd.f32 %v4562, 1e-05
      %v4587 = vadd.f32 %v4563, 1e-05
      %v4588 = vadd.f32 %v4564, 1e-05
      %v4589 = vadd.f32 %v4565, 1e-05
      %v4590 = vadd.f32 %v4566, 1e-05
      %v4591 = vadd.f32 %v4567, 1e-05
      %v4592 = vadd.f32 %v4568, 1e-05
      %v4593 = vrsqrt.pop %v4569
      %v4594 = vrsqrt.pop %v4570
      %v4595 = vrsqrt.pop %v4571
      %v4596 = vrsqrt.pop %v4572
      %v4597 = vrsqrt.pop %v4573
      %v4598 = vrsqrt.pop %v4574
      %v4599 = vrsqrt.pop %v4575
      %v4600 = vrsqrt.pop %v4576
      %v4601 = vrsqrt.pop %v4577
      %v4602 = vrsqrt.pop %v4578
      %v4603 = vrsqrt.pop %v4579
      %v4604 = vrsqrt.pop %v4580
      %v4605 = vrsqrt.pop %v4581
      %v4606 = vrsqrt.pop %v4582
      %v4607 = vrsqrt.pop %v4583
      %v4608 = vrsqrt.pop %v4584
      %v4609 = vrsqrt.pop %v4585
      %v4610 = vrsqrt.pop %v4586
      %v4611 = vrsqrt.pop %v4587
      %v4612 = vrsqrt.pop %v4588
      %v4613 = vrsqrt.pop %v4589
      %v4614 = vrsqrt.pop %v4590
      %v4615 = vrsqrt.pop %v4591
      %v4616 = vrsqrt.pop %v4592
      %v4617 = vmul.f32 %v4425, %v4593
      %v4618 = vmul.f32 %v4426, %v4594
      %v4619 = vmul.f32 %v4427, %v4595
      %v4620 = vmul.f32 %v4428, %v4596
      %v4621 = vmul.f32 %v4429, %v4597
      %v4622 = vmul.f32 %v4430, %v4598
      %v4623 = vmul.f32 %v4431, %v4599
      %v4624 = vmul.f32 %v4432, %v4600
      %v4625 = vmul.f32 %v4433, %v4601
      %v4626 = vmul.f32 %v4434, %v4602
      %v4627 = vmul.f32 %v4435, %v4603
      %v4628 = vmul.f32 %v4436, %v4604
      %v4629 = vmul.f32 %v4437, %v4605
      %v4630 = vmul.f32 %v4438, %v4606
      %v4631 = vmul.f32 %v4439, %v4607
      %v4632 = vmul.f32 %v4440, %v4608
      %v4633 = vmul.f32 %v4441, %v4609
      %v4634 = vmul.f32 %v4442, %v4610
      %v4635 = vmul.f32 %v4443, %v4611
      %v4636 = vmul.f32 %v4444, %v4612
      %v4637 = vmul.f32 %v4445, %v4613
      %v4638 = vmul.f32 %v4446, %v4614
      %v4639 = vmul.f32 %v4447, %v4615
      %v4640 = vmul.f32 %v4448, %v4616
      %v4641 = vmul.f32 %v4617, %v4272
      %v4642 = vmul.f32 %v4618, %v4273
      %v4643 = vmul.f32 %v4619, %v4274
      %v4644 = vmul.f32 %v4620, %v4275
      %v4645 = vmul.f32 %v4621, %v4276
      %v4646 = vmul.f32 %v4622, %v4277
      %v4647 = vmul.f32 %v4623, %v4278
      %v4648 = vmul.f32 %v4624, %v4279
      %v4649 = vmul.f32 %v4625, %v4280
      %v4650 = vmul.f32 %v4626, %v4281
      %v4651 = vmul.f32 %v4627, %v4282
      %v4652 = vmul.f32 %v4628, %v4283
      %v4653 = vmul.f32 %v4629, %v4284
      %v4654 = vmul.f32 %v4630, %v4285
      %v4655 = vmul.f32 %v4631, %v4286
      %v4656 = vmul.f32 %v4632, %v4287
      %v4657 = vmul.f32 %v4633, %v4288
      %v4658 = vmul.f32 %v4634, %v4289
      %v4659 = vmul.f32 %v4635, %v4290
      %v4660 = vmul.f32 %v4636, %v4291
      %v4661 = vmul.f32 %v4637, %v4292
      %v4662 = vmul.f32 %v4638, %v4293
      %v4663 = vmul.f32 %v4639, %v4294
      %v4664 = vmul.f32 %v4640, %v4295
      %v4665 = vadd.f32 %v4641, %v4304
      %v4666 = vadd.f32 %v4642, %v4305
      %v4667 = vadd.f32 %v4643, %v4306
      %v4668 = vadd.f32 %v4644, %v4307
      %v4669 = vadd.f32 %v4645, %v4308
      %v4670 = vadd.f32 %v4646, %v4309
      %v4671 = vadd.f32 %v4647, %v4310
      %v4672 = vadd.f32 %v4648, %v4311
      %v4673 = vadd.f32 %v4649, %v4312
      %v4674 = vadd.f32 %v4650, %v4313
      %v4675 = vadd.f32 %v4651, %v4314
      %v4676 = vadd.f32 %v4652, %v4315
      %v4677 = vadd.f32 %v4653, %v4316
      %v4678 = vadd.f32 %v4654, %v4317
      %v4679 = vadd.f32 %v4655, %v4318
      %v4680 = vadd.f32 %v4656, %v4319
      %v4681 = vadd.f32 %v4657, %v4320
      %v4682 = vadd.f32 %v4658, %v4321
      %v4683 = vadd.f32 %v4659, %v4322
      %v4684 = vadd.f32 %v4660, %v4323
      %v4685 = vadd.f32 %v4661, %v4324
      %v4686 = vadd.f32 %v4662, %v4325
      %v4687 = vadd.f32 %v4663, %v4326
      %v4688 = vadd.f32 %v4664, %v4327
      %v4689 = vsel %vm4240, %v4665, 0.0
      %v4690 = vsel %vm4241, %v4666, 0.0
      %v4691 = vsel %vm4242, %v4667, 0.0
      %v4692 = vsel %vm4243, %v4668, 0.0
      %v4693 = vsel %vm4244, %v4669, 0.0
      %v4694 = vsel %vm4245, %v4670, 0.0
      %v4695 = vsel %vm4246, %v4671, 0.0
      %v4696 = vsel %vm4247, %v4672, 0.0
      %v4697 = vsel %vm4248, %v4673, 0.0
      %v4698 = vsel %vm4249, %v4674, 0.0
      %v4699 = vsel %vm4250, %v4675, 0.0
      %v4700 = vsel %vm4251, %v4676, 0.0
      %v4701 = vsel %vm4252, %v4677, 0.0
      %v4702 = vsel %vm4253, %v4678, 0.0
      %v4703 = vsel %vm4254, %v4679, 0.0
      %v4704 = vsel %vm4255, %v4680, 0.0
      %v4705 = vsel %vm4256, %v4681, 0.0
      %v4706 = vsel %vm4257, %v4682, 0.0
      %v4707 = vsel %vm4258, %v4683, 0.0
      %v4708 = vsel %vm4259, %v4684, 0.0
      %v4709 = vsel %vm4260, %v4685, 0.0
      %v4710 = vsel %vm4261, %v4686, 0.0
      %v4711 = vsel %vm4262, %v4687, 0.0
      %v4712 = vsel %vm4263, %v4688, 0.0
      %v4713 = vsel %vm4240, 0.0, %v4665
      %v4714 = vsel %vm4241, 0.0, %v4666
      %v4715 = vsel %vm4242, 0.0, %v4667
      %v4716 = vsel %vm4243, 0.0, %v4668
      %v4717 = vsel %vm4244, 0.0, %v4669
      %v4718 = vsel %vm4245, 0.0, %v4670
      %v4719 = vsel %vm4246, 0.0, %v4671
      %v4720 = vsel %vm4247, 0.0, %v4672
      %v4721 = vsel %vm4248, 0.0, %v4673
      %v4722 = vsel %vm4249, 0.0, %v4674
      %v4723 = vsel %vm4250, 0.0, %v4675
      %v4724 = vsel %vm4251, 0.0, %v4676
      %v4725 = vsel %vm4252, 0.0, %v4677
      %v4726 = vsel %vm4253, 0.0, %v4678
      %v4727 = vsel %vm4254, 0.0, %v4679
      %v4728 = vsel %vm4255, 0.0, %v4680
      %v4729 = vsel %vm4256, 0.0, %v4681
      %v4730 = vsel %vm4257, 0.0, %v4682
      %v4731 = vsel %vm4258, 0.0, %v4683
      %v4732 = vsel %vm4259, 0.0, %v4684
      %v4733 = vsel %vm4260, 0.0, %v4685
      %v4734 = vsel %vm4261, 0.0, %v4686
      %v4735 = vsel %vm4262, 0.0, %v4687
      %v4736 = vsel %vm4263, 0.0, %v4688
      %4761 = vrot.lane.b32.xlu0 %v4713, 32
      %v4762 = vpop.permute.xlu0 %4761
      %4763 = vrot.lane.b32.xlu0 %v4714, 32
      %v4764 = vpop.permute.xlu0 %4763
      %4765 = vrot.lane.b32.xlu0 %v4715, 32
      %v4766 = vpop.permute.xlu0 %4765
      %4767 = vrot.lane.b32.xlu0 %v4716, 32
      %v4768 = vpop.permute.xlu0 %4767
      %4769 = vrot.lane.b32.xlu0 %v4717, 32
      %v4770 = vpop.permute.xlu0 %4769
      %4771 = vrot.lane.b32.xlu0 %v4718, 32
      %v4772 = vpop.permute.xlu0 %4771
      %4773 = vrot.lane.b32.xlu0 %v4719, 32
      %v4774 = vpop.permute.xlu0 %4773
      %4775 = vrot.lane.b32.xlu0 %v4720, 32
      %v4776 = vpop.permute.xlu0 %4775
      %4777 = vrot.lane.b32.xlu0 %v4721, 32
      %v4778 = vpop.permute.xlu0 %4777
      %4779 = vrot.lane.b32.xlu0 %v4722, 32
      %v4780 = vpop.permute.xlu0 %4779
      %4781 = vrot.lane.b32.xlu0 %v4723, 32
      %v4782 = vpop.permute.xlu0 %4781
      %4783 = vrot.lane.b32.xlu0 %v4724, 32
      %v4784 = vpop.permute.xlu0 %4783
      %4785 = vrot.lane.b32.xlu0 %v4725, 32
      %v4786 = vpop.permute.xlu0 %4785
      %4787 = vrot.lane.b32.xlu0 %v4726, 32
      %v4788 = vpop.permute.xlu0 %4787
      %4789 = vrot.lane.b32.xlu0 %v4727, 32
      %v4790 = vpop.permute.xlu0 %4789
      %4791 = vrot.lane.b32.xlu0 %v4728, 32
      %v4792 = vpop.permute.xlu0 %4791
      %4793 = vrot.lane.b32.xlu0 %v4729, 32
      %v4794 = vpop.permute.xlu0 %4793
      %4795 = vrot.lane.b32.xlu0 %v4730, 32
      %v4796 = vpop.permute.xlu0 %4795
      %4797 = vrot.lane.b32.xlu0 %v4731, 32
      %v4798 = vpop.permute.xlu0 %4797
      %4799 = vrot.lane.b32.xlu0 %v4732, 32
      %v4800 = vpop.permute.xlu0 %4799
      %4801 = vrot.lane.b32.xlu0 %v4733, 32
      %v4802 = vpop.permute.xlu0 %4801
      %4803 = vrot.lane.b32.xlu0 %v4734, 32
      %v4804 = vpop.permute.xlu0 %4803
      %4805 = vrot.lane.b32.xlu0 %v4735, 32
      %v4806 = vpop.permute.xlu0 %4805
      %4807 = vrot.lane.b32.xlu0 %v4736, 32
      %v4808 = vpop.permute.xlu0 %4807
      %v4833 = vsel %vm973, %v4689, %v4762
      %v4834 = vsel %vm973, %v4690, %v4764
      %v4835 = vsel %vm973, %v4691, %v4766
      %v4836 = vsel %vm973, %v4692, %v4768
      %v4837 = vsel %vm973, %v4693, %v4770
      %v4838 = vsel %vm973, %v4694, %v4772
      %v4839 = vsel %vm973, %v4695, %v4774
      %v4840 = vsel %vm973, %v4696, %v4776
      %v4841 = vsel %vm973, %v4697, %v4778
      %v4842 = vsel %vm973, %v4698, %v4780
      %v4843 = vsel %vm973, %v4699, %v4782
      %v4844 = vsel %vm973, %v4700, %v4784
      %v4845 = vsel %vm973, %v4701, %v4786
      %v4846 = vsel %vm973, %v4702, %v4788
      %v4847 = vsel %vm973, %v4703, %v4790
      %v4848 = vsel %vm973, %v4704, %v4792
      %v4849 = vsel %vm973, %v4705, %v4794
      %v4850 = vsel %vm973, %v4706, %v4796
      %v4851 = vsel %vm973, %v4707, %v4798
      %v4852 = vsel %vm973, %v4708, %v4800
      %v4853 = vsel %vm973, %v4709, %v4802
      %v4854 = vsel %vm973, %v4710, %v4804
      %v4855 = vsel %vm973, %v4711, %v4806
      %v4856 = vsel %vm973, %v4712, %v4808
      %v4857 = vlaneseq
      %v4858 = vshrl.u32 %v4857, 7
      %v4859 = vsub.s32 1, %v4858
      %v4860 = vrot.slane %v373, %v4859
      %v4861 = vlaneseq
      %v4862 = vshrl.u32 %v4861, 7
      %v4863 = vsub.s32 2, %v4862
      %v4864 = vrot.slane %v373, %v4863
      %v4865 = vsel %vm4240, %v4860, %v4864
      %v4866 = vsel %vm4241, %v4860, %v4864
      %v4867 = vsel %vm4242, %v4860, %v4864
      %v4868 = vsel %vm4243, %v4860, %v4864
      %v4869 = vsel %vm4244, %v4860, %v4864
      %v4870 = vsel %vm4245, %v4860, %v4864
      %v4871 = vsel %vm4246, %v4860, %v4864
      %v4872 = vsel %vm4247, %v4860, %v4864
      %v4873 = vsel %vm4248, %v4860, %v4864
      %v4874 = vsel %vm4249, %v4860, %v4864
      %v4875 = vsel %vm4250, %v4860, %v4864
      %v4876 = vsel %vm4251, %v4860, %v4864
      %v4877 = vsel %vm4252, %v4860, %v4864
      %v4878 = vsel %vm4253, %v4860, %v4864
      %v4879 = vsel %vm4254, %v4860, %v4864
      %v4880 = vsel %vm4255, %v4860, %v4864
      %v4881 = vsel %vm4256, %v4860, %v4864
      %v4882 = vsel %vm4257, %v4860, %v4864
      %v4883 = vsel %vm4258, %v4860, %v4864
      %v4884 = vsel %vm4259, %v4860, %v4864
      %v4885 = vsel %vm4260, %v4860, %v4864
      %v4886 = vsel %vm4261, %v4860, %v4864
      %v4887 = vsel %vm4262, %v4860, %v4864
      %v4888 = vsel %vm4263, %v4860, %v4864
      %v4889 = vld [vmem:[%s5] sm:$0xff]
      %v4890 = vld [vmem:[%s5 + $0x8] sm:$0xff]
      %v4891 = vld [vmem:[%s5 + $0x10] sm:$0xff]
      %v4892 = vld [vmem:[%s5 + $0x18] sm:$0xff]
      %v4893 = vld [vmem:[%s5 + $0x20] sm:$0xff]
      %v4894 = vld [vmem:[%s5 + $0x28] sm:$0xff]
      %v4895 = vld [vmem:[%s5 + $0x30] sm:$0xff]
      %v4896 = vld [vmem:[%s5 + $0x38] sm:$0xff]
      %v4898 = vsel %vm635, %v4833, 0
      %v4901 = vsel %vm635, %v4834, 0
      %v4904 = vsel %vm635, %v4835, 0
      %v4907 = vsel %vm635, %v4836, 0
      %v4910 = vsel %vm635, %v4837, 0
      %v4913 = vsel %vm635, %v4838, 0
      %v4916 = vsel %vm635, %v4839, 0
      %v4919 = vsel %vm635, %v4840, 0
      %v4922 = vsel %vm635, %v4841, 0
      %v4925 = vsel %vm635, %v4842, 0
      %v4928 = vsel %vm635, %v4843, 0
      %v4931 = vsel %vm635, %v4844, 0
      %v4934 = vsel %vm635, %v4845, 0
      %v4937 = vsel %vm635, %v4846, 0
      %v4940 = vsel %vm635, %v4847, 0
      %v4943 = vsel %vm635, %v4848, 0
      %v4946 = vsel %vm635, %v4849, 0
      %v4949 = vsel %vm635, %v4850, 0
      %v4952 = vsel %vm635, %v4851, 0
      %v4955 = vsel %vm635, %v4852, 0
      %v4958 = vsel %vm635, %v4853, 0
      %v4961 = vsel %vm635, %v4854, 0
      %v4964 = vsel %vm635, %v4855, 0
      %v4967 = vsel %vm635, %v4856, 0
      %4969 = vmatprep.subr.mxu0 0.0
      %4970 = vmatpush1.msra.mxu0 %v4889
      %4971 = vmatprep.subr.mxu0 0.0
      %4972 = vmatpush1.msra.mxu0 %v4890
      %4973 = vmatprep.subr.mxu0 0.0
      %4974 = vmatpush1.msra.mxu0 %v4891
      %4975 = vmatprep.subr.mxu0 0.0
      %4976 = vmatpush1.msra.mxu0 %v4892
      %4977 = vmatprep.subr.mxu0 0.0
      %4978 = vmatpush1.msra.mxu0 %v4893
      %4979 = vmatprep.subr.mxu0 0.0
      %4980 = vmatpush1.msra.mxu0 %v4894
      %4981 = vmatprep.subr.mxu0 0.0
      %4982 = vmatpush1.msra.mxu0 %v4895
      %4983 = vmatprep.subr.mxu0 0.0
      %4984 = vmatpush1.msra.mxu0 %v4896
      %4985 = vmatprep.subr.mxu0 0.0
      %4986 = vmatpush1.msra.mxu0 0.0
      %4987 = vmatprep.subr.mxu0 0.0
      %4988 = vmatpush1.msra.mxu0 0.0
      %4989 = vmatprep.subr.mxu0 0.0
      %4990 = vmatpush1.msra.mxu0 0.0
      %4991 = vmatprep.subr.mxu0 0.0
      %4992 = vmatpush1.msra.mxu0 0.0
      %4993 = vmatprep.subr.mxu0 0.0
      %4994 = vmatpush1.msra.mxu0 0.0
      %4995 = vmatprep.subr.mxu0 0.0
      %4996 = vmatpush1.msra.mxu0 0.0
      %4997 = vmatprep.subr.mxu0 0.0
      %4998 = vmatpush1.msra.mxu0 0.0
      %4999 = vmatprep.subr.mxu0 0.0
      %5000 = vmatpush1.msra.mxu0 0.0
      %5001 = vmatprep.subr.mxu0 0.0
      %5002 = vmatpush1.msra.mxu0 0.0
      %5003 = vmatprep.subr.mxu0 0.0
      %5004 = vmatpush1.msra.mxu0 0.0
      %5005 = vmatprep.subr.mxu0 0.0
      %5006 = vmatpush1.msra.mxu0 0.0
      %5007 = vmatprep.subr.mxu0 0.0
      %5008 = vmatpush1.msra.mxu0 0.0
      %5009 = vmatprep.subr.mxu0 0.0
      %5010 = vmatpush1.msra.mxu0 0.0
      %5011 = vmatprep.subr.mxu0 0.0
      %5012 = vmatpush1.msra.mxu0 0.0
      %5013 = vmatprep.subr.mxu0 0.0
      %5014 = vmatpush1.msra.mxu0 0.0
      %5015 = vmatprep.subr.mxu0 0.0
      %5016 = vmatpush1.msra.mxu0 0.0
      %5017 = vmatprep.subr.mxu0 0.0
      %5018 = vmatpush1.msra.mxu0 0.0
      %5019 = vmatprep.subr.mxu0 0.0
      %5020 = vmatpush1.msra.mxu0 0.0
      %5021 = vmatprep.subr.mxu0 0.0
      %5022 = vmatpush1.msra.mxu0 0.0
      %5023 = vmatprep.subr.mxu0 0.0
      %5024 = vmatpush1.msra.mxu0 0.0
      %5025 = vmatprep.subr.mxu0 0.0
      %5026 = vmatpush1.msra.mxu0 0.0
      %5027 = vmatprep.subr.mxu0 0.0
      %5028 = vmatpush1.msra.mxu0 0.0
      %5029 = vmatprep.subr.mxu0 0.0
      %5030 = vmatpush1.msra.mxu0 0.0
      %5031 = vmatprep.subr.mxu0 0.0
      %5032 = vmatpush1.msra.mxu0 0.0
      %5033 = vmatprep.mubr.f32.mxu0 0.0
      %5034 = vmatmul.mubr.f32.gmra.mrb[0].mxu0 %v4898
      %v5035 = vpop.f32.mrb[0].mxu0
      %v5036 = vadd.f32 %v4865, %v5035
      %v5037 = vpop.f32.mrb[0].mxu0
      %5038 = vmatprep.mubr.f32.mxu0 0.0
      %5039 = vmatmul.mubr.f32.gmra.mrb[0].mxu0 %v4901
      %v5040 = vpop.f32.mrb[0].mxu0
      %v5041 = vadd.f32 %v4866, %v5040
      %v5042 = vpop.f32.mrb[0].mxu0
      %5043 = vmatprep.mubr.f32.mxu0 0.0
      %5044 = vmatmul.mubr.f32.gmra.mrb[0].mxu0 %v4904
      %v5045 = vpop.f32.mrb[0].mxu0
      %v5046 = vadd.f32 %v4867, %v5045
      %v5047 = vpop.f32.mrb[0].mxu0
      %5048 = vmatprep.mubr.f32.mxu0 0.0
      %5049 = vmatmul.mubr.f32.gmra.mrb[0].mxu0 %v4907
      %v5050 = vpop.f32.mrb[0].mxu0
      %v5051 = vadd.f32 %v4868, %v5050
      %v5052 = vpop.f32.mrb[0].mxu0
      %5053 = vmatprep.mubr.f32.mxu0 0.0
      %5054 = vmatmul.mubr.f32.gmra.mrb[0].mxu0 %v4910
      %v5055 = vpop.f32.mrb[0].mxu0
      %v5056 = vadd.f32 %v4869, %v5055
      %v5057 = vpop.f32.mrb[0].mxu0
      %5058 = vmatprep.mubr.f32.mxu0 0.0
      %5059 = vmatmul.mubr.f32.gmra.mrb[0].mxu0 %v4913
      %v5060 = vpop.f32.mrb[0].mxu0
      %v5061 = vadd.f32 %v4870, %v5060
      %v5062 = vpop.f32.mrb[0].mxu0
      %5063 = vmatprep.mubr.f32.mxu0 0.0
      %5064 = vmatmul.mubr.f32.gmra.mrb[0].mxu0 %v4916
      %v5065 = vpop.f32.mrb[0].mxu0
      %v5066 = vadd.f32 %v4871, %v5065
      %v5067 = vpop.f32.mrb[0].mxu0
      %5068 = vmatprep.mubr.f32.mxu0 0.0
      %5069 = vmatmul.mubr.f32.gmra.mrb[0].mxu0 %v4919
      %v5070 = vpop.f32.mrb[0].mxu0
      %v5071 = vadd.f32 %v4872, %v5070
      %v5072 = vpop.f32.mrb[0].mxu0
      %5073 = vmatprep.mubr.f32.mxu0 0.0
      %5074 = vmatmul.mubr.f32.gmra.mrb[0].mxu0 %v4922
      %v5075 = vpop.f32.mrb[0].mxu0
      %v5076 = vadd.f32 %v4873, %v5075
      %v5077 = vpop.f32.mrb[0].mxu0
      %5078 = vmatprep.mubr.f32.mxu0 0.0
      %5079 = vmatmul.mubr.f32.gmra.mrb[0].mxu0 %v4925
      %v5080 = vpop.f32.mrb[0].mxu0
      %v5081 = vadd.f32 %v4874, %v5080
      %v5082 = vpop.f32.mrb[0].mxu0
      %5083 = vmatprep.mubr.f32.mxu0 0.0
      %5084 = vmatmul.mubr.f32.gmra.mrb[0].mxu0 %v4928
      %v5085 = vpop.f32.mrb[0].mxu0
      %v5086 = vadd.f32 %v4875, %v5085
      %v5087 = vpop.f32.mrb[0].mxu0
      %5088 = vmatprep.mubr.f32.mxu0 0.0
      %5089 = vmatmul.mubr.f32.gmra.mrb[0].mxu0 %v4931
      %v5090 = vpop.f32.mrb[0].mxu0
      %v5091 = vadd.f32 %v4876, %v5090
      %v5092 = vpop.f32.mrb[0].mxu0
      %5093 = vmatprep.mubr.f32.mxu0 0.0
      %5094 = vmatmul.mubr.f32.gmra.mrb[0].mxu0 %v4934
      %v5095 = vpop.f32.mrb[0].mxu0
      %v5096 = vadd.f32 %v4877, %v5095
      %v5097 = vpop.f32.mrb[0].mxu0
      %5098 = vmatprep.mubr.f32.mxu0 0.0
      %5099 = vmatmul.mubr.f32.gmra.mrb[0].mxu0 %v4937
      %v5100 = vpop.f32.mrb[0].mxu0
      %v5101 = vadd.f32 %v4878, %v5100
      %v5102 = vpop.f32.mrb[0].mxu0
      %5103 = vmatprep.mubr.f32.mxu0 0.0
      %5104 = vmatmul.mubr.f32.gmra.mrb[0].mxu0 %v4940
      %v5105 = vpop.f32.mrb[0].mxu0
      %v5106 = vadd.f32 %v4879, %v5105
      %v5107 = vpop.f32.mrb[0].mxu0
      %5108 = vmatprep.mubr.f32.mxu0 0.0
      %5109 = vmatmul.mubr.f32.gmra.mrb[0].mxu0 %v4943
      %v5110 = vpop.f32.mrb[0].mxu0
      %v5111 = vadd.f32 %v4880, %v5110
      %v5112 = vpop.f32.mrb[0].mxu0
      %5113 = vmatprep.mubr.f32.mxu0 0.0
      %5114 = vmatmul.mubr.f32.gmra.mrb[0].mxu0 %v4946
      %v5115 = vpop.f32.mrb[0].mxu0
      %v5116 = vadd.f32 %v4881, %v5115
      %v5117 = vpop.f32.mrb[0].mxu0
      %5118 = vmatprep.mubr.f32.mxu0 0.0
      %5119 = vmatmul.mubr.f32.gmra.mrb[0].mxu0 %v4949
      %v5120 = vpop.f32.mrb[0].mxu0
      %v5121 = vadd.f32 %v4882, %v5120
      %v5122 = vpop.f32.mrb[0].mxu0
      %5123 = vmatprep.mubr.f32.mxu0 0.0
      %5124 = vmatmul.mubr.f32.gmra.mrb[0].mxu0 %v4952
      %v5125 = vpop.f32.mrb[0].mxu0
      %v5126 = vadd.f32 %v4883, %v5125
      %v5127 = vpop.f32.mrb[0].mxu0
      %5128 = vmatprep.mubr.f32.mxu0 0.0
      %5129 = vmatmul.mubr.f32.gmra.mrb[0].mxu0 %v4955
      %v5130 = vpop.f32.mrb[0].mxu0
      %v5131 = vadd.f32 %v4884, %v5130
      %v5132 = vpop.f32.mrb[0].mxu0
      %5133 = vmatprep.mubr.f32.mxu0 0.0
      %5134 = vmatmul.mubr.f32.gmra.mrb[0].mxu0 %v4958
      %v5135 = vpop.f32.mrb[0].mxu0
      %v5136 = vadd.f32 %v4885, %v5135
      %v5137 = vpop.f32.mrb[0].mxu0
      %5138 = vmatprep.mubr.f32.mxu0 0.0
      %5139 = vmatmul.mubr.f32.gmra.mrb[0].mxu0 %v4961
      %v5140 = vpop.f32.mrb[0].mxu0
      %v5141 = vadd.f32 %v4886, %v5140
      %v5142 = vpop.f32.mrb[0].mxu0
      %5143 = vmatprep.mubr.f32.mxu0 0.0
      %5144 = vmatmul.mubr.f32.gmra.mrb[0].mxu0 %v4964
      %v5145 = vpop.f32.mrb[0].mxu0
      %v5146 = vadd.f32 %v4887, %v5145
      %v5147 = vpop.f32.mrb[0].mxu0
      %5148 = vmatprep.mubr.f32.mxu0 0.0
      %5149 = vmatmul.mubr.f32.gmra.mrb[0].mxu0 %v4967
      %v5150 = vpop.f32.mrb[0].mxu0
      %v5151 = vadd.f32 %v4888, %v5150
      %v5152 = vpop.f32.mrb[0].mxu0
      %5153 = vdwg.mxu0
      %vm5154 = vcmp.ge.f32.partialorder %v5036, 0.0
      %vm5155 = vcmp.ge.f32.partialorder %v5041, 0.0
      %vm5156 = vcmp.ge.f32.partialorder %v5046, 0.0
      %vm5157 = vcmp.ge.f32.partialorder %v5051, 0.0
      %vm5158 = vcmp.ge.f32.partialorder %v5056, 0.0
      %vm5159 = vcmp.ge.f32.partialorder %v5061, 0.0
      %vm5160 = vcmp.ge.f32.partialorder %v5066, 0.0
      %vm5161 = vcmp.ge.f32.partialorder %v5071, 0.0
      %vm5162 = vcmp.ge.f32.partialorder %v5076, 0.0
      %vm5163 = vcmp.ge.f32.partialorder %v5081, 0.0
      %vm5164 = vcmp.ge.f32.partialorder %v5086, 0.0
      %vm5165 = vcmp.ge.f32.partialorder %v5091, 0.0
      %vm5166 = vcmp.ge.f32.partialorder %v5096, 0.0
      %vm5167 = vcmp.ge.f32.partialorder %v5101, 0.0
      %vm5168 = vcmp.ge.f32.partialorder %v5106, 0.0
      %vm5169 = vcmp.ge.f32.partialorder %v5111, 0.0
      %vm5170 = vcmp.ge.f32.partialorder %v5116, 0.0
      %vm5171 = vcmp.ge.f32.partialorder %v5121, 0.0
      %vm5172 = vcmp.ge.f32.partialorder %v5126, 0.0
      %vm5173 = vcmp.ge.f32.partialorder %v5131, 0.0
      %vm5174 = vcmp.ge.f32.partialorder %v5136, 0.0
      %vm5175 = vcmp.ge.f32.partialorder %v5141, 0.0
      %vm5176 = vcmp.ge.f32.partialorder %v5146, 0.0
      %vm5177 = vcmp.ge.f32.partialorder %v5151, 0.0
      %v5178 = vmul.f32 %v5036, 0.2
      %v5179 = vmul.f32 %v5041, 0.2
      %v5180 = vmul.f32 %v5046, 0.2
      %v5181 = vmul.f32 %v5051, 0.2
      %v5182 = vmul.f32 %v5056, 0.2
      %v5183 = vmul.f32 %v5061, 0.2
      %v5184 = vmul.f32 %v5066, 0.2
      %v5185 = vmul.f32 %v5071, 0.2
      %v5186 = vmul.f32 %v5076, 0.2
      %v5187 = vmul.f32 %v5081, 0.2
      %v5188 = vmul.f32 %v5086, 0.2
      %v5189 = vmul.f32 %v5091, 0.2
      %v5190 = vmul.f32 %v5096, 0.2
      %v5191 = vmul.f32 %v5101, 0.2
      %v5192 = vmul.f32 %v5106, 0.2
      %v5193 = vmul.f32 %v5111, 0.2
      %v5194 = vmul.f32 %v5116, 0.2
      %v5195 = vmul.f32 %v5121, 0.2
      %v5196 = vmul.f32 %v5126, 0.2
      %v5197 = vmul.f32 %v5131, 0.2
      %v5198 = vmul.f32 %v5136, 0.2
      %v5199 = vmul.f32 %v5141, 0.2
      %v5200 = vmul.f32 %v5146, 0.2
      %v5201 = vmul.f32 %v5151, 0.2
      %v5202 = vsel %vm5154, %v5036, %v5178
      %v5203 = vsel %vm5155, %v5041, %v5179
      %v5204 = vsel %vm5156, %v5046, %v5180
      %v5205 = vsel %vm5157, %v5051, %v5181
      %v5206 = vsel %vm5158, %v5056, %v5182
      %v5207 = vsel %vm5159, %v5061, %v5183
      %v5208 = vsel %vm5160, %v5066, %v5184
      %v5209 = vsel %vm5161, %v5071, %v5185
      %v5210 = vsel %vm5162, %v5076, %v5186
      %v5211 = vsel %vm5163, %v5081, %v5187
      %v5212 = vsel %vm5164, %v5086, %v5188
      %v5213 = vsel %vm5165, %v5091, %v5189
      %v5214 = vsel %vm5166, %v5096, %v5190
      %v5215 = vsel %vm5167, %v5101, %v5191
      %v5216 = vsel %vm5168, %v5106, %v5192
      %v5217 = vsel %vm5169, %v5111, %v5193
      %v5218 = vsel %vm5170, %v5116, %v5194
      %v5219 = vsel %vm5171, %v5121, %v5195
      %v5220 = vsel %vm5172, %v5126, %v5196
      %v5221 = vsel %vm5173, %v5131, %v5197
      %v5222 = vsel %vm5174, %v5136, %v5198
      %v5223 = vsel %vm5175, %v5141, %v5199
      %v5224 = vsel %vm5176, %v5146, %v5200
      %v5225 = vsel %vm5177, %v5151, %v5201
      %v5226 = vsel %vm4240, %v5202, 0.0
      %v5227 = vsel %vm4241, %v5203, 0.0
      %v5228 = vsel %vm4242, %v5204, 0.0
      %v5229 = vsel %vm4243, %v5205, 0.0
      %v5230 = vsel %vm4244, %v5206, 0.0
      %v5231 = vsel %vm4245, %v5207, 0.0
      %v5232 = vsel %vm4246, %v5208, 0.0
      %v5233 = vsel %vm4247, %v5209, 0.0
      %v5234 = vsel %vm4248, %v5210, 0.0
      %v5235 = vsel %vm4249, %v5211, 0.0
      %v5236 = vsel %vm4250, %v5212, 0.0
      %v5237 = vsel %vm4251, %v5213, 0.0
      %v5238 = vsel %vm4252, %v5214, 0.0
      %v5239 = vsel %vm4253, %v5215, 0.0
      %v5240 = vsel %vm4254, %v5216, 0.0
      %v5241 = vsel %vm4255, %v5217, 0.0
      %v5242 = vsel %vm4256, %v5218, 0.0
      %v5243 = vsel %vm4257, %v5219, 0.0
      %v5244 = vsel %vm4258, %v5220, 0.0
      %v5245 = vsel %vm4259, %v5221, 0.0
      %v5246 = vsel %vm4260, %v5222, 0.0
      %v5247 = vsel %vm4261, %v5223, 0.0
      %v5248 = vsel %vm4262, %v5224, 0.0
      %v5249 = vsel %vm4263, %v5225, 0.0
      %v5250 = vsel %vm4240, 0.0, %v5202
      %v5251 = vsel %vm4241, 0.0, %v5203
      %v5252 = vsel %vm4242, 0.0, %v5204
      %v5253 = vsel %vm4243, 0.0, %v5205
      %v5254 = vsel %vm4244, 0.0, %v5206
      %v5255 = vsel %vm4245, 0.0, %v5207
      %v5256 = vsel %vm4246, 0.0, %v5208
      %v5257 = vsel %vm4247, 0.0, %v5209
      %v5258 = vsel %vm4248, 0.0, %v5210
      %v5259 = vsel %vm4249, 0.0, %v5211
      %v5260 = vsel %vm4250, 0.0, %v5212
      %v5261 = vsel %vm4251, 0.0, %v5213
      %v5262 = vsel %vm4252, 0.0, %v5214
      %v5263 = vsel %vm4253, 0.0, %v5215
      %v5264 = vsel %vm4254, 0.0, %v5216
      %v5265 = vsel %vm4255, 0.0, %v5217
      %v5266 = vsel %vm4256, 0.0, %v5218
      %v5267 = vsel %vm4257, 0.0, %v5219
      %v5268 = vsel %vm4258, 0.0, %v5220
      %v5269 = vsel %vm4259, 0.0, %v5221
      %v5270 = vsel %vm4260, 0.0, %v5222
      %v5271 = vsel %vm4261, 0.0, %v5223
      %v5272 = vsel %vm4262, 0.0, %v5224
      %v5273 = vsel %vm4263, 0.0, %v5225
      %v5274 = vlaneseq
      %v5275 = vshrl.u32 %v5274, 7
      %v5276 = vsub.s32 3, %v5275
      %v5277 = vrot.slane %v373, %v5276
      %v5278 = vlaneseq
      %v5279 = vshrl.u32 %v5278, 7
      %v5280 = vsub.s32 4, %v5279
      %v5281 = vrot.slane %v373, %v5280
      %v5282 = vsel %vm4240, %v5277, %v5281
      %v5283 = vsel %vm4241, %v5277, %v5281
      %v5284 = vsel %vm4242, %v5277, %v5281
      %v5285 = vsel %vm4243, %v5277, %v5281
      %v5286 = vsel %vm4244, %v5277, %v5281
      %v5287 = vsel %vm4245, %v5277, %v5281
      %v5288 = vsel %vm4246, %v5277, %v5281
      %v5289 = vsel %vm4247, %v5277, %v5281
      %v5290 = vsel %vm4248, %v5277, %v5281
      %v5291 = vsel %vm4249, %v5277, %v5281
      %v5292 = vsel %vm4250, %v5277, %v5281
      %v5293 = vsel %vm4251, %v5277, %v5281
      %v5294 = vsel %vm4252, %v5277, %v5281
      %v5295 = vsel %vm4253, %v5277, %v5281
      %v5296 = vsel %vm4254, %v5277, %v5281
      %v5297 = vsel %vm4255, %v5277, %v5281
      %v5298 = vsel %vm4256, %v5277, %v5281
      %v5299 = vsel %vm4257, %v5277, %v5281
      %v5300 = vsel %vm4258, %v5277, %v5281
      %v5301 = vsel %vm4259, %v5277, %v5281
      %v5302 = vsel %vm4260, %v5277, %v5281
      %v5303 = vsel %vm4261, %v5277, %v5281
      %v5304 = vsel %vm4262, %v5277, %v5281
      %v5305 = vsel %vm4263, %v5277, %v5281
      %v5306 = vld [vmem:[%s6] sm:$0xff]
      %v5307 = vld [vmem:[%s6 + $0x8] sm:$0xff]
      %v5308 = vld [vmem:[%s6 + $0x10] sm:$0xff]
      %v5309 = vld [vmem:[%s6 + $0x18] sm:$0xff]
      %v5310 = vld [vmem:[%s6 + $0x20] sm:$0xff]
      %v5311 = vld [vmem:[%s6 + $0x28] sm:$0xff]
      %v5312 = vld [vmem:[%s6 + $0x30] sm:$0xff]
      %v5313 = vld [vmem:[%s6 + $0x38] sm:$0xff]
      %v5314 = vld [vmem:[%s6 + $0x40] sm:$0xff]
      %v5315 = vld [vmem:[%s6 + $0x48] sm:$0xff]
      %v5316 = vld [vmem:[%s6 + $0x50] sm:$0xff]
      %v5317 = vld [vmem:[%s6 + $0x58] sm:$0xff]
      %v5318 = vld [vmem:[%s6 + $0x60] sm:$0xff]
      %v5319 = vld [vmem:[%s6 + $0x68] sm:$0xff]
      %v5320 = vld [vmem:[%s6 + $0x70] sm:$0xff]
      %v5321 = vld [vmem:[%s6 + $0x78] sm:$0xff]
      %v5322 = vld [vmem:[%s6 + $0x80] sm:$0xff]
      %v5323 = vld [vmem:[%s6 + $0x88] sm:$0xff]
      %v5324 = vld [vmem:[%s6 + $0x90] sm:$0xff]
      %v5325 = vld [vmem:[%s6 + $0x98] sm:$0xff]
      %v5326 = vld [vmem:[%s6 + $0xa0] sm:$0xff]
      %v5327 = vld [vmem:[%s6 + $0xa8] sm:$0xff]
      %v5328 = vld [vmem:[%s6 + $0xb0] sm:$0xff]
      %v5329 = vld [vmem:[%s6 + $0xb8] sm:$0xff]
      %v5330 = vld [vmem:[%s6 + $0xc0] sm:$0xff]
      %v5331 = vld [vmem:[%s6 + $0xc8] sm:$0xff]
      %v5332 = vld [vmem:[%s6 + $0xd0] sm:$0xff]
      %v5333 = vld [vmem:[%s6 + $0xd8] sm:$0xff]
      %v5334 = vld [vmem:[%s6 + $0xe0] sm:$0xff]
      %v5335 = vld [vmem:[%s6 + $0xe8] sm:$0xff]
      %v5336 = vld [vmem:[%s6 + $0xf0] sm:$0xff]
      %v5337 = vld [vmem:[%s6 + $0xf8] sm:$0xff]
      %5338 = vmatprep.subr.mxu0 0.0
      %5339 = vmatpush1.msra.mxu0 %v5306
      %5340 = vmatprep.subr.mxu0 0.0
      %5341 = vmatpush1.msra.mxu0 %v5307
      %5342 = vmatprep.subr.mxu0 0.0
      %5343 = vmatpush1.msra.mxu0 %v5308
      %5344 = vmatprep.subr.mxu0 0.0
      %5345 = vmatpush1.msra.mxu0 %v5309
      %5346 = vmatprep.subr.mxu0 0.0
      %5347 = vmatpush1.msra.mxu0 %v5310
      %5348 = vmatprep.subr.mxu0 0.0
      %5349 = vmatpush1.msra.mxu0 %v5311
      %5350 = vmatprep.subr.mxu0 0.0
      %5351 = vmatpush1.msra.mxu0 %v5312
      %5352 = vmatprep.subr.mxu0 0.0
      %5353 = vmatpush1.msra.mxu0 %v5313
      %5354 = vmatprep.subr.mxu0 0.0
      %5355 = vmatpush1.msra.mxu0 %v5314
      %5356 = vmatprep.subr.mxu0 0.0
      %5357 = vmatpush1.msra.mxu0 %v5315
      %5358 = vmatprep.subr.mxu0 0.0
      %5359 = vmatpush1.msra.mxu0 %v5316
      %5360 = vmatprep.subr.mxu0 0.0
      %5361 = vmatpush1.msra.mxu0 %v5317
      %5362 = vmatprep.subr.mxu0 0.0
      %5363 = vmatpush1.msra.mxu0 %v5318
      %5364 = vmatprep.subr.mxu0 0.0
      %5365 = vmatpush1.msra.mxu0 %v5319
      %5366 = vmatprep.subr.mxu0 0.0
      %5367 = vmatpush1.msra.mxu0 %v5320
      %5368 = vmatprep.subr.mxu0 0.0
      %5369 = vmatpush1.msra.mxu0 %v5321
      %5370 = vmatprep.subr.mxu0 0.0
      %5371 = vmatpush1.msra.mxu0 %v5322
      %5372 = vmatprep.subr.mxu0 0.0
      %5373 = vmatpush1.msra.mxu0 %v5323
      %5374 = vmatprep.subr.mxu0 0.0
      %5375 = vmatpush1.msra.mxu0 %v5324
      %5376 = vmatprep.subr.mxu0 0.0
      %5377 = vmatpush1.msra.mxu0 %v5325
      %5378 = vmatprep.subr.mxu0 0.0
      %5379 = vmatpush1.msra.mxu0 %v5326
      %5380 = vmatprep.subr.mxu0 0.0
      %5381 = vmatpush1.msra.mxu0 %v5327
      %5382 = vmatprep.subr.mxu0 0.0
      %5383 = vmatpush1.msra.mxu0 %v5328
      %5384 = vmatprep.subr.mxu0 0.0
      %5385 = vmatpush1.msra.mxu0 %v5329
      %5386 = vmatprep.subr.mxu0 0.0
      %5387 = vmatpush1.msra.mxu0 %v5330
      %5388 = vmatprep.subr.mxu0 0.0
      %5389 = vmatpush1.msra.mxu0 %v5331
      %5390 = vmatprep.subr.mxu0 0.0
      %5391 = vmatpush1.msra.mxu0 %v5332
      %5392 = vmatprep.subr.mxu0 0.0
      %5393 = vmatpush1.msra.mxu0 %v5333
      %5394 = vmatprep.subr.mxu0 0.0
      %5395 = vmatpush1.msra.mxu0 %v5334
      %5396 = vmatprep.subr.mxu0 0.0
      %5397 = vmatpush1.msra.mxu0 %v5335
      %5398 = vmatprep.subr.mxu0 0.0
      %5399 = vmatpush1.msra.mxu0 %v5336
      %5400 = vmatprep.subr.mxu0 0.0
      %5401 = vmatpush1.msra.mxu0 %v5337
      %5402 = vmatprep.mubr.f32.mxu0 %v5250
      %5403 = vmatmul.mubr.f32.gmra.mrb[0].mxu0 %v5226
      %v5404 = vpop.f32.mrb[0].mxu0
      %v5405 = vadd.f32 %v5282, %v5404
      %v5406 = vpop.f32.mrb[0].mxu0
      %5407 = vmatprep.mubr.f32.mxu0 %v5251
      %5408 = vmatmul.mubr.f32.gmra.mrb[0].mxu0 %v5227
      %v5409 = vpop.f32.mrb[0].mxu0
      %v5410 = vadd.f32 %v5283, %v5409
      %v5411 = vpop.f32.mrb[0].mxu0
      %5412 = vmatprep.mubr.f32.mxu0 %v5252
      %5413 = vmatmul.mubr.f32.gmra.mrb[0].mxu0 %v5228
      %v5414 = vpop.f32.mrb[0].mxu0
      %v5415 = vadd.f32 %v5284, %v5414
      %v5416 = vpop.f32.mrb[0].mxu0
      %5417 = vmatprep.mubr.f32.mxu0 %v5253
      %5418 = vmatmul.mubr.f32.gmra.mrb[0].mxu0 %v5229
      %v5419 = vpop.f32.mrb[0].mxu0
      %v5420 = vadd.f32 %v5285, %v5419
      %v5421 = vpop.f32.mrb[0].mxu0
      %5422 = vmatprep.mubr.f32.mxu0 %v5254
      %5423 = vmatmul.mubr.f32.gmra.mrb[0].mxu0 %v5230
      %v5424 = vpop.f32.mrb[0].mxu0
      %v5425 = vadd.f32 %v5286, %v5424
      %v5426 = vpop.f32.mrb[0].mxu0
      %5427 = vmatprep.mubr.f32.mxu0 %v5255
      %5428 = vmatmul.mubr.f32.gmra.mrb[0].mxu0 %v5231
      %v5429 = vpop.f32.mrb[0].mxu0
      %v5430 = vadd.f32 %v5287, %v5429
      %v5431 = vpop.f32.mrb[0].mxu0
      %5432 = vmatprep.mubr.f32.mxu0 %v5256
      %5433 = vmatmul.mubr.f32.gmra.mrb[0].mxu0 %v5232
      %v5434 = vpop.f32.mrb[0].mxu0
      %v5435 = vadd.f32 %v5288, %v5434
      %v5436 = vpop.f32.mrb[0].mxu0
      %5437 = vmatprep.mubr.f32.mxu0 %v5257
      %5438 = vmatmul.mubr.f32.gmra.mrb[0].mxu0 %v5233
      %v5439 = vpop.f32.mrb[0].mxu0
      %v5440 = vadd.f32 %v5289, %v5439
      %v5441 = vpop.f32.mrb[0].mxu0
      %5442 = vmatprep.mubr.f32.mxu0 %v5258
      %5443 = vmatmul.mubr.f32.gmra.mrb[0].mxu0 %v5234
      %v5444 = vpop.f32.mrb[0].mxu0
      %v5445 = vadd.f32 %v5290, %v5444
      %v5446 = vpop.f32.mrb[0].mxu0
      %5447 = vmatprep.mubr.f32.mxu0 %v5259
      %5448 = vmatmul.mubr.f32.gmra.mrb[0].mxu0 %v5235
      %v5449 = vpop.f32.mrb[0].mxu0
      %v5450 = vadd.f32 %v5291, %v5449
      %v5451 = vpop.f32.mrb[0].mxu0
      %5452 = vmatprep.mubr.f32.mxu0 %v5260
      %5453 = vmatmul.mubr.f32.gmra.mrb[0].mxu0 %v5236
      %v5454 = vpop.f32.mrb[0].mxu0
      %v5455 = vadd.f32 %v5292, %v5454
      %v5456 = vpop.f32.mrb[0].mxu0
      %5457 = vmatprep.mubr.f32.mxu0 %v5261
      %5458 = vmatmul.mubr.f32.gmra.mrb[0].mxu0 %v5237
      %v5459 = vpop.f32.mrb[0].mxu0
      %v5460 = vadd.f32 %v5293, %v5459
      %v5461 = vpop.f32.mrb[0].mxu0
      %5462 = vmatprep.mubr.f32.mxu0 %v5262
      %5463 = vmatmul.mubr.f32.gmra.mrb[0].mxu0 %v5238
      %v5464 = vpop.f32.mrb[0].mxu0
      %v5465 = vadd.f32 %v5294, %v5464
      %v5466 = vpop.f32.mrb[0].mxu0
      %5467 = vmatprep.mubr.f32.mxu0 %v5263
      %5468 = vmatmul.mubr.f32.gmra.mrb[0].mxu0 %v5239
      %v5469 = vpop.f32.mrb[0].mxu0
      %v5470 = vadd.f32 %v5295, %v5469
      %v5471 = vpop.f32.mrb[0].mxu0
      %5472 = vmatprep.mubr.f32.mxu0 %v5264
      %5473 = vmatmul.mubr.f32.gmra.mrb[0].mxu0 %v5240
      %v5474 = vpop.f32.mrb[0].mxu0
      %v5475 = vadd.f32 %v5296, %v5474
      %v5476 = vpop.f32.mrb[0].mxu0
      %5477 = vmatprep.mubr.f32.mxu0 %v5265
      %5478 = vmatmul.mubr.f32.gmra.mrb[0].mxu0 %v5241
      %v5479 = vpop.f32.mrb[0].mxu0
      %v5480 = vadd.f32 %v5297, %v5479
      %v5481 = vpop.f32.mrb[0].mxu0
      %5482 = vmatprep.mubr.f32.mxu0 %v5266
      %5483 = vmatmul.mubr.f32.gmra.mrb[0].mxu0 %v5242
      %v5484 = vpop.f32.mrb[0].mxu0
      %v5485 = vadd.f32 %v5298, %v5484
      %v5486 = vpop.f32.mrb[0].mxu0
      %5487 = vmatprep.mubr.f32.mxu0 %v5267
      %5488 = vmatmul.mubr.f32.gmra.mrb[0].mxu0 %v5243
      %v5489 = vpop.f32.mrb[0].mxu0
      %v5490 = vadd.f32 %v5299, %v5489
      %v5491 = vpop.f32.mrb[0].mxu0
      %5492 = vmatprep.mubr.f32.mxu0 %v5268
      %5493 = vmatmul.mubr.f32.gmra.mrb[0].mxu0 %v5244
      %v5494 = vpop.f32.mrb[0].mxu0
      %v5495 = vadd.f32 %v5300, %v5494
      %v5496 = vpop.f32.mrb[0].mxu0
      %5497 = vmatprep.mubr.f32.mxu0 %v5269
      %5498 = vmatmul.mubr.f32.gmra.mrb[0].mxu0 %v5245
      %v5499 = vpop.f32.mrb[0].mxu0
      %v5500 = vadd.f32 %v5301, %v5499
      %v5501 = vpop.f32.mrb[0].mxu0
      %5502 = vmatprep.mubr.f32.mxu0 %v5270
      %5503 = vmatmul.mubr.f32.gmra.mrb[0].mxu0 %v5246
      %v5504 = vpop.f32.mrb[0].mxu0
      %v5505 = vadd.f32 %v5302, %v5504
      %v5506 = vpop.f32.mrb[0].mxu0
      %5507 = vmatprep.mubr.f32.mxu0 %v5271
      %5508 = vmatmul.mubr.f32.gmra.mrb[0].mxu0 %v5247
      %v5509 = vpop.f32.mrb[0].mxu0
      %v5510 = vadd.f32 %v5303, %v5509
      %v5511 = vpop.f32.mrb[0].mxu0
      %5512 = vmatprep.mubr.f32.mxu0 %v5272
      %5513 = vmatmul.mubr.f32.gmra.mrb[0].mxu0 %v5248
      %v5514 = vpop.f32.mrb[0].mxu0
      %v5515 = vadd.f32 %v5304, %v5514
      %v5516 = vpop.f32.mrb[0].mxu0
      %5517 = vmatprep.mubr.f32.mxu0 %v5273
      %5518 = vmatmul.mubr.f32.gmra.mrb[0].mxu0 %v5249
      %v5519 = vpop.f32.mrb[0].mxu0
      %v5520 = vadd.f32 %v5305, %v5519
      %v5521 = vpop.f32.mrb[0].mxu0
      %5522 = vdwg.mxu0
      %vm5523 = vcmp.ge.f32.partialorder %v5405, 0.0
      %vm5524 = vcmp.ge.f32.partialorder %v5410, 0.0
      %vm5525 = vcmp.ge.f32.partialorder %v5415, 0.0
      %vm5526 = vcmp.ge.f32.partialorder %v5420, 0.0
      %vm5527 = vcmp.ge.f32.partialorder %v5425, 0.0
      %vm5528 = vcmp.ge.f32.partialorder %v5430, 0.0
      %vm5529 = vcmp.ge.f32.partialorder %v5435, 0.0
      %vm5530 = vcmp.ge.f32.partialorder %v5440, 0.0
      %vm5531 = vcmp.ge.f32.partialorder %v5445, 0.0
      %vm5532 = vcmp.ge.f32.partialorder %v5450, 0.0
      %vm5533 = vcmp.ge.f32.partialorder %v5455, 0.0
      %vm5534 = vcmp.ge.f32.partialorder %v5460, 0.0
      %vm5535 = vcmp.ge.f32.partialorder %v5465, 0.0
      %vm5536 = vcmp.ge.f32.partialorder %v5470, 0.0
      %vm5537 = vcmp.ge.f32.partialorder %v5475, 0.0
      %vm5538 = vcmp.ge.f32.partialorder %v5480, 0.0
      %vm5539 = vcmp.ge.f32.partialorder %v5485, 0.0
      %vm5540 = vcmp.ge.f32.partialorder %v5490, 0.0
      %vm5541 = vcmp.ge.f32.partialorder %v5495, 0.0
      %vm5542 = vcmp.ge.f32.partialorder %v5500, 0.0
      %vm5543 = vcmp.ge.f32.partialorder %v5505, 0.0
      %vm5544 = vcmp.ge.f32.partialorder %v5510, 0.0
      %vm5545 = vcmp.ge.f32.partialorder %v5515, 0.0
      %vm5546 = vcmp.ge.f32.partialorder %v5520, 0.0
      %v5547 = vmul.f32 %v5405, 0.2
      %v5548 = vmul.f32 %v5410, 0.2
      %v5549 = vmul.f32 %v5415, 0.2
      %v5550 = vmul.f32 %v5420, 0.2
      %v5551 = vmul.f32 %v5425, 0.2
      %v5552 = vmul.f32 %v5430, 0.2
      %v5553 = vmul.f32 %v5435, 0.2
      %v5554 = vmul.f32 %v5440, 0.2
      %v5555 = vmul.f32 %v5445, 0.2
      %v5556 = vmul.f32 %v5450, 0.2
      %v5557 = vmul.f32 %v5455, 0.2
      %v5558 = vmul.f32 %v5460, 0.2
      %v5559 = vmul.f32 %v5465, 0.2
      %v5560 = vmul.f32 %v5470, 0.2
      %v5561 = vmul.f32 %v5475, 0.2
      %v5562 = vmul.f32 %v5480, 0.2
      %v5563 = vmul.f32 %v5485, 0.2
      %v5564 = vmul.f32 %v5490, 0.2
      %v5565 = vmul.f32 %v5495, 0.2
      %v5566 = vmul.f32 %v5500, 0.2
      %v5567 = vmul.f32 %v5505, 0.2
      %v5568 = vmul.f32 %v5510, 0.2
      %v5569 = vmul.f32 %v5515, 0.2
      %v5570 = vmul.f32 %v5520, 0.2
      %v5571 = vsel %vm5523, %v5405, %v5547
      %v5572 = vsel %vm5524, %v5410, %v5548
      %v5573 = vsel %vm5525, %v5415, %v5549
      %v5574 = vsel %vm5526, %v5420, %v5550
      %v5575 = vsel %vm5527, %v5425, %v5551
      %v5576 = vsel %vm5528, %v5430, %v5552
      %v5577 = vsel %vm5529, %v5435, %v5553
      %v5578 = vsel %vm5530, %v5440, %v5554
      %v5579 = vsel %vm5531, %v5445, %v5555
      %v5580 = vsel %vm5532, %v5450, %v5556
      %v5581 = vsel %vm5533, %v5455, %v5557
      %v5582 = vsel %vm5534, %v5460, %v5558
      %v5583 = vsel %vm5535, %v5465, %v5559
      %v5584 = vsel %vm5536, %v5470, %v5560
      %v5585 = vsel %vm5537, %v5475, %v5561
      %v5586 = vsel %vm5538, %v5480, %v5562
      %v5587 = vsel %vm5539, %v5485, %v5563
      %v5588 = vsel %vm5540, %v5490, %v5564
      %v5589 = vsel %vm5541, %v5495, %v5565
      %v5590 = vsel %vm5542, %v5500, %v5566
      %v5591 = vsel %vm5543, %v5505, %v5567
      %v5592 = vsel %vm5544, %v5510, %v5568
      %v5593 = vsel %vm5545, %v5515, %v5569
      %v5594 = vsel %vm5546, %v5520, %v5570
      %v5595 = vlaneseq
      %v5596 = vshrl.u32 %v5595, 7
      %v5597 = vsub.s32 1, %v5596
      %v5598 = vrot.slane %v375, %v5597
      %v5599 = vlaneseq
      %v5600 = vshrl.u32 %v5599, 7
      %v5601 = vsub.s32 3, %v5600
      %v5602 = vrot.slane %v375, %v5601
      %v5603 = vsel %vm4240, %v5598, %v5602
      %v5604 = vsel %vm4241, %v5598, %v5602
      %v5605 = vsel %vm4242, %v5598, %v5602
      %v5606 = vsel %vm4243, %v5598, %v5602
      %v5607 = vsel %vm4244, %v5598, %v5602
      %v5608 = vsel %vm4245, %v5598, %v5602
      %v5609 = vsel %vm4246, %v5598, %v5602
      %v5610 = vsel %vm4247, %v5598, %v5602
      %v5611 = vsel %vm4248, %v5598, %v5602
      %v5612 = vsel %vm4249, %v5598, %v5602
      %v5613 = vsel %vm4250, %v5598, %v5602
      %v5614 = vsel %vm4251, %v5598, %v5602
      %v5615 = vsel %vm4252, %v5598, %v5602
      %v5616 = vsel %vm4253, %v5598, %v5602
      %v5617 = vsel %vm4254, %v5598, %v5602
      %v5618 = vsel %vm4255, %v5598, %v5602
      %v5619 = vsel %vm4256, %v5598, %v5602
      %v5620 = vsel %vm4257, %v5598, %v5602
      %v5621 = vsel %vm4258, %v5598, %v5602
      %v5622 = vsel %vm4259, %v5598, %v5602
      %v5623 = vsel %vm4260, %v5598, %v5602
      %v5624 = vsel %vm4261, %v5598, %v5602
      %v5625 = vsel %vm4262, %v5598, %v5602
      %v5626 = vsel %vm4263, %v5598, %v5602
      %v5627 = vlaneseq
      %v5628 = vshrl.u32 %v5627, 7
      %v5629 = vsub.s32 2, %v5628
      %v5630 = vrot.slane %v375, %v5629
      %v5631 = vlaneseq
      %v5632 = vshrl.u32 %v5631, 7
      %v5633 = vsub.s32 4, %v5632
      %v5634 = vrot.slane %v375, %v5633
      %v5635 = vsel %vm4240, %v5630, %v5634
      %v5636 = vsel %vm4241, %v5630, %v5634
      %v5637 = vsel %vm4242, %v5630, %v5634
      %v5638 = vsel %vm4243, %v5630, %v5634
      %v5639 = vsel %vm4244, %v5630, %v5634
      %v5640 = vsel %vm4245, %v5630, %v5634
      %v5641 = vsel %vm4246, %v5630, %v5634
      %v5642 = vsel %vm4247, %v5630, %v5634
      %v5643 = vsel %vm4248, %v5630, %v5634
      %v5644 = vsel %vm4249, %v5630, %v5634
      %v5645 = vsel %vm4250, %v5630, %v5634
      %v5646 = vsel %vm4251, %v5630, %v5634
      %v5647 = vsel %vm4252, %v5630, %v5634
      %v5648 = vsel %vm4253, %v5630, %v5634
      %v5649 = vsel %vm4254, %v5630, %v5634
      %v5650 = vsel %vm4255, %v5630, %v5634
      %v5651 = vsel %vm4256, %v5630, %v5634
      %v5652 = vsel %vm4257, %v5630, %v5634
      %v5653 = vsel %vm4258, %v5630, %v5634
      %v5654 = vsel %vm4259, %v5630, %v5634
      %v5655 = vsel %vm4260, %v5630, %v5634
      %v5656 = vsel %vm4261, %v5630, %v5634
      %v5657 = vsel %vm4262, %v5630, %v5634
      %v5658 = vsel %vm4263, %v5630, %v5634
      %v5659 = vadd.f32 %v5571, %v4665
      %v5660 = vadd.f32 %v5572, %v4666
      %v5661 = vadd.f32 %v5573, %v4667
      %v5662 = vadd.f32 %v5574, %v4668
      %v5663 = vadd.f32 %v5575, %v4669
      %v5664 = vadd.f32 %v5576, %v4670
      %v5665 = vadd.f32 %v5577, %v4671
      %v5666 = vadd.f32 %v5578, %v4672
      %v5667 = vadd.f32 %v5579, %v4673
      %v5668 = vadd.f32 %v5580, %v4674
      %v5669 = vadd.f32 %v5581, %v4675
      %v5670 = vadd.f32 %v5582, %v4676
      %v5671 = vadd.f32 %v5583, %v4677
      %v5672 = vadd.f32 %v5584, %v4678
      %v5673 = vadd.f32 %v5585, %v4679
      %v5674 = vadd.f32 %v5586, %v4680
      %v5675 = vadd.f32 %v5587, %v4681
      %v5676 = vadd.f32 %v5588, %v4682
      %v5677 = vadd.f32 %v5589, %v4683
      %v5678 = vadd.f32 %v5590, %v4684
      %v5679 = vadd.f32 %v5591, %v4685
      %v5680 = vadd.f32 %v5592, %v4686
      %v5681 = vadd.f32 %v5593, %v4687
      %v5682 = vadd.f32 %v5594, %v4688
      %v5683 = vsel %vm973, %v5659, 0.0
      %5684 = vadd.xlane.f32.xlu0 %v5683
      %v5685 = vpop.xlane.xlu0 %5684
      %v5686 = vsel %vm973, %v5660, 0.0
      %5687 = vadd.xlane.f32.xlu0 %v5686
      %v5688 = vpop.xlane.xlu0 %5687
      %v5689 = vsel %vm973, %v5661, 0.0
      %5690 = vadd.xlane.f32.xlu0 %v5689
      %v5691 = vpop.xlane.xlu0 %5690
      %v5692 = vsel %vm973, %v5662, 0.0
      %5693 = vadd.xlane.f32.xlu0 %v5692
      %v5694 = vpop.xlane.xlu0 %5693
      %v5695 = vsel %vm973, %v5663, 0.0
      %5696 = vadd.xlane.f32.xlu0 %v5695
      %v5697 = vpop.xlane.xlu0 %5696
      %v5698 = vsel %vm973, %v5664, 0.0
      %5699 = vadd.xlane.f32.xlu0 %v5698
      %v5700 = vpop.xlane.xlu0 %5699
      %v5701 = vsel %vm973, %v5665, 0.0
      %5702 = vadd.xlane.f32.xlu0 %v5701
      %v5703 = vpop.xlane.xlu0 %5702
      %v5704 = vsel %vm973, %v5666, 0.0
      %5705 = vadd.xlane.f32.xlu0 %v5704
      %v5706 = vpop.xlane.xlu0 %5705
      %v5707 = vsel %vm973, %v5667, 0.0
      %5708 = vadd.xlane.f32.xlu0 %v5707
      %v5709 = vpop.xlane.xlu0 %5708
      %v5710 = vsel %vm973, %v5668, 0.0
      %5711 = vadd.xlane.f32.xlu0 %v5710
      %v5712 = vpop.xlane.xlu0 %5711
      %v5713 = vsel %vm973, %v5669, 0.0
      %5714 = vadd.xlane.f32.xlu0 %v5713
      %v5715 = vpop.xlane.xlu0 %5714
      %v5716 = vsel %vm973, %v5670, 0.0
      %5717 = vadd.xlane.f32.xlu0 %v5716
      %v5718 = vpop.xlane.xlu0 %5717
      %v5719 = vsel %vm973, %v5671, 0.0
      %5720 = vadd.xlane.f32.xlu0 %v5719
      %v5721 = vpop.xlane.xlu0 %5720
      %v5722 = vsel %vm973, %v5672, 0.0
      %5723 = vadd.xlane.f32.xlu0 %v5722
      %v5724 = vpop.xlane.xlu0 %5723
      %v5725 = vsel %vm973, %v5673, 0.0
      %5726 = vadd.xlane.f32.xlu0 %v5725
      %v5727 = vpop.xlane.xlu0 %5726
      %v5728 = vsel %vm973, %v5674, 0.0
      %5729 = vadd.xlane.f32.xlu0 %v5728
      %v5730 = vpop.xlane.xlu0 %5729
      %v5731 = vsel %vm973, %v5675, 0.0
      %5732 = vadd.xlane.f32.xlu0 %v5731
      %v5733 = vpop.xlane.xlu0 %5732
      %v5734 = vsel %vm973, %v5676, 0.0
      %5735 = vadd.xlane.f32.xlu0 %v5734
      %v5736 = vpop.xlane.xlu0 %5735
      %v5737 = vsel %vm973, %v5677, 0.0
      %5738 = vadd.xlane.f32.xlu0 %v5737
      %v5739 = vpop.xlane.xlu0 %5738
      %v5740 = vsel %vm973, %v5678, 0.0
      %5741 = vadd.xlane.f32.xlu0 %v5740
      %v5742 = vpop.xlane.xlu0 %5741
      %v5743 = vsel %vm973, %v5679, 0.0
      %5744 = vadd.xlane.f32.xlu0 %v5743
      %v5745 = vpop.xlane.xlu0 %5744
      %v5746 = vsel %vm973, %v5680, 0.0
      %5747 = vadd.xlane.f32.xlu0 %v5746
      %v5748 = vpop.xlane.xlu0 %5747
      %v5749 = vsel %vm973, %v5681, 0.0
      %5750 = vadd.xlane.f32.xlu0 %v5749
      %v5751 = vpop.xlane.xlu0 %5750
      %v5752 = vsel %vm973, %v5682, 0.0
      %5753 = vadd.xlane.f32.xlu0 %v5752
      %v5754 = vpop.xlane.xlu0 %5753
      %v5755 = vmul.f32 %v5685, %v4400
      %v5756 = vmul.f32 %v5688, %v4400
      %v5757 = vmul.f32 %v5691, %v4400
      %v5758 = vmul.f32 %v5694, %v4400
      %v5759 = vmul.f32 %v5697, %v4400
      %v5760 = vmul.f32 %v5700, %v4400
      %v5761 = vmul.f32 %v5703, %v4400
      %v5762 = vmul.f32 %v5706, %v4400
      %v5763 = vmul.f32 %v5709, %v4400
      %v5764 = vmul.f32 %v5712, %v4400
      %v5765 = vmul.f32 %v5715, %v4400
      %v5766 = vmul.f32 %v5718, %v4400
      %v5767 = vmul.f32 %v5721, %v4400
      %v5768 = vmul.f32 %v5724, %v4400
      %v5769 = vmul.f32 %v5727, %v4400
      %v5770 = vmul.f32 %v5730, %v4400
      %v5771 = vmul.f32 %v5733, %v4400
      %v5772 = vmul.f32 %v5736, %v4400
      %v5773 = vmul.f32 %v5739, %v4400
      %v5774 = vmul.f32 %v5742, %v4400
      %v5775 = vmul.f32 %v5745, %v4400
      %v5776 = vmul.f32 %v5748, %v4400
      %v5777 = vmul.f32 %v5751, %v4400
      %v5778 = vmul.f32 %v5754, %v4400
      %v5779 = vsub.f32 %v5659, %v5755
      %v5780 = vsub.f32 %v5660, %v5756
      %v5781 = vsub.f32 %v5661, %v5757
      %v5782 = vsub.f32 %v5662, %v5758
      %v5783 = vsub.f32 %v5663, %v5759
      %v5784 = vsub.f32 %v5664, %v5760
      %v5785 = vsub.f32 %v5665, %v5761
      %v5786 = vsub.f32 %v5666, %v5762
      %v5787 = vsub.f32 %v5667, %v5763
      %v5788 = vsub.f32 %v5668, %v5764
      %v5789 = vsub.f32 %v5669, %v5765
      %v5790 = vsub.f32 %v5670, %v5766
      %v5791 = vsub.f32 %v5671, %v5767
      %v5792 = vsub.f32 %v5672, %v5768
      %v5793 = vsub.f32 %v5673, %v5769
      %v5794 = vsub.f32 %v5674, %v5770
      %v5795 = vsub.f32 %v5675, %v5771
      %v5796 = vsub.f32 %v5676, %v5772
      %v5797 = vsub.f32 %v5677, %v5773
      %v5798 = vsub.f32 %v5678, %v5774
      %v5799 = vsub.f32 %v5679, %v5775
      %v5800 = vsub.f32 %v5680, %v5776
      %v5801 = vsub.f32 %v5681, %v5777
      %v5802 = vsub.f32 %v5682, %v5778
      %v5803 = vmul.f32 %v5779, %v5779
      %v5804 = vmul.f32 %v5780, %v5780
      %v5805 = vmul.f32 %v5781, %v5781
      %v5806 = vmul.f32 %v5782, %v5782
      %v5807 = vmul.f32 %v5783, %v5783
      %v5808 = vmul.f32 %v5784, %v5784
      %v5809 = vmul.f32 %v5785, %v5785
      %v5810 = vmul.f32 %v5786, %v5786
      %v5811 = vmul.f32 %v5787, %v5787
      %v5812 = vmul.f32 %v5788, %v5788
      %v5813 = vmul.f32 %v5789, %v5789
      %v5814 = vmul.f32 %v5790, %v5790
      %v5815 = vmul.f32 %v5791, %v5791
      %v5816 = vmul.f32 %v5792, %v5792
      %v5817 = vmul.f32 %v5793, %v5793
      %v5818 = vmul.f32 %v5794, %v5794
      %v5819 = vmul.f32 %v5795, %v5795
      %v5820 = vmul.f32 %v5796, %v5796
      %v5821 = vmul.f32 %v5797, %v5797
      %v5822 = vmul.f32 %v5798, %v5798
      %v5823 = vmul.f32 %v5799, %v5799
      %v5824 = vmul.f32 %v5800, %v5800
      %v5825 = vmul.f32 %v5801, %v5801
      %v5826 = vmul.f32 %v5802, %v5802
      %v5827 = vsel %vm973, %v5803, 0.0
      %5828 = vadd.xlane.f32.xlu0 %v5827
      %v5829 = vpop.xlane.xlu0 %5828
      %v5830 = vsel %vm973, %v5804, 0.0
      %5831 = vadd.xlane.f32.xlu0 %v5830
      %v5832 = vpop.xlane.xlu0 %5831
      %v5833 = vsel %vm973, %v5805, 0.0
      %5834 = vadd.xlane.f32.xlu0 %v5833
      %v5835 = vpop.xlane.xlu0 %5834
      %v5836 = vsel %vm973, %v5806, 0.0
      %5837 = vadd.xlane.f32.xlu0 %v5836
      %v5838 = vpop.xlane.xlu0 %5837
      %v5839 = vsel %vm973, %v5807, 0.0
      %5840 = vadd.xlane.f32.xlu0 %v5839
      %v5841 = vpop.xlane.xlu0 %5840
      %v5842 = vsel %vm973, %v5808, 0.0
      %5843 = vadd.xlane.f32.xlu0 %v5842
      %v5844 = vpop.xlane.xlu0 %5843
      %v5845 = vsel %vm973, %v5809, 0.0
      %5846 = vadd.xlane.f32.xlu0 %v5845
      %v5847 = vpop.xlane.xlu0 %5846
      %v5848 = vsel %vm973, %v5810, 0.0
      %5849 = vadd.xlane.f32.xlu0 %v5848
      %v5850 = vpop.xlane.xlu0 %5849
      %v5851 = vsel %vm973, %v5811, 0.0
      %5852 = vadd.xlane.f32.xlu0 %v5851
      %v5853 = vpop.xlane.xlu0 %5852
      %v5854 = vsel %vm973, %v5812, 0.0
      %5855 = vadd.xlane.f32.xlu0 %v5854
      %v5856 = vpop.xlane.xlu0 %5855
      %v5857 = vsel %vm973, %v5813, 0.0
      %5858 = vadd.xlane.f32.xlu0 %v5857
      %v5859 = vpop.xlane.xlu0 %5858
      %v5860 = vsel %vm973, %v5814, 0.0
      %5861 = vadd.xlane.f32.xlu0 %v5860
      %v5862 = vpop.xlane.xlu0 %5861
      %v5863 = vsel %vm973, %v5815, 0.0
      %5864 = vadd.xlane.f32.xlu0 %v5863
      %v5865 = vpop.xlane.xlu0 %5864
      %v5866 = vsel %vm973, %v5816, 0.0
      %5867 = vadd.xlane.f32.xlu0 %v5866
      %v5868 = vpop.xlane.xlu0 %5867
      %v5869 = vsel %vm973, %v5817, 0.0
      %5870 = vadd.xlane.f32.xlu0 %v5869
      %v5871 = vpop.xlane.xlu0 %5870
      %v5872 = vsel %vm973, %v5818, 0.0
      %5873 = vadd.xlane.f32.xlu0 %v5872
      %v5874 = vpop.xlane.xlu0 %5873
      %v5875 = vsel %vm973, %v5819, 0.0
      %5876 = vadd.xlane.f32.xlu0 %v5875
      %v5877 = vpop.xlane.xlu0 %5876
      %v5878 = vsel %vm973, %v5820, 0.0
      %5879 = vadd.xlane.f32.xlu0 %v5878
      %v5880 = vpop.xlane.xlu0 %5879
      %v5881 = vsel %vm973, %v5821, 0.0
      %5882 = vadd.xlane.f32.xlu0 %v5881
      %v5883 = vpop.xlane.xlu0 %5882
      %v5884 = vsel %vm973, %v5822, 0.0
      %5885 = vadd.xlane.f32.xlu0 %v5884
      %v5886 = vpop.xlane.xlu0 %5885
      %v5887 = vsel %vm973, %v5823, 0.0
      %5888 = vadd.xlane.f32.xlu0 %v5887
      %v5889 = vpop.xlane.xlu0 %5888
      %v5890 = vsel %vm973, %v5824, 0.0
      %5891 = vadd.xlane.f32.xlu0 %v5890
      %v5892 = vpop.xlane.xlu0 %5891
      %v5893 = vsel %vm973, %v5825, 0.0
      %5894 = vadd.xlane.f32.xlu0 %v5893
      %v5895 = vpop.xlane.xlu0 %5894
      %v5896 = vsel %vm973, %v5826, 0.0
      %5897 = vadd.xlane.f32.xlu0 %v5896
      %v5898 = vpop.xlane.xlu0 %5897
      %v5899 = vmul.f32 %v5829, %v4400
      %v5900 = vmul.f32 %v5832, %v4400
      %v5901 = vmul.f32 %v5835, %v4400
      %v5902 = vmul.f32 %v5838, %v4400
      %v5903 = vmul.f32 %v5841, %v4400
      %v5904 = vmul.f32 %v5844, %v4400
      %v5905 = vmul.f32 %v5847, %v4400
      %v5906 = vmul.f32 %v5850, %v4400
      %v5907 = vmul.f32 %v5853, %v4400
      %v5908 = vmul.f32 %v5856, %v4400
      %v5909 = vmul.f32 %v5859, %v4400
      %v5910 = vmul.f32 %v5862, %v4400
      %v5911 = vmul.f32 %v5865, %v4400
      %v5912 = vmul.f32 %v5868, %v4400
      %v5913 = vmul.f32 %v5871, %v4400
      %v5914 = vmul.f32 %v5874, %v4400
      %v5915 = vmul.f32 %v5877, %v4400
      %v5916 = vmul.f32 %v5880, %v4400
      %v5917 = vmul.f32 %v5883, %v4400
      %v5918 = vmul.f32 %v5886, %v4400
      %v5919 = vmul.f32 %v5889, %v4400
      %v5920 = vmul.f32 %v5892, %v4400
      %v5921 = vmul.f32 %v5895, %v4400
      %v5922 = vmul.f32 %v5898, %v4400
      %v5923 = vadd.f32 %v5899, 1e-05
      %v5924 = vadd.f32 %v5900, 1e-05
      %v5925 = vadd.f32 %v5901, 1e-05
      %v5926 = vadd.f32 %v5902, 1e-05
      %v5927 = vadd.f32 %v5903, 1e-05
      %v5928 = vadd.f32 %v5904, 1e-05
      %v5929 = vadd.f32 %v5905, 1e-05
      %v5930 = vadd.f32 %v5906, 1e-05
      %v5931 = vadd.f32 %v5907, 1e-05
      %v5932 = vadd.f32 %v5908, 1e-05
      %v5933 = vadd.f32 %v5909, 1e-05
      %v5934 = vadd.f32 %v5910, 1e-05
      %v5935 = vadd.f32 %v5911, 1e-05
      %v5936 = vadd.f32 %v5912, 1e-05
      %v5937 = vadd.f32 %v5913, 1e-05
      %v5938 = vadd.f32 %v5914, 1e-05
      %v5939 = vadd.f32 %v5915, 1e-05
      %v5940 = vadd.f32 %v5916, 1e-05
      %v5941 = vadd.f32 %v5917, 1e-05
      %v5942 = vadd.f32 %v5918, 1e-05
      %v5943 = vadd.f32 %v5919, 1e-05
      %v5944 = vadd.f32 %v5920, 1e-05
      %v5945 = vadd.f32 %v5921, 1e-05
      %v5946 = vadd.f32 %v5922, 1e-05
      %v5947 = vrsqrt.pop %v5923
      %v5948 = vrsqrt.pop %v5924
      %v5949 = vrsqrt.pop %v5925
      %v5950 = vrsqrt.pop %v5926
      %v5951 = vrsqrt.pop %v5927
      %v5952 = vrsqrt.pop %v5928
      %v5953 = vrsqrt.pop %v5929
      %v5954 = vrsqrt.pop %v5930
      %v5955 = vrsqrt.pop %v5931
      %v5956 = vrsqrt.pop %v5932
      %v5957 = vrsqrt.pop %v5933
      %v5958 = vrsqrt.pop %v5934
      %v5959 = vrsqrt.pop %v5935
      %v5960 = vrsqrt.pop %v5936
      %v5961 = vrsqrt.pop %v5937
      %v5962 = vrsqrt.pop %v5938
      %v5963 = vrsqrt.pop %v5939
      %v5964 = vrsqrt.pop %v5940
      %v5965 = vrsqrt.pop %v5941
      %v5966 = vrsqrt.pop %v5942
      %v5967 = vrsqrt.pop %v5943
      %v5968 = vrsqrt.pop %v5944
      %v5969 = vrsqrt.pop %v5945
      %v5970 = vrsqrt.pop %v5946
      %v5971 = vmul.f32 %v5779, %v5947
      %v5972 = vmul.f32 %v5780, %v5948
      %v5973 = vmul.f32 %v5781, %v5949
      %v5974 = vmul.f32 %v5782, %v5950
      %v5975 = vmul.f32 %v5783, %v5951
      %v5976 = vmul.f32 %v5784, %v5952
      %v5977 = vmul.f32 %v5785, %v5953
      %v5978 = vmul.f32 %v5786, %v5954
      %v5979 = vmul.f32 %v5787, %v5955
      %v5980 = vmul.f32 %v5788, %v5956
      %v5981 = vmul.f32 %v5789, %v5957
      %v5982 = vmul.f32 %v5790, %v5958
      %v5983 = vmul.f32 %v5791, %v5959
      %v5984 = vmul.f32 %v5792, %v5960
      %v5985 = vmul.f32 %v5793, %v5961
      %v5986 = vmul.f32 %v5794, %v5962
      %v5987 = vmul.f32 %v5795, %v5963
      %v5988 = vmul.f32 %v5796, %v5964
      %v5989 = vmul.f32 %v5797, %v5965
      %v5990 = vmul.f32 %v5798, %v5966
      %v5991 = vmul.f32 %v5799, %v5967
      %v5992 = vmul.f32 %v5800, %v5968
      %v5993 = vmul.f32 %v5801, %v5969
      %v5994 = vmul.f32 %v5802, %v5970
      %v5995 = vmul.f32 %v5971, %v5603
      %v5996 = vmul.f32 %v5972, %v5604
      %v5997 = vmul.f32 %v5973, %v5605
      %v5998 = vmul.f32 %v5974, %v5606
      %v5999 = vmul.f32 %v5975, %v5607
      %v6000 = vmul.f32 %v5976, %v5608
      %v6001 = vmul.f32 %v5977, %v5609
      %v6002 = vmul.f32 %v5978, %v5610
      %v6003 = vmul.f32 %v5979, %v5611
      %v6004 = vmul.f32 %v5980, %v5612
      %v6005 = vmul.f32 %v5981, %v5613
      %v6006 = vmul.f32 %v5982, %v5614
      %v6007 = vmul.f32 %v5983, %v5615
      %v6008 = vmul.f32 %v5984, %v5616
      %v6009 = vmul.f32 %v5985, %v5617
      %v6010 = vmul.f32 %v5986, %v5618
      %v6011 = vmul.f32 %v5987, %v5619
      %v6012 = vmul.f32 %v5988, %v5620
      %v6013 = vmul.f32 %v5989, %v5621
      %v6014 = vmul.f32 %v5990, %v5622
      %v6015 = vmul.f32 %v5991, %v5623
      %v6016 = vmul.f32 %v5992, %v5624
      %v6017 = vmul.f32 %v5993, %v5625
      %v6018 = vmul.f32 %v5994, %v5626
      %v6019 = vadd.f32 %v5995, %v5635
      %v6020 = vadd.f32 %v5996, %v5636
      %v6021 = vadd.f32 %v5997, %v5637
      %v6022 = vadd.f32 %v5998, %v5638
      %v6023 = vadd.f32 %v5999, %v5639
      %v6024 = vadd.f32 %v6000, %v5640
      %v6025 = vadd.f32 %v6001, %v5641
      %v6026 = vadd.f32 %v6002, %v5642
      %v6027 = vadd.f32 %v6003, %v5643
      %v6028 = vadd.f32 %v6004, %v5644
      %v6029 = vadd.f32 %v6005, %v5645
      %v6030 = vadd.f32 %v6006, %v5646
      %v6031 = vadd.f32 %v6007, %v5647
      %v6032 = vadd.f32 %v6008, %v5648
      %v6033 = vadd.f32 %v6009, %v5649
      %v6034 = vadd.f32 %v6010, %v5650
      %v6035 = vadd.f32 %v6011, %v5651
      %v6036 = vadd.f32 %v6012, %v5652
      %v6037 = vadd.f32 %v6013, %v5653
      %v6038 = vadd.f32 %v6014, %v5654
      %v6039 = vadd.f32 %v6015, %v5655
      %v6040 = vadd.f32 %v6016, %v5656
      %v6041 = vadd.f32 %v6017, %v5657
      %v6042 = vadd.f32 %v6018, %v5658
      %6043 = vst.msk [vmem:[%s315] sm:$0xff] %vm973, %v6019
      %6044 = vst.msk [vmem:[%s315 + $0x8] sm:$0xff] %vm973, %v6020
      %6045 = vst.msk [vmem:[%s315 + $0x10] sm:$0xff] %vm973, %v6021
      %6046 = vst.msk [vmem:[%s315 + $0x18] sm:$0xff] %vm973, %v6022
      %6047 = vst.msk [vmem:[%s315 + $0x20] sm:$0xff] %vm973, %v6023
      %6048 = vst.msk [vmem:[%s315 + $0x28] sm:$0xff] %vm973, %v6024
      %6049 = vst.msk [vmem:[%s315 + $0x30] sm:$0xff] %vm973, %v6025
      %6050 = vst.msk [vmem:[%s315 + $0x38] sm:$0xff] %vm973, %v6026
      %6051 = vst.msk [vmem:[%s315 + $0x40] sm:$0xff] %vm973, %v6027
      %6052 = vst.msk [vmem:[%s315 + $0x48] sm:$0xff] %vm973, %v6028
      %6053 = vst.msk [vmem:[%s315 + $0x50] sm:$0xff] %vm973, %v6029
      %6054 = vst.msk [vmem:[%s315 + $0x58] sm:$0xff] %vm973, %v6030
      %6055 = vst.msk [vmem:[%s315 + $0x60] sm:$0xff] %vm973, %v6031
      %6056 = vst.msk [vmem:[%s315 + $0x68] sm:$0xff] %vm973, %v6032
      %6057 = vst.msk [vmem:[%s315 + $0x70] sm:$0xff] %vm973, %v6033
      %6058 = vst.msk [vmem:[%s315 + $0x78] sm:$0xff] %vm973, %v6034
      %6059 = vst.msk [vmem:[%s315 + $0x80] sm:$0xff] %vm973, %v6035
      %6060 = vst.msk [vmem:[%s315 + $0x88] sm:$0xff] %vm973, %v6036
      %6061 = vst.msk [vmem:[%s315 + $0x90] sm:$0xff] %vm973, %v6037
      %6062 = vst.msk [vmem:[%s315 + $0x98] sm:$0xff] %vm973, %v6038
      %6063 = vst.msk [vmem:[%s315 + $0xa0] sm:$0xff] %vm973, %v6039
      %6064 = vst.msk [vmem:[%s315 + $0xa8] sm:$0xff] %vm973, %v6040
      %6065 = vst.msk [vmem:[%s315 + $0xb0] sm:$0xff] %vm973, %v6041
      %6066 = vst.msk [vmem:[%s315 + $0xb8] sm:$0xff] %vm973, %v6042
      %p6067 = scmp.lt.s32.totalorder %s18, 3
      %s6068 = scalar_select %p6067, %s18, 3
      %s6069 = smul.addr %s6068, 24
      %s6070 = smul.addr %s6069, 8
      %s6071 = scalar_lea.vmem %s7, %s6070
      // Predicated region
      $region49: #{tpu_custom_call.1} parent=47 // pred_check
        %p6072 = pneg %p198
      $region50: #{tpu_custom_call.1} parent=47 // pred_check_branch
        %6074 = sbr.rel (%p6072) target = $region52
      $region51: #{tpu_custom_call.1} parent=47 // pred_region
        _
      $region52: #{tpu_custom_call.1} parent=47 // pred_fallthru
        _
    $region48: #{tpu_custom_call.1} parent=5 // pred_fallthru
      _
    %p6075 = scmp.le.s32.totalorder 2, %s13
    // Predicated region
    $region53: #{tpu_custom_call.1} parent=5 // pred_check
      %p6076 = pneg %p6075
    $region54: #{tpu_custom_call.1} parent=5 // pred_check_branch
      %6078 = sbr.rel (%p6076) target = $region56
    $region55: #{tpu_custom_call.1} parent=5 // pred_region
      %s6079 = ssub.s32 %s13, 2
      // Predicated region
      $region57: #{tpu_custom_call.1} parent=55 // pred_check
        %p6080 = pneg %p204
      $region58: #{tpu_custom_call.1} parent=55 // pred_check_branch
        %6082 = sbr.rel (%p6080) target = $region60
      $region59: #{tpu_custom_call.1} parent=55 // pred_region
        %p6083 = scmp.lt.s32.totalorder %s19, 3
        %s6084 = scalar_select %p6083, %s19, 3
        %s6085 = smul.addr %s6084, 24
        %s6086 = smul.addr %s6085, 8
        %s6087 = scalar_lea.vmem %s7, %s6086
      $region60: #{tpu_custom_call.1} parent=55 // pred_fallthru
        _
    $region56: #{tpu_custom_call.1} parent=5 // pred_fallthru
      _
  $region6: #{tpu_custom_call.1} parent=0 // loop_footer
    %s17 = sadd.s32 1, %s13
  $region7: #{tpu_custom_call.1} parent=0 // loop_footer_branch
    %12 = sbr.rel target = $region3
  $region8: #{tpu_custom_call.1} parent=0 // loop_exit
    _

</llo_original>
